<compile_context>
chip_gen: v5e
topology: v5e:2x2
jax: 0.10.0
libtpu: 0.0.40
codegen_flags: <defaults>
</compile_context>

<pallas_src>
import jax
import jax.numpy as jnp
from jax.experimental import pallas as pl
from jax.experimental.pallas import tpu as pltpu

LEN_STATES = 3 * 32 * 32   # forward hard-codes state.view(-1, 3*32*32)
NUM_ACTIONS = 84           # forward hard-codes action.view(-1, 84)
ACTION_PAD = 128           # lane-padded action width
LEAKY_SLOPE = 0.01         # nn.LeakyReLU() default negative_slope


def _round_up(x, m):
    return ((x + m - 1) // m) * m


def _leaky_relu(x):
    return jnp.where(x > 0, x, LEAKY_SLOPE * x)


# ----------------------------------------------------------------------------
# Kernel: fused 4-layer MLP forward for the whole (small) batch, all-VMEM.
# ----------------------------------------------------------------------------
def critic_kernel(idx_ref, state_ref, act_ref,
                  w11_ref, w12_ref, w13_ref, b1_ref,
                  w2_ref, b2_ref, w4_ref, b4_ref,
                  w5_ref, b5_ref, o_ref):
    """
    idx_ref   : (B, 1)       f32
    state_ref : (B, 3072)    f32
    act_ref   : (B, 128)     f32   [action | 0-pad]
    w11_ref   : (1, Hp)      f32   fc1_1 weight as a row (lane-padded)
    w12_ref   : (3072, Hp)   bf16  fc1_2^T
    w13_ref   : (128, Hp)    bf16  fc1_3^T (row-padded 84->128)
    b1_ref    : (1, Hp)      f32   b1_1 + b1_2 + b1_3 (lane-padded)
    w2_ref    : (Hp, Mp)     bf16  fc2^T ;  b2_ref: (1, Mp) f32
    w4_ref    : (Mp, Hp)     bf16  fc4^T ;  b4_ref: (1, Hp) f32
    w5_ref    : (1, Hp)      f32   fc5 weight as a row
    b5_ref    : (1, 1)       f32
    o_ref     : (B, 1)       f32
    """
    # --- fc1_1 + fc1_2 + fc1_3, fused; f32 accumulation on the MXU ---
    h = jnp.dot(state_ref[...].astype(jnp.bfloat16), w12_ref[...],
                preferred_element_type=jnp.float32)
    h = h + jnp.dot(act_ref[...].astype(jnp.bfloat16), w13_ref[...],
                    preferred_element_type=jnp.float32)
    h = h + idx_ref[...] * w11_ref[...]        # Linear(1,H): VPU broadcast-multiply
    h = h + b1_ref[...]
    h = _leaky_relu(h)                         # f32 VPU math

    # --- fc2 ---
    h = jnp.dot(h.astype(jnp.bfloat16), w2_ref[...],
                preferred_element_type=jnp.float32) + b2_ref[...]
    h = _leaky_relu(h)

    # --- fc4 ---
    h = jnp.dot(h.astype(jnp.bfloat16), w4_ref[...],
                preferred_element_type=jnp.float32) + b4_ref[...]
    h = _leaky_relu(h)

    # --- fc5: Linear(H,1) as an XLU lane reduction (not a degenerate N=1 matmul) ---
    o_ref[...] = (jnp.sum(h * w5_ref[...], axis=-1, keepdims=True) + b5_ref[...])


# ----------------------------------------------------------------------------
# One-time parameter packing (hoisted out of the per-call path; cache the result).
# ----------------------------------------------------------------------------
def pack_params(params):
    w1_1, b1_1 = params["fc1_1"]   # (H, 1)
    w1_2, b1_2 = params["fc1_2"]   # (H, 3072)
    w1_3, b1_3 = params["fc1_3"]   # (H, 84)
    w2, b2 = params["fc2"]         # (M, H)
    w4, b4 = params["fc4"]         # (H, M)
    w5, b5 = params["fc5"]         # (1, H)
    H = w1_1.shape[0]
    M = w2.shape[0]
    Hp = _round_up(H, 128)
    Mp = _round_up(M, 128)

    def pad2(x, rows, cols):
        return jnp.pad(x, ((0, rows - x.shape[0]), (0, cols - x.shape[1])))

    packed = {
        "w11": pad2(w1_1.T.astype(jnp.float32), 1, Hp),                       # (1, Hp)  f32
        "w12": pad2(w1_2.T, LEN_STATES, Hp).astype(jnp.bfloat16),             # (3072,Hp) bf16
        "w13": pad2(w1_3.T, ACTION_PAD, Hp).astype(jnp.bfloat16),             # (128, Hp) bf16
        "b1":  pad2((b1_1 + b1_2 + b1_3).reshape(1, H).astype(jnp.float32), 1, Hp),
        "w2":  pad2(w2.T, Hp, Mp).astype(jnp.bfloat16),                       # (Hp, Mp) bf16
        "b2":  pad2(b2.reshape(1, M).astype(jnp.float32), 1, Mp),
        "w4":  pad2(w4.T, Mp, Hp).astype(jnp.bfloat16),                       # (Mp, Hp) bf16
        "b4":  pad2(b4.reshape(1, H).astype(jnp.float32), 1, Hp),
        "w5":  pad2(w5.astype(jnp.float32), 1, Hp),                           # (1, Hp)  f32
        "b5":  b5.reshape(1, 1).astype(jnp.float32),
    }
    return packed


# ----------------------------------------------------------------------------
# Forward: jitted wrapper around a single grid-less pallas_call.
# ----------------------------------------------------------------------------
@jax.jit
def critic_forward(index, state, action, packed):
    """index: (B,) or (B,1); state: (B,3,32,32); action: (B,84) -> (B,1)."""
    index = index.reshape(-1, 1).astype(jnp.float32)
    state = state.reshape(-1, LEN_STATES).astype(jnp.float32)
    action = action.reshape(-1, NUM_ACTIONS).astype(jnp.float32)
    B = index.shape[0]
    act_pad = jnp.pad(action, ((0, 0), (0, ACTION_PAD - NUM_ACTIONS)))

    Hp = packed["w12"].shape[1]
    Mp = packed["w2"].shape[1]

    operands = (index, state, act_pad,
                packed["w11"], packed["w12"], packed["w13"], packed["b1"],
                packed["w2"], packed["b2"], packed["w4"], packed["b4"],
                packed["w5"], packed["b5"])

    in_bytes = sum(int(a.size) * a.dtype.itemsize for a in operands)
    out_bytes = B * 4
    flops = 2 * B * (LEN_STATES * Hp + ACTION_PAD * Hp + Hp * Mp + Mp * Hp + Hp)
    # Resident set (everything lives in VMEM) + headroom; safe on all generations
    # (v7x physical VMEM is 64 MiB).
    vmem_limit = int(min(100 * 1024 * 1024, 2 * (in_bytes + out_bytes) + (8 << 20)))

    vmem = pl.BlockSpec(memory_space=pltpu.MemorySpace.VMEM)
    return pl.pallas_call(
        critic_kernel,
        out_shape=jax.ShapeDtypeStruct((B, 1), jnp.float32),
        in_specs=[vmem] * len(operands),
        out_specs=vmem,
        compiler_params=pltpu.CompilerParams(vmem_limit_bytes=vmem_limit),
        cost_estimate=pl.CostEstimate(flops=flops, transcendentals=0,
                                      bytes_accessed=in_bytes + out_bytes),
    )(*operands)


# ----------------------------------------------------------------------------
# References.
# ----------------------------------------------------------------------------
def reference_forward(index, state, action, params):
    """Full-precision plain-JAX reference (matches PyTorch semantics)."""
    index = index.reshape(-1, 1).astype(jnp.float32)
    state = state.reshape(-1, LEN_STATES).astype(jnp.float32)
    action = action.reshape(-1, NUM_ACTIONS).astype(jnp.float32)
    w1_1, b1_1 = params["fc1_1"]
    w1_2, b1_2 = params["fc1_2"]
    w1_3, b1_3 = params["fc1_3"]
    w2, b2 = params["fc2"]
    w4, b4 = params["fc4"]
    w5, b5 = params["fc5"]
    out = ((index @ w1_1.T + b1_1) + (state @ w1_2.T + b1_2)
           + (action @ w1_3.T + b1_3))
    out = _leaky_relu(out)
    out = _leaky_relu(out @ w2.T + b2)
    out = _leaky_relu(out @ w4.T + b4)
    return out @ w5.T + b5


def reference_forward_packed(index, state, action, packed):
    """Plain-JAX emulation of the kernel math (bf16 weights/acts, f32 accumulate)."""
    idx = index.reshape(-1, 1).astype(jnp.float32)
    st = state.reshape(-1, LEN_STATES).astype(jnp.float32)
    ac = action.reshape(-1, NUM_ACTIONS).astype(jnp.float32)
    ac = jnp.pad(ac, ((0, 0), (0, ACTION_PAD - NUM_ACTIONS)))
    h = jnp.dot(st.astype(jnp.bfloat16), packed["w12"],
                preferred_element_type=jnp.float32)
    h = h + jnp.dot(ac.astype(jnp.bfloat16), packed["w13"],
                    preferred_element_type=jnp.float32)
    h = h + idx * packed["w11"] + packed["b1"]
    h = _leaky_relu(h)
    h = _leaky_relu(jnp.dot(h.astype(jnp.bfloat16), packed["w2"],
                            preferred_element_type=jnp.float32) + packed["b2"])
    h = _leaky_relu(jnp.dot(h.astype(jnp.bfloat16), packed["w4"],
                            preferred_element_type=jnp.float32) + packed["b4"])
    return jnp.sum(h * packed["w5"], axis=-1, keepdims=True) + packed["b5"]


def _init_linear(key, out_f, in_f):
    """PyTorch nn.Linear default init: U(-1/sqrt(fan_in), 1/sqrt(fan_in))."""
    kw, kb = jax.random.split(key)
    bound = 1.0 / (in_f ** 0.5)
    w = jax.random.uniform(kw, (out_f, in_f), jnp.float32, -bound, bound)
    b = jax.random.uniform(kb, (out_f,), jnp.float32, -bound, bound)
    return w, b


if __name__ == "__main__":
    # Small stand-ins for the default hidden=middle=1000; deliberately NOT
    # multiples of 128 so the lane-padding path (the real-config case) is exercised.
    HIDDEN = 200
    MIDDLE = 120
    B = 8

    key = jax.random.PRNGKey(0)
    keys = jax.random.split(key, 9)
    params = {
        "fc1_1": _init_linear(keys[0], HIDDEN, 1),
        "fc1_2": _init_linear(keys[1], HIDDEN, LEN_STATES),
        "fc1_3": _init_linear(keys[2], HIDDEN, NUM_ACTIONS),
        "fc2": _init_linear(keys[3], MIDDLE, HIDDEN),
        "fc4": _init_linear(keys[4], HIDDEN, MIDDLE),
        "fc5": _init_linear(keys[5], 1, HIDDEN),
    }

    index = jax.random.uniform(keys[6], (B, 1), jnp.float32)
    state = jax.random.normal(keys[7], (B, 3, 32, 32), jnp.float32)
    action = jax.random.normal(keys[8], (B, NUM_ACTIONS), jnp.float32)

    # One-time packing (hoisted out of the per-call path; reuse across calls).
    packed = jax.tree_util.tree_map(jnp.asarray, pack_params(params))

    out = critic_forward(index, state, action, packed)
    out = jax.block_until_ready(out)

    # 1) Kernel exactness vs. an identical-math plain-JAX emulation (tight).
    ref_q = reference_forward_packed(index, state, action, packed)
    if not jnp.allclose(out, ref_q, atol=1e-3, rtol=1e-3):
        max_err = float(jnp.max(jnp.abs(out - ref_q)))
        raise AssertionError(
            f"Pallas kernel mismatch vs bf16-emulation reference (max abs err {max_err})")

    # 2) Semantics vs. the full-precision PyTorch-equivalent reference
    #    (loose tolerance: only deviation is bf16 weight/activation streaming).
    ref = reference_forward(index, state, action, params)
    if not jnp.allclose(out, ref, atol=5e-2, rtol=5e-2):
        max_err = float(jnp.max(jnp.abs(out - ref)))
        raise AssertionError(
            f"Pallas kernel mismatch vs f32 reference (max abs err {max_err})")

    print("KERNEL_OK")
</pallas_src>

<mosaic_0001>
module attributes {stable_mosaic.version = 11 : i64} {
  func.func @critic_kernel(%arg0: memref<8x1xf32, #tpu.memory_space<vmem>>, %arg1: memref<8x3072xf32, #tpu.memory_space<vmem>>, %arg2: memref<8x128xf32, #tpu.memory_space<vmem>>, %arg3: memref<1x256xf32, #tpu.memory_space<vmem>>, %arg4: memref<3072x256xbf16, #tpu.memory_space<vmem>>, %arg5: memref<128x256xbf16, #tpu.memory_space<vmem>>, %arg6: memref<1x256xf32, #tpu.memory_space<vmem>>, %arg7: memref<256x128xbf16, #tpu.memory_space<vmem>>, %arg8: memref<1x128xf32, #tpu.memory_space<vmem>>, %arg9: memref<128x256xbf16, #tpu.memory_space<vmem>>, %arg10: memref<1x256xf32, #tpu.memory_space<vmem>>, %arg11: memref<1x256xf32, #tpu.memory_space<vmem>>, %arg12: memref<1x1xf32, #tpu.memory_space<vmem>>, %arg13: memref<8x1xf32, #tpu.memory_space<vmem>>) attributes {dimension_semantics = [], scalar_prefetch = 0 : i64, scratch_operands = 0 : i64, tpu.core_type = #tpu.core_type<tc>} {
    %c0 = arith.constant 0 : index
    %c0_0 = arith.constant 0 : index
    %0 = vector.load %arg1[%c0, %c0_0] : memref<8x3072xf32, #tpu.memory_space<vmem>>, vector<8x3072xf32>
    %1 = arith.truncf %0 : vector<8x3072xf32> to vector<8x3072xbf16>
    %c0_1 = arith.constant 0 : index
    %c0_2 = arith.constant 0 : index
    %2 = vector.load %arg4[%c0_1, %c0_2] : memref<3072x256xbf16, #tpu.memory_space<vmem>>, vector<3072x256xbf16>
    %cst = arith.constant dense<0.000000e+00> : vector<8x256xf32>
    %3 = tpu.matmul %1, %2, %cst {dimension_numbers = #tpu.dot_dimension_numbers<[1], [0], [0], [1], [0, 0, 1, 1], [], []>} : vector<8x3072xbf16>, vector<3072x256xbf16>, vector<8x256xf32> -> vector<8x256xf32>
    %c0_3 = arith.constant 0 : index
    %c0_4 = arith.constant 0 : index
    %4 = vector.load %arg2[%c0_3, %c0_4] : memref<8x128xf32, #tpu.memory_space<vmem>>, vector<8x128xf32>
    %5 = arith.truncf %4 : vector<8x128xf32> to vector<8x128xbf16>
    %c0_5 = arith.constant 0 : index
    %c0_6 = arith.constant 0 : index
    %6 = vector.load %arg5[%c0_5, %c0_6] : memref<128x256xbf16, #tpu.memory_space<vmem>>, vector<128x256xbf16>
    %cst_7 = arith.constant dense<0.000000e+00> : vector<8x256xf32>
    %7 = tpu.matmul %5, %6, %cst_7 {dimension_numbers = #tpu.dot_dimension_numbers<[1], [0], [0], [1], [0, 0, 1, 1], [], []>} : vector<8x128xbf16>, vector<128x256xbf16>, vector<8x256xf32> -> vector<8x256xf32>
    %8 = arith.addf %3, %7 : vector<8x256xf32>
    %c0_8 = arith.constant 0 : index
    %c0_9 = arith.constant 0 : index
    %9 = vector.load %arg0[%c0_8, %c0_9] : memref<8x1xf32, #tpu.memory_space<vmem>>, vector<8x1xf32>
    %c0_10 = arith.constant 0 : index
    %c0_11 = arith.constant 0 : index
    %10 = vector.load %arg3[%c0_10, %c0_11] : memref<1x256xf32, #tpu.memory_space<vmem>>, vector<1x256xf32>
    %11 = vector.broadcast %9 : vector<8x1xf32> to vector<8x256xf32>
    %12 = vector.broadcast %10 : vector<1x256xf32> to vector<8x256xf32>
    %13 = arith.mulf %11, %12 : vector<8x256xf32>
    %14 = arith.addf %8, %13 : vector<8x256xf32>
    %c0_12 = arith.constant 0 : index
    %c0_13 = arith.constant 0 : index
    %15 = vector.load %arg6[%c0_12, %c0_13] : memref<1x256xf32, #tpu.memory_space<vmem>>, vector<1x256xf32>
    %16 = vector.broadcast %15 : vector<1x256xf32> to vector<8x256xf32>
    %17 = arith.addf %14, %16 : vector<8x256xf32>
    %cst_14 = arith.constant 0.000000e+00 : f32
    %18 = vector.broadcast %cst_14 : f32 to vector<8x256xf32>
    %19 = arith.cmpf ogt, %17, %18 : vector<8x256xf32>
    %cst_15 = arith.constant 0.00999999977 : f32
    %20 = vector.broadcast %cst_15 : f32 to vector<8x256xf32>
    %21 = arith.mulf %20, %17 : vector<8x256xf32>
    %22 = arith.select %19, %17, %21 : vector<8x256xi1>, vector<8x256xf32>
    %23 = arith.truncf %22 : vector<8x256xf32> to vector<8x256xbf16>
    %c0_16 = arith.constant 0 : index
    %c0_17 = arith.constant 0 : index
    %24 = vector.load %arg7[%c0_16, %c0_17] : memref<256x128xbf16, #tpu.memory_space<vmem>>, vector<256x128xbf16>
    %cst_18 = arith.constant dense<0.000000e+00> : vector<8x128xf32>
    %25 = tpu.matmul %23, %24, %cst_18 {dimension_numbers = #tpu.dot_dimension_numbers<[1], [0], [0], [1], [0, 0, 1, 1], [], []>} : vector<8x256xbf16>, vector<256x128xbf16>, vector<8x128xf32> -> vector<8x128xf32>
    %c0_19 = arith.constant 0 : index
    %c0_20 = arith.constant 0 : index
    %26 = vector.load %arg8[%c0_19, %c0_20] : memref<1x128xf32, #tpu.memory_space<vmem>>, vector<1x128xf32>
    %27 = vector.broadcast %26 : vector<1x128xf32> to vector<8x128xf32>
    %28 = arith.addf %25, %27 : vector<8x128xf32>
    %cst_21 = arith.constant 0.000000e+00 : f32
    %29 = vector.broadcast %cst_21 : f32 to vector<8x128xf32>
    %30 = arith.cmpf ogt, %28, %29 : vector<8x128xf32>
    %cst_22 = arith.constant 0.00999999977 : f32
    %31 = vector.broadcast %cst_22 : f32 to vector<8x128xf32>
    %32 = arith.mulf %31, %28 : vector<8x128xf32>
    %33 = arith.select %30, %28, %32 : vector<8x128xi1>, vector<8x128xf32>
    %34 = arith.truncf %33 : vector<8x128xf32> to vector<8x128xbf16>
    %c0_23 = arith.constant 0 : index
    %c0_24 = arith.constant 0 : index
    %35 = vector.load %arg9[%c0_23, %c0_24] : memref<128x256xbf16, #tpu.memory_space<vmem>>, vector<128x256xbf16>
    %cst_25 = arith.constant dense<0.000000e+00> : vector<8x256xf32>
    %36 = tpu.matmul %34, %35, %cst_25 {dimension_numbers = #tpu.dot_dimension_numbers<[1], [0], [0], [1], [0, 0, 1, 1], [], []>} : vector<8x128xbf16>, vector<128x256xbf16>, vector<8x256xf32> -> vector<8x256xf32>
    %c0_26 = arith.constant 0 : index
    %c0_27 = arith.constant 0 : index
    %37 = vector.load %arg10[%c0_26, %c0_27] : memref<1x256xf32, #tpu.memory_space<vmem>>, vector<1x256xf32>
    %38 = vector.broadcast %37 : vector<1x256xf32> to vector<8x256xf32>
    %39 = arith.addf %36, %38 : vector<8x256xf32>
    %cst_28 = arith.constant 0.000000e+00 : f32
    %40 = vector.broadcast %cst_28 : f32 to vector<8x256xf32>
    %41 = arith.cmpf ogt, %39, %40 : vector<8x256xf32>
    %cst_29 = arith.constant 0.00999999977 : f32
    %42 = vector.broadcast %cst_29 : f32 to vector<8x256xf32>
    %43 = arith.mulf %42, %39 : vector<8x256xf32>
    %44 = arith.select %41, %39, %43 : vector<8x256xi1>, vector<8x256xf32>
    %c0_30 = arith.constant 0 : index
    %c0_31 = arith.constant 0 : index
    %45 = vector.load %arg11[%c0_30, %c0_31] : memref<1x256xf32, #tpu.memory_space<vmem>>, vector<1x256xf32>
    %46 = vector.broadcast %45 : vector<1x256xf32> to vector<8x256xf32>
    %47 = arith.mulf %44, %46 : vector<8x256xf32>
    %cst_32 = arith.constant dense<0.000000e+00> : vector<8xf32>
    %48 = vector.multi_reduction <add>, %47, %cst_32 [1] : vector<8x256xf32> to vector<8xf32>
    %49 = vector.shape_cast %48 : vector<8xf32> to vector<8x1xf32>
    %c0_33 = arith.constant 0 : index
    %c0_34 = arith.constant 0 : index
    %50 = vector.load %arg12[%c0_33, %c0_34] : memref<1x1xf32, #tpu.memory_space<vmem>>, vector<1x1xf32>
    %51 = vector.broadcast %50 : vector<1x1xf32> to vector<8x1xf32>
    %52 = arith.addf %49, %51 : vector<8x1xf32>
    %c0_35 = arith.constant 0 : index
    %c0_36 = arith.constant 0 : index
    %53 = vector.load %arg13[%c0_35, %c0_36] : memref<8x1xf32, #tpu.memory_space<vmem>>, vector<8x1xf32>
    tpu.vector_store %arg13[%c0_35, %c0_36], %52 {strides = array<i32>} : memref<8x1xf32, #tpu.memory_space<vmem>>, vector<8x1xf32>,
    return
  }
}

</mosaic_0001>

<llo_original>
// kernel: critic_forward.1
$region0: #{critic_forward.1}
  #allocation0 [shape = 'u32[]', space=smem, size = 0x4, offset = 0x4, fixed_abs, tag = 'smem constant byte address 0x4 - core index']
  #allocation1 [shape = 'u32[72,128]{1,0:T(1,128)}', space=vmem, size = 0x9000, scoped, tag = 'internal scratch']
  #allocation2 [shape = 'f32[1,1]{1,0:T(1,128)S(1)}', space=vmem, size = 0x200, scoped, tag = 'scoped memory for critic_forward.1']
  %s0 = inlined_call_operand.vmem [shape: f32[8,1], index: 0, kind: input, shape index: {}]
  %s1 = inlined_call_operand.vmem [shape: f32[8,3072], index: 1, kind: input, shape index: {}]
  %s2 = inlined_call_operand.vmem [shape: f32[8,128], index: 2, kind: input, shape index: {}]
  %s3 = inlined_call_operand.hbm [shape: f32[1,256], index: 3, kind: input, shape index: {}]
  %s4 = inlined_call_operand.hbm [shape: bf16[3072,256], index: 4, kind: input, shape index: {}]
  %s5 = inlined_call_operand.hbm [shape: bf16[128,256], index: 5, kind: input, shape index: {}]
  %s6 = inlined_call_operand.hbm [shape: f32[1,256], index: 6, kind: input, shape index: {}]
  %s7 = inlined_call_operand.hbm [shape: bf16[256,128], index: 7, kind: input, shape index: {}]
  %s8 = inlined_call_operand.hbm [shape: f32[1,128], index: 8, kind: input, shape index: {}]
  %s9 = inlined_call_operand.hbm [shape: bf16[128,256], index: 9, kind: input, shape index: {}]
  %s10 = inlined_call_operand.hbm [shape: f32[1,256], index: 10, kind: input, shape index: {}]
  %s11 = inlined_call_operand.hbm [shape: f32[1,256], index: 11, kind: input, shape index: {}]
  %s12 = inlined_call_operand.<no memory space> [shape: f32[1,1], index: 12, kind: input, shape index: {}]
  %s13 = inlined_call_operand.vmem [shape: f32[8,1], index: 13, kind: output, shape index: {}]
  %s14 = sld [smem:[#allocation0]]
  $region98: #{critic_forward.1} parent=0
    _
  %s16 = ssub.s32 1, %s14
  %s17 = scalar_select 0, %s16, %s14
  %v18 = vstv %s12
  %19 = vst [vmem:[#allocation2] sm:$0x1] %v18
  $region1: #{critic_forward.1} parent=0
    #allocation3 [shape = 'u8[1024]{0}', space=vmem, size = 0x400, scoped, tag = 'input window, operand 3, single buffered']
    #allocation4 [shape = 's32[1]{0}', space=sflag, size = 0x4, scoped, tag = 'scoped memory for critic_forward.1']
    #allocation5 [shape = 'u8[1572864]{0}', space=vmem, size = 0x180000, scoped, tag = 'input window, operand 4, single buffered']
    #allocation6 [shape = 's32[1]{0}', space=sflag, size = 0x4, scoped, tag = 'scoped memory for critic_forward.1']
    #allocation7 [shape = 'u8[65536]{0}', space=vmem, size = 0x10000, scoped, tag = 'input window, operand 5, single buffered']
    #allocation8 [shape = 'u8[1024]{0}', space=vmem, size = 0x400, scoped, tag = 'input window, operand 6, single buffered']
    #allocation9 [shape = 's32[1]{0}', space=sflag, size = 0x4, scoped, tag = 'scoped memory for critic_forward.1']
    #allocation10 [shape = 'u8[65536]{0}', space=vmem, size = 0x10000, scoped, tag = 'input window, operand 7, single buffered']
    #allocation11 [shape = 'u8[512]{0}', space=vmem, size = 0x400, scoped, tag = 'input window, operand 8, single buffered']
    #allocation12 [shape = 's32[1]{0}', space=sflag, size = 0x4, scoped, tag = 'scoped memory for critic_forward.1']
    #allocation13 [shape = 'u8[65536]{0}', space=vmem, size = 0x10000, scoped, tag = 'input window, operand 9, single buffered']
    #allocation14 [shape = 'u8[1024]{0}', space=vmem, size = 0x400, scoped, tag = 'input window, operand 10, single buffered']
    #allocation15 [shape = 's32[1]{0}', space=sflag, size = 0x4, scoped, tag = 'scoped memory for critic_forward.1']
    #allocation16 [shape = 'u8[1024]{0}', space=vmem, size = 0x400, scoped, tag = 'input window, operand 11, single buffered']
    %20 = vsyncpa [#allocation4], 0
    %21 = vsyncpa [#allocation6], 0
    %22 = vsyncpa [#allocation9], 0
    %23 = vsyncpa [#allocation12], 0
    %24 = vsyncpa [#allocation15], 0
    // Predicated region
    $region2: #{critic_forward.1} parent=1 // pred_check
      _
    $region3: #{critic_forward.1} parent=1 // pred_check_branch
      %26 = sbr.rel (0) target = $region5
    $region4: #{critic_forward.1} parent=1 // pred_region
      _
    $region5: #{critic_forward.1} parent=1 // pred_fallthru
      _
    // Predicated region
    $region6: #{critic_forward.1} parent=1 // pred_check
      _
    $region7: #{critic_forward.1} parent=1 // pred_check_branch
      %28 = sbr.rel (0) target = $region9
    $region8: #{critic_forward.1} parent=1 // pred_region
      _
    $region9: #{critic_forward.1} parent=1 // pred_fallthru
      _
    // Predicated region
    $region10: #{critic_forward.1} parent=1 // pred_check
      _
    $region11: #{critic_forward.1} parent=1 // pred_check_branch
      %30 = sbr.rel (0) target = $region13
    $region12: #{critic_forward.1} parent=1 // pred_region
      _
    $region13: #{critic_forward.1} parent=1 // pred_fallthru
      _
    // Predicated region
    $region14: #{critic_forward.1} parent=1 // pred_check
      _
    $region15: #{critic_forward.1} parent=1 // pred_check_branch
      %32 = sbr.rel (0) target = $region17
    $region16: #{critic_forward.1} parent=1 // pred_region
      %34 = vsyncadd [#allocation4], 0
      %s36 = sshll.u32 %s3, 4
      %s37 = int_to_ptr.hbm [resolvable:$true] %s36
      %s38 = sshll.u32 [#allocation3], 4
      %s39 = int_to_ptr.vmem [resolvable:$true] %s38
      %41 = dma.hbm_to_vmem [thread:$0]  %s37, 32, %s39, [#allocation4]
    $region17: #{critic_forward.1} parent=1 // pred_fallthru
      _
    // Predicated region
    $region18: #{critic_forward.1} parent=1 // pred_check
      _
    $region19: #{critic_forward.1} parent=1 // pred_check_branch
      %43 = sbr.rel (0) target = $region21
    $region20: #{critic_forward.1} parent=1 // pred_region
      %45 = vsyncadd [#allocation6], 0
      %s46 = sshll.u32 %s4, 4
      %s47 = int_to_ptr.hbm [resolvable:$true] %s46
      %s48 = sshll.u32 [#allocation5], 4
      %s49 = int_to_ptr.vmem [resolvable:$true] %s48
      %54 = dma.hbm_to_vmem [thread:$0]  %s47, 49152, %s49, [#allocation6], 128, 128, 8
    $region21: #{critic_forward.1} parent=1 // pred_fallthru
      _
    // Predicated region
    $region22: #{critic_forward.1} parent=1 // pred_check
      _
    $region23: #{critic_forward.1} parent=1 // pred_check_branch
      %56 = sbr.rel (0) target = $region25
    $region24: #{critic_forward.1} parent=1 // pred_region
      %58 = vsyncadd [#allocation6], 0
      %s59 = sshll.u32 %s5, 4
      %s60 = int_to_ptr.hbm [resolvable:$true] %s59
      %s61 = sshll.u32 [#allocation7], 4
      %s62 = int_to_ptr.vmem [resolvable:$true] %s61
      %67 = dma.hbm_to_vmem [thread:$0]  %s60, 2048, %s62, [#allocation6], 128, 128, 8
    $region25: #{critic_forward.1} parent=1 // pred_fallthru
      _
    // Predicated region
    $region26: #{critic_forward.1} parent=1 // pred_check
      _
    $region27: #{critic_forward.1} parent=1 // pred_check_branch
      %69 = sbr.rel (0) target = $region29
    $region28: #{critic_forward.1} parent=1 // pred_region
      %71 = vsyncadd [#allocation9], 0
      %s73 = sshll.u32 %s6, 4
      %s74 = int_to_ptr.hbm [resolvable:$true] %s73
      %s75 = sshll.u32 [#allocation8], 4
      %s76 = int_to_ptr.vmem [resolvable:$true] %s75
      %78 = dma.hbm_to_vmem [thread:$0]  %s74, 32, %s76, [#allocation9]
    $region29: #{critic_forward.1} parent=1 // pred_fallthru
      _
    // Predicated region
    $region30: #{critic_forward.1} parent=1 // pred_check
      _
    $region31: #{critic_forward.1} parent=1 // pred_check_branch
      %80 = sbr.rel (0) target = $region33
    $region32: #{critic_forward.1} parent=1 // pred_region
      %82 = vsyncadd [#allocation9], 0
      %s83 = sshll.u32 %s7, 4
      %s84 = int_to_ptr.hbm [resolvable:$true] %s83
      %s85 = sshll.u32 [#allocation10], 4
      %s86 = int_to_ptr.vmem [resolvable:$true] %s85
      %91 = dma.hbm_to_vmem [thread:$0]  %s84, 2048, %s86, [#allocation9], 64, 64, 4
    $region33: #{critic_forward.1} parent=1 // pred_fallthru
      _
    // Predicated region
    $region34: #{critic_forward.1} parent=1 // pred_check
      _
    $region35: #{critic_forward.1} parent=1 // pred_check_branch
      %93 = sbr.rel (0) target = $region37
    $region36: #{critic_forward.1} parent=1 // pred_region
      %95 = vsyncadd [#allocation12], 0
      %s97 = sshll.u32 %s8, 4
      %s98 = int_to_ptr.hbm [resolvable:$true] %s97
      %s99 = sshll.u32 [#allocation11], 4
      %s100 = int_to_ptr.vmem [resolvable:$true] %s99
      %102 = dma.hbm_to_vmem [thread:$0]  %s98, 16, %s100, [#allocation12]
    $region37: #{critic_forward.1} parent=1 // pred_fallthru
      _
    // Predicated region
    $region38: #{critic_forward.1} parent=1 // pred_check
      _
    $region39: #{critic_forward.1} parent=1 // pred_check_branch
      %104 = sbr.rel (0) target = $region41
    $region40: #{critic_forward.1} parent=1 // pred_region
      %106 = vsyncadd [#allocation12], 0
      %s107 = sshll.u32 %s9, 4
      %s108 = int_to_ptr.hbm [resolvable:$true] %s107
      %s109 = sshll.u32 [#allocation13], 4
      %s110 = int_to_ptr.vmem [resolvable:$true] %s109
      %115 = dma.hbm_to_vmem [thread:$0]  %s108, 2048, %s110, [#allocation12], 128, 128, 8
    $region41: #{critic_forward.1} parent=1 // pred_fallthru
      _
    // Predicated region
    $region42: #{critic_forward.1} parent=1 // pred_check
      _
    $region43: #{critic_forward.1} parent=1 // pred_check_branch
      %117 = sbr.rel (0) target = $region45
    $region44: #{critic_forward.1} parent=1 // pred_region
      %119 = vsyncadd [#allocation15], 0
      %s121 = sshll.u32 %s10, 4
      %s122 = int_to_ptr.hbm [resolvable:$true] %s121
      %s123 = sshll.u32 [#allocation14], 4
      %s124 = int_to_ptr.vmem [resolvable:$true] %s123
      %126 = dma.hbm_to_vmem [thread:$0]  %s122, 32, %s124, [#allocation15]
    $region45: #{critic_forward.1} parent=1 // pred_fallthru
      _
    // Predicated region
    $region46: #{critic_forward.1} parent=1 // pred_check
      _
    $region47: #{critic_forward.1} parent=1 // pred_check_branch
      %128 = sbr.rel (0) target = $region49
    $region48: #{critic_forward.1} parent=1 // pred_region
      %130 = vsyncadd [#allocation15], 0
      %s132 = sshll.u32 %s11, 4
      %s133 = int_to_ptr.hbm [resolvable:$true] %s132
      %s134 = sshll.u32 [#allocation16], 4
      %s135 = int_to_ptr.vmem [resolvable:$true] %s134
      %137 = dma.hbm_to_vmem [thread:$0]  %s133, 32, %s135, [#allocation15]
    $region49: #{critic_forward.1} parent=1 // pred_fallthru
      _
    // Predicated region
    $region50: #{critic_forward.1} parent=1 // pred_check
      _
    $region51: #{critic_forward.1} parent=1 // pred_check_branch
      %139 = sbr.rel (0) target = $region53
    $region52: #{critic_forward.1} parent=1 // pred_region
      _
    $region53: #{critic_forward.1} parent=1 // pred_fallthru
      _
    // Predicated region
    $region54: #{critic_forward.1} parent=1 // pred_check
      _
    $region55: #{critic_forward.1} parent=1 // pred_check_branch
      %141 = sbr.rel (0) target = $region57
    $region56: #{critic_forward.1} parent=1 // pred_region
      %143 = dma.done [#allocation4], 32
    $region57: #{critic_forward.1} parent=1 // pred_fallthru
      _
    // Predicated region
    $region58: #{critic_forward.1} parent=1 // pred_check
      _
    $region59: #{critic_forward.1} parent=1 // pred_check_branch
      %145 = sbr.rel (0) target = $region61
    $region60: #{critic_forward.1} parent=1 // pred_region
      %147 = dma.done [#allocation6], 49152
    $region61: #{critic_forward.1} parent=1 // pred_fallthru
      _
    // Predicated region
    $region62: #{critic_forward.1} parent=1 // pred_check
      _
    $region63: #{critic_forward.1} parent=1 // pred_check_branch
      %149 = sbr.rel (0) target = $region65
    $region64: #{critic_forward.1} parent=1 // pred_region
      %151 = dma.done [#allocation6], 2048
    $region65: #{critic_forward.1} parent=1 // pred_fallthru
      _
    // Predicated region
    $region66: #{critic_forward.1} parent=1 // pred_check
      _
    $region67: #{critic_forward.1} parent=1 // pred_check_branch
      %153 = sbr.rel (0) target = $region69
    $region68: #{critic_forward.1} parent=1 // pred_region
      %155 = dma.done [#allocation9], 32
    $region69: #{critic_forward.1} parent=1 // pred_fallthru
      _
    // Predicated region
    $region70: #{critic_forward.1} parent=1 // pred_check
      _
    $region71: #{critic_forward.1} parent=1 // pred_check_branch
      %157 = sbr.rel (0) target = $region73
    $region72: #{critic_forward.1} parent=1 // pred_region
      %159 = dma.done [#allocation9], 2048
    $region73: #{critic_forward.1} parent=1 // pred_fallthru
      _
    // Predicated region
    $region74: #{critic_forward.1} parent=1 // pred_check
      _
    $region75: #{critic_forward.1} parent=1 // pred_check_branch
      %161 = sbr.rel (0) target = $region77
    $region76: #{critic_forward.1} parent=1 // pred_region
      %163 = dma.done [#allocation12], 16
    $region77: #{critic_forward.1} parent=1 // pred_fallthru
      _
    // Predicated region
    $region78: #{critic_forward.1} parent=1 // pred_check
      _
    $region79: #{critic_forward.1} parent=1 // pred_check_branch
      %165 = sbr.rel (0) target = $region81
    $region80: #{critic_forward.1} parent=1 // pred_region
      %167 = dma.done [#allocation12], 2048
    $region81: #{critic_forward.1} parent=1 // pred_fallthru
      _
    // Predicated region
    $region82: #{critic_forward.1} parent=1 // pred_check
      _
    $region83: #{critic_forward.1} parent=1 // pred_check_branch
      %169 = sbr.rel (0) target = $region85
    $region84: #{critic_forward.1} parent=1 // pred_region
      %171 = dma.done [#allocation15], 32
    $region85: #{critic_forward.1} parent=1 // pred_fallthru
      _
    // Predicated region
    $region86: #{critic_forward.1} parent=1 // pred_check
      _
    $region87: #{critic_forward.1} parent=1 // pred_check_branch
      %173 = sbr.rel (0) target = $region89
    $region88: #{critic_forward.1} parent=1 // pred_region
      %175 = dma.done [#allocation15], 32
    $region89: #{critic_forward.1} parent=1 // pred_fallthru
      _
    %v176 = vld [vmem:[%s1] sm:$0xff]
    %v177 = vld [vmem:[%s1 + $0x8] sm:$0xff]
    %v178 = vld [vmem:[%s1 + $0x10] sm:$0xff]
    %v179 = vld [vmem:[%s1 + $0x18] sm:$0xff]
    %v180 = vld [vmem:[%s1 + $0x20] sm:$0xff]
    %v181 = vld [vmem:[%s1 + $0x28] sm:$0xff]
    %v182 = vld [vmem:[%s1 + $0x30] sm:$0xff]
    %v183 = vld [vmem:[%s1 + $0x38] sm:$0xff]
    %v184 = vld [vmem:[%s1 + $0x40] sm:$0xff]
    %v185 = vld [vmem:[%s1 + $0x48] sm:$0xff]
    %v186 = vld [vmem:[%s1 + $0x50] sm:$0xff]
    %v187 = vld [vmem:[%s1 + $0x58] sm:$0xff]
    %v188 = vld [vmem:[%s1 + $0x60] sm:$0xff]
    %v189 = vld [vmem:[%s1 + $0x68] sm:$0xff]
    %v190 = vld [vmem:[%s1 + $0x70] sm:$0xff]
    %v191 = vld [vmem:[%s1 + $0x78] sm:$0xff]
    %v192 = vld [vmem:[%s1 + $0x80] sm:$0xff]
    %v193 = vld [vmem:[%s1 + $0x88] sm:$0xff]
    %v194 = vld [vmem:[%s1 + $0x90] sm:$0xff]
    %v195 = vld [vmem:[%s1 + $0x98] sm:$0xff]
    %v196 = vld [vmem:[%s1 + $0xa0] sm:$0xff]
    %v197 = vld [vmem:[%s1 + $0xa8] sm:$0xff]
    %v198 = vld [vmem:[%s1 + $0xb0] sm:$0xff]
    %v199 = vld [vmem:[%s1 + $0xb8] sm:$0xff]
    %v200 = vpack.c.bf16 %v176, %v176
    %v201 = vpack.c.bf16 %v177, %v177
    %v202 = vpack.c.bf16 %v178, %v178
    %v203 = vpack.c.bf16 %v179, %v179
    %v204 = vpack.c.bf16 %v180, %v180
    %v205 = vpack.c.bf16 %v181, %v181
    %v206 = vpack.c.bf16 %v182, %v182
    %v207 = vpack.c.bf16 %v183, %v183
    %v208 = vpack.c.bf16 %v184, %v184
    %v209 = vpack.c.bf16 %v185, %v185
    %v210 = vpack.c.bf16 %v186, %v186
    %v211 = vpack.c.bf16 %v187, %v187
    %v212 = vpack.c.bf16 %v188, %v188
    %v213 = vpack.c.bf16 %v189, %v189
    %v214 = vpack.c.bf16 %v190, %v190
    %v215 = vpack.c.bf16 %v191, %v191
    %v216 = vpack.c.bf16 %v192, %v192
    %v217 = vpack.c.bf16 %v193, %v193
    %v218 = vpack.c.bf16 %v194, %v194
    %v219 = vpack.c.bf16 %v195, %v195
    %v220 = vpack.c.bf16 %v196, %v196
    %v221 = vpack.c.bf16 %v197, %v197
    %v222 = vpack.c.bf16 %v198, %v198
    %v223 = vpack.c.bf16 %v199, %v199
    %v224 = vld [vmem:[#allocation5] sm:$0xff]
    %v225 = vld [vmem:[#allocation5 + $0x8] sm:$0xff]
    %v226 = vld [vmem:[#allocation5 + $0x10] sm:$0xff]
    %v227 = vld [vmem:[#allocation5 + $0x18] sm:$0xff]
    %v228 = vld [vmem:[#allocation5 + $0x20] sm:$0xff]
    %v229 = vld [vmem:[#allocation5 + $0x28] sm:$0xff]
    %v230 = vld [vmem:[#allocation5 + $0x30] sm:$0xff]
    %v231 = vld [vmem:[#allocation5 + $0x38] sm:$0xff]
    %v232 = vld [vmem:[#allocation5 + $0x40] sm:$0xff]
    %v233 = vld [vmem:[#allocation5 + $0x48] sm:$0xff]
    %v234 = vld [vmem:[#allocation5 + $0x50] sm:$0xff]
    %v235 = vld [vmem:[#allocation5 + $0x58] sm:$0xff]
    %v236 = vld [vmem:[#allocation5 + $0x60] sm:$0xff]
    %v237 = vld [vmem:[#allocation5 + $0x68] sm:$0xff]
    %v238 = vld [vmem:[#allocation5 + $0x70] sm:$0xff]
    %v239 = vld [vmem:[#allocation5 + $0x78] sm:$0xff]
    %v240 = vld [vmem:[#allocation5 + $0x80] sm:$0xff]
    %v241 = vld [vmem:[#allocation5 + $0x88] sm:$0xff]
    %v242 = vld [vmem:[#allocation5 + $0x90] sm:$0xff]
    %v243 = vld [vmem:[#allocation5 + $0x98] sm:$0xff]
    %v244 = vld [vmem:[#allocation5 + $0xa0] sm:$0xff]
    %v245 = vld [vmem:[#allocation5 + $0xa8] sm:$0xff]
    %v246 = vld [vmem:[#allocation5 + $0xb0] sm:$0xff]
    %v247 = vld [vmem:[#allocation5 + $0xb8] sm:$0xff]
    %v248 = vld [vmem:[#allocation5 + $0xc0] sm:$0xff]
    %v249 = vld [vmem:[#allocation5 + $0xc8] sm:$0xff]
    %v250 = vld [vmem:[#allocation5 + $0xd0] sm:$0xff]
    %v251 = vld [vmem:[#allocation5 + $0xd8] sm:$0xff]
    %v252 = vld [vmem:[#allocation5 + $0xe0] sm:$0xff]
    %v253 = vld [vmem:[#allocation5 + $0xe8] sm:$0xff]
    %v254 = vld [vmem:[#allocation5 + $0xf0] sm:$0xff]
    %v255 = vld [vmem:[#allocation5 + $0xf8] sm:$0xff]
    %v256 = vld [vmem:[#allocation5 + $0x100] sm:$0xff]
    %v257 = vld [vmem:[#allocation5 + $0x108] sm:$0xff]
    %v258 = vld [vmem:[#allocation5 + $0x110] sm:$0xff]
    %v259 = vld [vmem:[#allocation5 + $0x118] sm:$0xff]
    %v260 = vld [vmem:[#allocation5 + $0x120] sm:$0xff]
    %v261 = vld [vmem:[#allocation5 + $0x128] sm:$0xff]
    %v262 = vld [vmem:[#allocation5 + $0x130] sm:$0xff]
    %v263 = vld [vmem:[#allocation5 + $0x138] sm:$0xff]
    %v264 = vld [vmem:[#allocation5 + $0x140] sm:$0xff]
    %v265 = vld [vmem:[#allocation5 + $0x148] sm:$0xff]
    %v266 = vld [vmem:[#allocation5 + $0x150] sm:$0xff]
    %v267 = vld [vmem:[#allocation5 + $0x158] sm:$0xff]
    %v268 = vld [vmem:[#allocation5 + $0x160] sm:$0xff]
    %v269 = vld [vmem:[#allocation5 + $0x168] sm:$0xff]
    %v270 = vld [vmem:[#allocation5 + $0x170] sm:$0xff]
    %v271 = vld [vmem:[#allocation5 + $0x178] sm:$0xff]
    %v272 = vld [vmem:[#allocation5 + $0x180] sm:$0xff]
    %v273 = vld [vmem:[#allocation5 + $0x188] sm:$0xff]
    %v274 = vld [vmem:[#allocation5 + $0x190] sm:$0xff]
    %v275 = vld [vmem:[#allocation5 + $0x198] sm:$0xff]
    %v276 = vld [vmem:[#allocation5 + $0x1a0] sm:$0xff]
    %v277 = vld [vmem:[#allocation5 + $0x1a8] sm:$0xff]
    %v278 = vld [vmem:[#allocation5 + $0x1b0] sm:$0xff]
    %v279 = vld [vmem:[#allocation5 + $0x1b8] sm:$0xff]
    %v280 = vld [vmem:[#allocation5 + $0x1c0] sm:$0xff]
    %v281 = vld [vmem:[#allocation5 + $0x1c8] sm:$0xff]
    %v282 = vld [vmem:[#allocation5 + $0x1d0] sm:$0xff]
    %v283 = vld [vmem:[#allocation5 + $0x1d8] sm:$0xff]
    %v284 = vld [vmem:[#allocation5 + $0x1e0] sm:$0xff]
    %v285 = vld [vmem:[#allocation5 + $0x1e8] sm:$0xff]
    %v286 = vld [vmem:[#allocation5 + $0x1f0] sm:$0xff]
    %v287 = vld [vmem:[#allocation5 + $0x1f8] sm:$0xff]
    %v288 = vld [vmem:[#allocation5 + $0x200] sm:$0xff]
    %v289 = vld [vmem:[#allocation5 + $0x208] sm:$0xff]
    %v290 = vld [vmem:[#allocation5 + $0x210] sm:$0xff]
    %v291 = vld [vmem:[#allocation5 + $0x218] sm:$0xff]
    %v292 = vld [vmem:[#allocation5 + $0x220] sm:$0xff]
    %v293 = vld [vmem:[#allocation5 + $0x228] sm:$0xff]
    %v294 = vld [vmem:[#allocation5 + $0x230] sm:$0xff]
    %v295 = vld [vmem:[#allocation5 + $0x238] sm:$0xff]
    %v296 = vld [vmem:[#allocation5 + $0x240] sm:$0xff]
    %v297 = vld [vmem:[#allocation5 + $0x248] sm:$0xff]
    %v298 = vld [vmem:[#allocation5 + $0x250] sm:$0xff]
    %v299 = vld [vmem:[#allocation5 + $0x258] sm:$0xff]
    %v300 = vld [vmem:[#allocation5 + $0x260] sm:$0xff]
    %v301 = vld [vmem:[#allocation5 + $0x268] sm:$0xff]
    %v302 = vld [vmem:[#allocation5 + $0x270] sm:$0xff]
    %v303 = vld [vmem:[#allocation5 + $0x278] sm:$0xff]
    %v304 = vld [vmem:[#allocation5 + $0x280] sm:$0xff]
    %v305 = vld [vmem:[#allocation5 + $0x288] sm:$0xff]
    %v306 = vld [vmem:[#allocation5 + $0x290] sm:$0xff]
    %v307 = vld [vmem:[#allocation5 + $0x298] sm:$0xff]
    %v308 = vld [vmem:[#allocation5 + $0x2a0] sm:$0xff]
    %v309 = vld [vmem:[#allocation5 + $0x2a8] sm:$0xff]
    %v310 = vld [vmem:[#allocation5 + $0x2b0] sm:$0xff]
    %v311 = vld [vmem:[#allocation5 + $0x2b8] sm:$0xff]
    %v312 = vld [vmem:[#allocation5 + $0x2c0] sm:$0xff]
    %v313 = vld [vmem:[#allocation5 + $0x2c8] sm:$0xff]
    %v314 = vld [vmem:[#allocation5 + $0x2d0] sm:$0xff]
    %v315 = vld [vmem:[#allocation5 + $0x2d8] sm:$0xff]
    %v316 = vld [vmem:[#allocation5 + $0x2e0] sm:$0xff]
    %v317 = vld [vmem:[#allocation5 + $0x2e8] sm:$0xff]
    %v318 = vld [vmem:[#allocation5 + $0x2f0] sm:$0xff]
    %v319 = vld [vmem:[#allocation5 + $0x2f8] sm:$0xff]
    %v320 = vld [vmem:[#allocation5 + $0x300] sm:$0xff]
    %v321 = vld [vmem:[#allocation5 + $0x308] sm:$0xff]
    %v322 = vld [vmem:[#allocation5 + $0x310] sm:$0xff]
    %v323 = vld [vmem:[#allocation5 + $0x318] sm:$0xff]
    %v324 = vld [vmem:[#allocation5 + $0x320] sm:$0xff]
    %v325 = vld [vmem:[#allocation5 + $0x328] sm:$0xff]
    %v326 = vld [vmem:[#allocation5 + $0x330] sm:$0xff]
    %v327 = vld [vmem:[#allocation5 + $0x338] sm:$0xff]
    %v328 = vld [vmem:[#allocation5 + $0x340] sm:$0xff]
    %v329 = vld [vmem:[#allocation5 + $0x348] sm:$0xff]
    %v330 = vld [vmem:[#allocation5 + $0x350] sm:$0xff]
    %v331 = vld [vmem:[#allocation5 + $0x358] sm:$0xff]
    %v332 = vld [vmem:[#allocation5 + $0x360] sm:$0xff]
    %v333 = vld [vmem:[#allocation5 + $0x368] sm:$0xff]
    %v334 = vld [vmem:[#allocation5 + $0x370] sm:$0xff]
    %v335 = vld [vmem:[#allocation5 + $0x378] sm:$0xff]
    %v336 = vld [vmem:[#allocation5 + $0x380] sm:$0xff]
    %v337 = vld [vmem:[#allocation5 + $0x388] sm:$0xff]
    %v338 = vld [vmem:[#allocation5 + $0x390] sm:$0xff]
    %v339 = vld [vmem:[#allocation5 + $0x398] sm:$0xff]
    %v340 = vld [vmem:[#allocation5 + $0x3a0] sm:$0xff]
    %v341 = vld [vmem:[#allocation5 + $0x3a8] sm:$0xff]
    %v342 = vld [vmem:[#allocation5 + $0x3b0] sm:$0xff]
    %v343 = vld [vmem:[#allocation5 + $0x3b8] sm:$0xff]
    %v344 = vld [vmem:[#allocation5 + $0x3c0] sm:$0xff]
    %v345 = vld [vmem:[#allocation5 + $0x3c8] sm:$0xff]
    %v346 = vld [vmem:[#allocation5 + $0x3d0] sm:$0xff]
    %v347 = vld [vmem:[#allocation5 + $0x3d8] sm:$0xff]
    %v348 = vld [vmem:[#allocation5 + $0x3e0] sm:$0xff]
    %v349 = vld [vmem:[#allocation5 + $0x3e8] sm:$0xff]
    %v350 = vld [vmem:[#allocation5 + $0x3f0] sm:$0xff]
    %v351 = vld [vmem:[#allocation5 + $0x3f8] sm:$0xff]
    %v352 = vld [vmem:[#allocation5 + $0x400] sm:$0xff]
    %v353 = vld [vmem:[#allocation5 + $0x408] sm:$0xff]
    %v354 = vld [vmem:[#allocation5 + $0x410] sm:$0xff]
    %v355 = vld [vmem:[#allocation5 + $0x418] sm:$0xff]
    %v356 = vld [vmem:[#allocation5 + $0x420] sm:$0xff]
    %v357 = vld [vmem:[#allocation5 + $0x428] sm:$0xff]
    %v358 = vld [vmem:[#allocation5 + $0x430] sm:$0xff]
    %v359 = vld [vmem:[#allocation5 + $0x438] sm:$0xff]
    %v360 = vld [vmem:[#allocation5 + $0x440] sm:$0xff]
    %v361 = vld [vmem:[#allocation5 + $0x448] sm:$0xff]
    %v362 = vld [vmem:[#allocation5 + $0x450] sm:$0xff]
    %v363 = vld [vmem:[#allocation5 + $0x458] sm:$0xff]
    %v364 = vld [vmem:[#allocation5 + $0x460] sm:$0xff]
    %v365 = vld [vmem:[#allocation5 + $0x468] sm:$0xff]
    %v366 = vld [vmem:[#allocation5 + $0x470] sm:$0xff]
    %v367 = vld [vmem:[#allocation5 + $0x478] sm:$0xff]
    %v368 = vld [vmem:[#allocation5 + $0x480] sm:$0xff]
    %v369 = vld [vmem:[#allocation5 + $0x488] sm:$0xff]
    %v370 = vld [vmem:[#allocation5 + $0x490] sm:$0xff]
    %v371 = vld [vmem:[#allocation5 + $0x498] sm:$0xff]
    %v372 = vld [vmem:[#allocation5 + $0x4a0] sm:$0xff]
    %v373 = vld [vmem:[#allocation5 + $0x4a8] sm:$0xff]
    %v374 = vld [vmem:[#allocation5 + $0x4b0] sm:$0xff]
    %v375 = vld [vmem:[#allocation5 + $0x4b8] sm:$0xff]
    %v376 = vld [vmem:[#allocation5 + $0x4c0] sm:$0xff]
    %v377 = vld [vmem:[#allocation5 + $0x4c8] sm:$0xff]
    %v378 = vld [vmem:[#allocation5 + $0x4d0] sm:$0xff]
    %v379 = vld [vmem:[#allocation5 + $0x4d8] sm:$0xff]
    %v380 = vld [vmem:[#allocation5 + $0x4e0] sm:$0xff]
    %v381 = vld [vmem:[#allocation5 + $0x4e8] sm:$0xff]
    %v382 = vld [vmem:[#allocation5 + $0x4f0] sm:$0xff]
    %v383 = vld [vmem:[#allocation5 + $0x4f8] sm:$0xff]
    %v384 = vld [vmem:[#allocation5 + $0x500] sm:$0xff]
    %v385 = vld [vmem:[#allocation5 + $0x508] sm:$0xff]
    %v386 = vld [vmem:[#allocation5 + $0x510] sm:$0xff]
    %v387 = vld [vmem:[#allocation5 + $0x518] sm:$0xff]
    %v388 = vld [vmem:[#allocation5 + $0x520] sm:$0xff]
    %v389 = vld [vmem:[#allocation5 + $0x528] sm:$0xff]
    %v390 = vld [vmem:[#allocation5 + $0x530] sm:$0xff]
    %v391 = vld [vmem:[#allocation5 + $0x538] sm:$0xff]
    %v392 = vld [vmem:[#allocation5 + $0x540] sm:$0xff]
    %v393 = vld [vmem:[#allocation5 + $0x548] sm:$0xff]
    %v394 = vld [vmem:[#allocation5 + $0x550] sm:$0xff]
    %v395 = vld [vmem:[#allocation5 + $0x558] sm:$0xff]
    %v396 = vld [vmem:[#allocation5 + $0x560] sm:$0xff]
    %v397 = vld [vmem:[#allocation5 + $0x568] sm:$0xff]
    %v398 = vld [vmem:[#allocation5 + $0x570] sm:$0xff]
    %v399 = vld [vmem:[#allocation5 + $0x578] sm:$0xff]
    %v400 = vld [vmem:[#allocation5 + $0x580] sm:$0xff]
    %v401 = vld [vmem:[#allocation5 + $0x588] sm:$0xff]
    %v402 = vld [vmem:[#allocation5 + $0x590] sm:$0xff]
    %v403 = vld [vmem:[#allocation5 + $0x598] sm:$0xff]
    %v404 = vld [vmem:[#allocation5 + $0x5a0] sm:$0xff]
    %v405 = vld [vmem:[#allocation5 + $0x5a8] sm:$0xff]
    %v406 = vld [vmem:[#allocation5 + $0x5b0] sm:$0xff]
    %v407 = vld [vmem:[#allocation5 + $0x5b8] sm:$0xff]
    %v408 = vld [vmem:[#allocation5 + $0x5c0] sm:$0xff]
    %v409 = vld [vmem:[#allocation5 + $0x5c8] sm:$0xff]
    %v410 = vld [vmem:[#allocation5 + $0x5d0] sm:$0xff]
    %v411 = vld [vmem:[#allocation5 + $0x5d8] sm:$0xff]
    %v412 = vld [vmem:[#allocation5 + $0x5e0] sm:$0xff]
    %v413 = vld [vmem:[#allocation5 + $0x5e8] sm:$0xff]
    %v414 = vld [vmem:[#allocation5 + $0x5f0] sm:$0xff]
    %v415 = vld [vmem:[#allocation5 + $0x5f8] sm:$0xff]
    %v416 = vld [vmem:[#allocation5 + $0x600] sm:$0xff]
    %v417 = vld [vmem:[#allocation5 + $0x608] sm:$0xff]
    %v418 = vld [vmem:[#allocation5 + $0x610] sm:$0xff]
    %v419 = vld [vmem:[#allocation5 + $0x618] sm:$0xff]
    %v420 = vld [vmem:[#allocation5 + $0x620] sm:$0xff]
    %v421 = vld [vmem:[#allocation5 + $0x628] sm:$0xff]
    %v422 = vld [vmem:[#allocation5 + $0x630] sm:$0xff]
    %v423 = vld [vmem:[#allocation5 + $0x638] sm:$0xff]
    %v424 = vld [vmem:[#allocation5 + $0x640] sm:$0xff]
    %v425 = vld [vmem:[#allocation5 + $0x648] sm:$0xff]
    %v426 = vld [vmem:[#allocation5 + $0x650] sm:$0xff]
    %v427 = vld [vmem:[#allocation5 + $0x658] sm:$0xff]
    %v428 = vld [vmem:[#allocation5 + $0x660] sm:$0xff]
    %v429 = vld [vmem:[#allocation5 + $0x668] sm:$0xff]
    %v430 = vld [vmem:[#allocation5 + $0x670] sm:$0xff]
    %v431 = vld [vmem:[#allocation5 + $0x678] sm:$0xff]
    %v432 = vld [vmem:[#allocation5 + $0x680] sm:$0xff]
    %v433 = vld [vmem:[#allocation5 + $0x688] sm:$0xff]
    %v434 = vld [vmem:[#allocation5 + $0x690] sm:$0xff]
    %v435 = vld [vmem:[#allocation5 + $0x698] sm:$0xff]
    %v436 = vld [vmem:[#allocation5 + $0x6a0] sm:$0xff]
    %v437 = vld [vmem:[#allocation5 + $0x6a8] sm:$0xff]
    %v438 = vld [vmem:[#allocation5 + $0x6b0] sm:$0xff]
    %v439 = vld [vmem:[#allocation5 + $0x6b8] sm:$0xff]
    %v440 = vld [vmem:[#allocation5 + $0x6c0] sm:$0xff]
    %v441 = vld [vmem:[#allocation5 + $0x6c8] sm:$0xff]
    %v442 = vld [vmem:[#allocation5 + $0x6d0] sm:$0xff]
    %v443 = vld [vmem:[#allocation5 + $0x6d8] sm:$0xff]
    %v444 = vld [vmem:[#allocation5 + $0x6e0] sm:$0xff]
    %v445 = vld [vmem:[#allocation5 + $0x6e8] sm:$0xff]
    %v446 = vld [vmem:[#allocation5 + $0x6f0] sm:$0xff]
    %v447 = vld [vmem:[#allocation5 + $0x6f8] sm:$0xff]
    %v448 = vld [vmem:[#allocation5 + $0x700] sm:$0xff]
    %v449 = vld [vmem:[#allocation5 + $0x708] sm:$0xff]
    %v450 = vld [vmem:[#allocation5 + $0x710] sm:$0xff]
    %v451 = vld [vmem:[#allocation5 + $0x718] sm:$0xff]
    %v452 = vld [vmem:[#allocation5 + $0x720] sm:$0xff]
    %v453 = vld [vmem:[#allocation5 + $0x728] sm:$0xff]
    %v454 = vld [vmem:[#allocation5 + $0x730] sm:$0xff]
    %v455 = vld [vmem:[#allocation5 + $0x738] sm:$0xff]
    %v456 = vld [vmem:[#allocation5 + $0x740] sm:$0xff]
    %v457 = vld [vmem:[#allocation5 + $0x748] sm:$0xff]
    %v458 = vld [vmem:[#allocation5 + $0x750] sm:$0xff]
    %v459 = vld [vmem:[#allocation5 + $0x758] sm:$0xff]
    %v460 = vld [vmem:[#allocation5 + $0x760] sm:$0xff]
    %v461 = vld [vmem:[#allocation5 + $0x768] sm:$0xff]
    %v462 = vld [vmem:[#allocation5 + $0x770] sm:$0xff]
    %v463 = vld [vmem:[#allocation5 + $0x778] sm:$0xff]
    %v464 = vld [vmem:[#allocation5 + $0x780] sm:$0xff]
    %v465 = vld [vmem:[#allocation5 + $0x788] sm:$0xff]
    %v466 = vld [vmem:[#allocation5 + $0x790] sm:$0xff]
    %v467 = vld [vmem:[#allocation5 + $0x798] sm:$0xff]
    %v468 = vld [vmem:[#allocation5 + $0x7a0] sm:$0xff]
    %v469 = vld [vmem:[#allocation5 + $0x7a8] sm:$0xff]
    %v470 = vld [vmem:[#allocation5 + $0x7b0] sm:$0xff]
    %v471 = vld [vmem:[#allocation5 + $0x7b8] sm:$0xff]
    %v472 = vld [vmem:[#allocation5 + $0x7c0] sm:$0xff]
    %v473 = vld [vmem:[#allocation5 + $0x7c8] sm:$0xff]
    %v474 = vld [vmem:[#allocation5 + $0x7d0] sm:$0xff]
    %v475 = vld [vmem:[#allocation5 + $0x7d8] sm:$0xff]
    %v476 = vld [vmem:[#allocation5 + $0x7e0] sm:$0xff]
    %v477 = vld [vmem:[#allocation5 + $0x7e8] sm:$0xff]
    %v478 = vld [vmem:[#allocation5 + $0x7f0] sm:$0xff]
    %v479 = vld [vmem:[#allocation5 + $0x7f8] sm:$0xff]
    %v480 = vld [vmem:[#allocation5 + $0x800] sm:$0xff]
    %v481 = vld [vmem:[#allocation5 + $0x808] sm:$0xff]
    %v482 = vld [vmem:[#allocation5 + $0x810] sm:$0xff]
    %v483 = vld [vmem:[#allocation5 + $0x818] sm:$0xff]
    %v484 = vld [vmem:[#allocation5 + $0x820] sm:$0xff]
    %v485 = vld [vmem:[#allocation5 + $0x828] sm:$0xff]
    %v486 = vld [vmem:[#allocation5 + $0x830] sm:$0xff]
    %v487 = vld [vmem:[#allocation5 + $0x838] sm:$0xff]
    %v488 = vld [vmem:[#allocation5 + $0x840] sm:$0xff]
    %v489 = vld [vmem:[#allocation5 + $0x848] sm:$0xff]
    %v490 = vld [vmem:[#allocation5 + $0x850] sm:$0xff]
    %v491 = vld [vmem:[#allocation5 + $0x858] sm:$0xff]
    %v492 = vld [vmem:[#allocation5 + $0x860] sm:$0xff]
    %v493 = vld [vmem:[#allocation5 + $0x868] sm:$0xff]
    %v494 = vld [vmem:[#allocation5 + $0x870] sm:$0xff]
    %v495 = vld [vmem:[#allocation5 + $0x878] sm:$0xff]
    %v496 = vld [vmem:[#allocation5 + $0x880] sm:$0xff]
    %v497 = vld [vmem:[#allocation5 + $0x888] sm:$0xff]
    %v498 = vld [vmem:[#allocation5 + $0x890] sm:$0xff]
    %v499 = vld [vmem:[#allocation5 + $0x898] sm:$0xff]
    %v500 = vld [vmem:[#allocation5 + $0x8a0] sm:$0xff]
    %v501 = vld [vmem:[#allocation5 + $0x8a8] sm:$0xff]
    %v502 = vld [vmem:[#allocation5 + $0x8b0] sm:$0xff]
    %v503 = vld [vmem:[#allocation5 + $0x8b8] sm:$0xff]
    %v504 = vld [vmem:[#allocation5 + $0x8c0] sm:$0xff]
    %v505 = vld [vmem:[#allocation5 + $0x8c8] sm:$0xff]
    %v506 = vld [vmem:[#allocation5 + $0x8d0] sm:$0xff]
    %v507 = vld [vmem:[#allocation5 + $0x8d8] sm:$0xff]
    %v508 = vld [vmem:[#allocation5 + $0x8e0] sm:$0xff]
    %v509 = vld [vmem:[#allocation5 + $0x8e8] sm:$0xff]
    %v510 = vld [vmem:[#allocation5 + $0x8f0] sm:$0xff]
    %v511 = vld [vmem:[#allocation5 + $0x8f8] sm:$0xff]
    %v512 = vld [vmem:[#allocation5 + $0x900] sm:$0xff]
    %v513 = vld [vmem:[#allocation5 + $0x908] sm:$0xff]
    %v514 = vld [vmem:[#allocation5 + $0x910] sm:$0xff]
    %v515 = vld [vmem:[#allocation5 + $0x918] sm:$0xff]
    %v516 = vld [vmem:[#allocation5 + $0x920] sm:$0xff]
    %v517 = vld [vmem:[#allocation5 + $0x928] sm:$0xff]
    %v518 = vld [vmem:[#allocation5 + $0x930] sm:$0xff]
    %v519 = vld [vmem:[#allocation5 + $0x938] sm:$0xff]
    %v520 = vld [vmem:[#allocation5 + $0x940] sm:$0xff]
    %v521 = vld [vmem:[#allocation5 + $0x948] sm:$0xff]
    %v522 = vld [vmem:[#allocation5 + $0x950] sm:$0xff]
    %v523 = vld [vmem:[#allocation5 + $0x958] sm:$0xff]
    %v524 = vld [vmem:[#allocation5 + $0x960] sm:$0xff]
    %v525 = vld [vmem:[#allocation5 + $0x968] sm:$0xff]
    %v526 = vld [vmem:[#allocation5 + $0x970] sm:$0xff]
    %v527 = vld [vmem:[#allocation5 + $0x978] sm:$0xff]
    %v528 = vld [vmem:[#allocation5 + $0x980] sm:$0xff]
    %v529 = vld [vmem:[#allocation5 + $0x988] sm:$0xff]
    %v530 = vld [vmem:[#allocation5 + $0x990] sm:$0xff]
    %v531 = vld [vmem:[#allocation5 + $0x998] sm:$0xff]
    %v532 = vld [vmem:[#allocation5 + $0x9a0] sm:$0xff]
    %v533 = vld [vmem:[#allocation5 + $0x9a8] sm:$0xff]
    %v534 = vld [vmem:[#allocation5 + $0x9b0] sm:$0xff]
    %v535 = vld [vmem:[#allocation5 + $0x9b8] sm:$0xff]
    %v536 = vld [vmem:[#allocation5 + $0x9c0] sm:$0xff]
    %v537 = vld [vmem:[#allocation5 + $0x9c8] sm:$0xff]
    %v538 = vld [vmem:[#allocation5 + $0x9d0] sm:$0xff]
    %v539 = vld [vmem:[#allocation5 + $0x9d8] sm:$0xff]
    %v540 = vld [vmem:[#allocation5 + $0x9e0] sm:$0xff]
    %v541 = vld [vmem:[#allocation5 + $0x9e8] sm:$0xff]
    %v542 = vld [vmem:[#allocation5 + $0x9f0] sm:$0xff]
    %v543 = vld [vmem:[#allocation5 + $0x9f8] sm:$0xff]
    %v544 = vld [vmem:[#allocation5 + $0xa00] sm:$0xff]
    %v545 = vld [vmem:[#allocation5 + $0xa08] sm:$0xff]
    %v546 = vld [vmem:[#allocation5 + $0xa10] sm:$0xff]
    %v547 = vld [vmem:[#allocation5 + $0xa18] sm:$0xff]
    %v548 = vld [vmem:[#allocation5 + $0xa20] sm:$0xff]
    %v549 = vld [vmem:[#allocation5 + $0xa28] sm:$0xff]
    %v550 = vld [vmem:[#allocation5 + $0xa30] sm:$0xff]
    %v551 = vld [vmem:[#allocation5 + $0xa38] sm:$0xff]
    %v552 = vld [vmem:[#allocation5 + $0xa40] sm:$0xff]
    %v553 = vld [vmem:[#allocation5 + $0xa48] sm:$0xff]
    %v554 = vld [vmem:[#allocation5 + $0xa50] sm:$0xff]
    %v555 = vld [vmem:[#allocation5 + $0xa58] sm:$0xff]
    %v556 = vld [vmem:[#allocation5 + $0xa60] sm:$0xff]
    %v557 = vld [vmem:[#allocation5 + $0xa68] sm:$0xff]
    %v558 = vld [vmem:[#allocation5 + $0xa70] sm:$0xff]
    %v559 = vld [vmem:[#allocation5 + $0xa78] sm:$0xff]
    %v560 = vld [vmem:[#allocation5 + $0xa80] sm:$0xff]
    %v561 = vld [vmem:[#allocation5 + $0xa88] sm:$0xff]
    %v562 = vld [vmem:[#allocation5 + $0xa90] sm:$0xff]
    %v563 = vld [vmem:[#allocation5 + $0xa98] sm:$0xff]
    %v564 = vld [vmem:[#allocation5 + $0xaa0] sm:$0xff]
    %v565 = vld [vmem:[#allocation5 + $0xaa8] sm:$0xff]
    %v566 = vld [vmem:[#allocation5 + $0xab0] sm:$0xff]
    %v567 = vld [vmem:[#allocation5 + $0xab8] sm:$0xff]
    %v568 = vld [vmem:[#allocation5 + $0xac0] sm:$0xff]
    %v569 = vld [vmem:[#allocation5 + $0xac8] sm:$0xff]
    %v570 = vld [vmem:[#allocation5 + $0xad0] sm:$0xff]
    %v571 = vld [vmem:[#allocation5 + $0xad8] sm:$0xff]
    %v572 = vld [vmem:[#allocation5 + $0xae0] sm:$0xff]
    %v573 = vld [vmem:[#allocation5 + $0xae8] sm:$0xff]
    %v574 = vld [vmem:[#allocation5 + $0xaf0] sm:$0xff]
    %v575 = vld [vmem:[#allocation5 + $0xaf8] sm:$0xff]
    %v576 = vld [vmem:[#allocation5 + $0xb00] sm:$0xff]
    %v577 = vld [vmem:[#allocation5 + $0xb08] sm:$0xff]
    %v578 = vld [vmem:[#allocation5 + $0xb10] sm:$0xff]
    %v579 = vld [vmem:[#allocation5 + $0xb18] sm:$0xff]
    %v580 = vld [vmem:[#allocation5 + $0xb20] sm:$0xff]
    %v581 = vld [vmem:[#allocation5 + $0xb28] sm:$0xff]
    %v582 = vld [vmem:[#allocation5 + $0xb30] sm:$0xff]
    %v583 = vld [vmem:[#allocation5 + $0xb38] sm:$0xff]
    %v584 = vld [vmem:[#allocation5 + $0xb40] sm:$0xff]
    %v585 = vld [vmem:[#allocation5 + $0xb48] sm:$0xff]
    %v586 = vld [vmem:[#allocation5 + $0xb50] sm:$0xff]
    %v587 = vld [vmem:[#allocation5 + $0xb58] sm:$0xff]
    %v588 = vld [vmem:[#allocation5 + $0xb60] sm:$0xff]
    %v589 = vld [vmem:[#allocation5 + $0xb68] sm:$0xff]
    %v590 = vld [vmem:[#allocation5 + $0xb70] sm:$0xff]
    %v591 = vld [vmem:[#allocation5 + $0xb78] sm:$0xff]
    %v592 = vld [vmem:[#allocation5 + $0xb80] sm:$0xff]
    %v593 = vld [vmem:[#allocation5 + $0xb88] sm:$0xff]
    %v594 = vld [vmem:[#allocation5 + $0xb90] sm:$0xff]
    %v595 = vld [vmem:[#allocation5 + $0xb98] sm:$0xff]
    %v596 = vld [vmem:[#allocation5 + $0xba0] sm:$0xff]
    %v597 = vld [vmem:[#allocation5 + $0xba8] sm:$0xff]
    %v598 = vld [vmem:[#allocation5 + $0xbb0] sm:$0xff]
    %v599 = vld [vmem:[#allocation5 + $0xbb8] sm:$0xff]
    %v600 = vld [vmem:[#allocation5 + $0xbc0] sm:$0xff]
    %v601 = vld [vmem:[#allocation5 + $0xbc8] sm:$0xff]
    %v602 = vld [vmem:[#allocation5 + $0xbd0] sm:$0xff]
    %v603 = vld [vmem:[#allocation5 + $0xbd8] sm:$0xff]
    %v604 = vld [vmem:[#allocation5 + $0xbe0] sm:$0xff]
    %v605 = vld [vmem:[#allocation5 + $0xbe8] sm:$0xff]
    %v606 = vld [vmem:[#allocation5 + $0xbf0] sm:$0xff]
    %v607 = vld [vmem:[#allocation5 + $0xbf8] sm:$0xff]
    %v608 = vld [vmem:[%s2] sm:$0xff]
    %v609 = vpack.c.bf16 %v608, %v608
    %v610 = vld [vmem:[#allocation7] sm:$0xff]
    %v611 = vld [vmem:[#allocation7 + $0x8] sm:$0xff]
    %v612 = vld [vmem:[#allocation7 + $0x10] sm:$0xff]
    %v613 = vld [vmem:[#allocation7 + $0x18] sm:$0xff]
    %v614 = vld [vmem:[#allocation7 + $0x20] sm:$0xff]
    %v615 = vld [vmem:[#allocation7 + $0x28] sm:$0xff]
    %v616 = vld [vmem:[#allocation7 + $0x30] sm:$0xff]
    %v617 = vld [vmem:[#allocation7 + $0x38] sm:$0xff]
    %v618 = vld [vmem:[#allocation7 + $0x40] sm:$0xff]
    %v619 = vld [vmem:[#allocation7 + $0x48] sm:$0xff]
    %v620 = vld [vmem:[#allocation7 + $0x50] sm:$0xff]
    %v621 = vld [vmem:[#allocation7 + $0x58] sm:$0xff]
    %v622 = vld [vmem:[#allocation7 + $0x60] sm:$0xff]
    %v623 = vld [vmem:[#allocation7 + $0x68] sm:$0xff]
    %v624 = vld [vmem:[#allocation7 + $0x70] sm:$0xff]
    %v625 = vld [vmem:[#allocation7 + $0x78] sm:$0xff]
    %v642 = vunpack.c.l.b16 %v610
    %v643 = vunpack.c.h.b16 %v610
    %v644 = vunpack.c.l.b16 %v611
    %v645 = vunpack.c.h.b16 %v611
    %v646 = vunpack.c.l.b16 %v612
    %v647 = vunpack.c.h.b16 %v612
    %v648 = vunpack.c.l.b16 %v613
    %v649 = vunpack.c.h.b16 %v613
    %v650 = vunpack.c.l.b16 %v614
    %v651 = vunpack.c.h.b16 %v614
    %v652 = vunpack.c.l.b16 %v615
    %v653 = vunpack.c.h.b16 %v615
    %v654 = vunpack.c.l.b16 %v616
    %v655 = vunpack.c.h.b16 %v616
    %v656 = vunpack.c.l.b16 %v617
    %v657 = vunpack.c.h.b16 %v617
    %v658 = vunpack.c.l.b16 %v618
    %v659 = vunpack.c.h.b16 %v618
    %v660 = vunpack.c.l.b16 %v619
    %v661 = vunpack.c.h.b16 %v619
    %v662 = vunpack.c.l.b16 %v620
    %v663 = vunpack.c.h.b16 %v620
    %v664 = vunpack.c.l.b16 %v621
    %v665 = vunpack.c.h.b16 %v621
    %v666 = vunpack.c.l.b16 %v622
    %v667 = vunpack.c.h.b16 %v622
    %v668 = vunpack.c.l.b16 %v623
    %v669 = vunpack.c.h.b16 %v623
    %v670 = vunpack.c.l.b16 %v624
    %v671 = vunpack.c.h.b16 %v624
    %v672 = vunpack.c.l.b16 %v625
    %v673 = vunpack.c.h.b16 %v625
    %v674 = vpack.c.b16 %v644, %v642
    %v675 = vpack.c.b16 %v645, %v643
    %v676 = vpack.c.b16 %v648, %v646
    %v677 = vpack.c.b16 %v649, %v647
    %v678 = vpack.c.b16 %v652, %v650
    %v679 = vpack.c.b16 %v653, %v651
    %v680 = vpack.c.b16 %v656, %v654
    %v681 = vpack.c.b16 %v657, %v655
    %v682 = vpack.c.b16 %v660, %v658
    %v683 = vpack.c.b16 %v661, %v659
    %v684 = vpack.c.b16 %v664, %v662
    %v685 = vpack.c.b16 %v665, %v663
    %v686 = vpack.c.b16 %v668, %v666
    %v687 = vpack.c.b16 %v669, %v667
    %v688 = vpack.c.b16 %v672, %v670
    %v689 = vpack.c.b16 %v673, %v671
    %706 = vmatpush.bf16.msra.mxu0 %v688
    %707 = vmatpush.bf16.msra.mxu0 %v686
    %708 = vmatpush.bf16.msra.mxu0 %v684
    %709 = vmatpush.bf16.msra.mxu0 %v682
    %710 = vmatpush.bf16.msra.mxu0 %v680
    %711 = vmatpush.bf16.msra.mxu0 %v678
    %712 = vmatpush.bf16.msra.mxu0 %v676
    %713 = vmatpush.bf16.msra.mxu0 %v674
    %714 = vmatmul.bf16.gmra.mxu0 %v609
    %v715 = vpop.f32.mrf.mxu0
    %v716 = vadd.f32 0.0, %v715
    %v717 = vpop.f32.mrf.mxu0
    %718 = vdwg.mxu0
    %719 = vmatpush.bf16.msra.mxu0 %v689
    %720 = vmatpush.bf16.msra.mxu0 %v687
    %721 = vmatpush.bf16.msra.mxu0 %v685
    %722 = vmatpush.bf16.msra.mxu0 %v683
    %723 = vmatpush.bf16.msra.mxu0 %v681
    %724 = vmatpush.bf16.msra.mxu0 %v679
    %725 = vmatpush.bf16.msra.mxu0 %v677
    %726 = vmatpush.bf16.msra.mxu0 %v675
    %727 = vmatmul.bf16.gmra.mxu0 %v609
    %v728 = vpop.f32.mrf.mxu0
    %v729 = vadd.f32 0.0, %v728
    %v730 = vpop.f32.mrf.mxu0
    %731 = vdwg.mxu0
    %v1116 = vunpack.c.l.b16 %v224
    %v1117 = vunpack.c.h.b16 %v224
    %v1118 = vunpack.c.l.b16 %v225
    %v1119 = vunpack.c.h.b16 %v225
    %v1120 = vunpack.c.l.b16 %v226
    %v1121 = vunpack.c.h.b16 %v226
    %v1122 = vunpack.c.l.b16 %v227
    %v1123 = vunpack.c.h.b16 %v227
    %v1124 = vunpack.c.l.b16 %v228
    %v1125 = vunpack.c.h.b16 %v228
    %v1126 = vunpack.c.l.b16 %v229
    %v1127 = vunpack.c.h.b16 %v229
    %v1128 = vunpack.c.l.b16 %v230
    %v1129 = vunpack.c.h.b16 %v230
    %v1130 = vunpack.c.l.b16 %v231
    %v1131 = vunpack.c.h.b16 %v231
    %v1132 = vunpack.c.l.b16 %v232
    %v1133 = vunpack.c.h.b16 %v232
    %v1134 = vunpack.c.l.b16 %v233
    %v1135 = vunpack.c.h.b16 %v233
    %v1136 = vunpack.c.l.b16 %v234
    %v1137 = vunpack.c.h.b16 %v234
    %v1138 = vunpack.c.l.b16 %v235
    %v1139 = vunpack.c.h.b16 %v235
    %v1140 = vunpack.c.l.b16 %v236
    %v1141 = vunpack.c.h.b16 %v236
    %v1142 = vunpack.c.l.b16 %v237
    %v1143 = vunpack.c.h.b16 %v237
    %v1144 = vunpack.c.l.b16 %v238
    %v1145 = vunpack.c.h.b16 %v238
    %v1146 = vunpack.c.l.b16 %v239
    %v1147 = vunpack.c.h.b16 %v239
    %v1148 = vunpack.c.l.b16 %v240
    %v1149 = vunpack.c.h.b16 %v240
    %v1150 = vunpack.c.l.b16 %v241
    %v1151 = vunpack.c.h.b16 %v241
    %v1152 = vunpack.c.l.b16 %v242
    %v1153 = vunpack.c.h.b16 %v242
    %v1154 = vunpack.c.l.b16 %v243
    %v1155 = vunpack.c.h.b16 %v243
    %v1156 = vunpack.c.l.b16 %v244
    %v1157 = vunpack.c.h.b16 %v244
    %v1158 = vunpack.c.l.b16 %v245
    %v1159 = vunpack.c.h.b16 %v245
    %v1160 = vunpack.c.l.b16 %v246
    %v1161 = vunpack.c.h.b16 %v246
    %v1162 = vunpack.c.l.b16 %v247
    %v1163 = vunpack.c.h.b16 %v247
    %v1164 = vunpack.c.l.b16 %v248
    %v1165 = vunpack.c.h.b16 %v248
    %v1166 = vunpack.c.l.b16 %v249
    %v1167 = vunpack.c.h.b16 %v249
    %v1168 = vunpack.c.l.b16 %v250
    %v1169 = vunpack.c.h.b16 %v250
    %v1170 = vunpack.c.l.b16 %v251
    %v1171 = vunpack.c.h.b16 %v251
    %v1172 = vunpack.c.l.b16 %v252
    %v1173 = vunpack.c.h.b16 %v252
    %v1174 = vunpack.c.l.b16 %v253
    %v1175 = vunpack.c.h.b16 %v253
    %v1176 = vunpack.c.l.b16 %v254
    %v1177 = vunpack.c.h.b16 %v254
    %v1178 = vunpack.c.l.b16 %v255
    %v1179 = vunpack.c.h.b16 %v255
    %v1180 = vunpack.c.l.b16 %v256
    %v1181 = vunpack.c.h.b16 %v256
    %v1182 = vunpack.c.l.b16 %v257
    %v1183 = vunpack.c.h.b16 %v257
    %v1184 = vunpack.c.l.b16 %v258
    %v1185 = vunpack.c.h.b16 %v258
    %v1186 = vunpack.c.l.b16 %v259
    %v1187 = vunpack.c.h.b16 %v259
    %v1188 = vunpack.c.l.b16 %v260
    %v1189 = vunpack.c.h.b16 %v260
    %v1190 = vunpack.c.l.b16 %v261
    %v1191 = vunpack.c.h.b16 %v261
    %v1192 = vunpack.c.l.b16 %v262
    %v1193 = vunpack.c.h.b16 %v262
    %v1194 = vunpack.c.l.b16 %v263
    %v1195 = vunpack.c.h.b16 %v263
    %v1196 = vunpack.c.l.b16 %v264
    %v1197 = vunpack.c.h.b16 %v264
    %v1198 = vunpack.c.l.b16 %v265
    %v1199 = vunpack.c.h.b16 %v265
    %v1200 = vunpack.c.l.b16 %v266
    %v1201 = vunpack.c.h.b16 %v266
    %v1202 = vunpack.c.l.b16 %v267
    %v1203 = vunpack.c.h.b16 %v267
    %v1204 = vunpack.c.l.b16 %v268
    %v1205 = vunpack.c.h.b16 %v268
    %v1206 = vunpack.c.l.b16 %v269
    %v1207 = vunpack.c.h.b16 %v269
    %v1208 = vunpack.c.l.b16 %v270
    %v1209 = vunpack.c.h.b16 %v270
    %v1210 = vunpack.c.l.b16 %v271
    %v1211 = vunpack.c.h.b16 %v271
    %v1212 = vunpack.c.l.b16 %v272
    %v1213 = vunpack.c.h.b16 %v272
    %v1214 = vunpack.c.l.b16 %v273
    %v1215 = vunpack.c.h.b16 %v273
    %v1216 = vunpack.c.l.b16 %v274
    %v1217 = vunpack.c.h.b16 %v274
    %v1218 = vunpack.c.l.b16 %v275
    %v1219 = vunpack.c.h.b16 %v275
    %v1220 = vunpack.c.l.b16 %v276
    %v1221 = vunpack.c.h.b16 %v276
    %v1222 = vunpack.c.l.b16 %v277
    %v1223 = vunpack.c.h.b16 %v277
    %v1224 = vunpack.c.l.b16 %v278
    %v1225 = vunpack.c.h.b16 %v278
    %v1226 = vunpack.c.l.b16 %v279
    %v1227 = vunpack.c.h.b16 %v279
    %v1228 = vunpack.c.l.b16 %v280
    %v1229 = vunpack.c.h.b16 %v280
    %v1230 = vunpack.c.l.b16 %v281
    %v1231 = vunpack.c.h.b16 %v281
    %v1232 = vunpack.c.l.b16 %v282
    %v1233 = vunpack.c.h.b16 %v282
    %v1234 = vunpack.c.l.b16 %v283
    %v1235 = vunpack.c.h.b16 %v283
    %v1236 = vunpack.c.l.b16 %v284
    %v1237 = vunpack.c.h.b16 %v284
    %v1238 = vunpack.c.l.b16 %v285
    %v1239 = vunpack.c.h.b16 %v285
    %v1240 = vunpack.c.l.b16 %v286
    %v1241 = vunpack.c.h.b16 %v286
    %v1242 = vunpack.c.l.b16 %v287
    %v1243 = vunpack.c.h.b16 %v287
    %v1244 = vunpack.c.l.b16 %v288
    %v1245 = vunpack.c.h.b16 %v288
    %v1246 = vunpack.c.l.b16 %v289
    %v1247 = vunpack.c.h.b16 %v289
    %v1248 = vunpack.c.l.b16 %v290
    %v1249 = vunpack.c.h.b16 %v290
    %v1250 = vunpack.c.l.b16 %v291
    %v1251 = vunpack.c.h.b16 %v291
    %v1252 = vunpack.c.l.b16 %v292
    %v1253 = vunpack.c.h.b16 %v292
    %v1254 = vunpack.c.l.b16 %v293
    %v1255 = vunpack.c.h.b16 %v293
    %v1256 = vunpack.c.l.b16 %v294
    %v1257 = vunpack.c.h.b16 %v294
    %v1258 = vunpack.c.l.b16 %v295
    %v1259 = vunpack.c.h.b16 %v295
    %v1260 = vunpack.c.l.b16 %v296
    %v1261 = vunpack.c.h.b16 %v296
    %v1262 = vunpack.c.l.b16 %v297
    %v1263 = vunpack.c.h.b16 %v297
    %v1264 = vunpack.c.l.b16 %v298
    %v1265 = vunpack.c.h.b16 %v298
    %v1266 = vunpack.c.l.b16 %v299
    %v1267 = vunpack.c.h.b16 %v299
    %v1268 = vunpack.c.l.b16 %v300
    %v1269 = vunpack.c.h.b16 %v300
    %v1270 = vunpack.c.l.b16 %v301
    %v1271 = vunpack.c.h.b16 %v301
    %v1272 = vunpack.c.l.b16 %v302
    %v1273 = vunpack.c.h.b16 %v302
    %v1274 = vunpack.c.l.b16 %v303
    %v1275 = vunpack.c.h.b16 %v303
    %v1276 = vunpack.c.l.b16 %v304
    %v1277 = vunpack.c.h.b16 %v304
    %v1278 = vunpack.c.l.b16 %v305
    %v1279 = vunpack.c.h.b16 %v305
    %v1280 = vunpack.c.l.b16 %v306
    %v1281 = vunpack.c.h.b16 %v306
    %v1282 = vunpack.c.l.b16 %v307
    %v1283 = vunpack.c.h.b16 %v307
    %v1284 = vunpack.c.l.b16 %v308
    %v1285 = vunpack.c.h.b16 %v308
    %v1286 = vunpack.c.l.b16 %v309
    %v1287 = vunpack.c.h.b16 %v309
    %v1288 = vunpack.c.l.b16 %v310
    %v1289 = vunpack.c.h.b16 %v310
    %v1290 = vunpack.c.l.b16 %v311
    %v1291 = vunpack.c.h.b16 %v311
    %v1292 = vunpack.c.l.b16 %v312
    %v1293 = vunpack.c.h.b16 %v312
    %v1294 = vunpack.c.l.b16 %v313
    %v1295 = vunpack.c.h.b16 %v313
    %v1296 = vunpack.c.l.b16 %v314
    %v1297 = vunpack.c.h.b16 %v314
    %v1298 = vunpack.c.l.b16 %v315
    %v1299 = vunpack.c.h.b16 %v315
    %v1300 = vunpack.c.l.b16 %v316
    %v1301 = vunpack.c.h.b16 %v316
    %v1302 = vunpack.c.l.b16 %v317
    %v1303 = vunpack.c.h.b16 %v317
    %v1304 = vunpack.c.l.b16 %v318
    %v1305 = vunpack.c.h.b16 %v318
    %v1306 = vunpack.c.l.b16 %v319
    %v1307 = vunpack.c.h.b16 %v319
    %v1308 = vunpack.c.l.b16 %v320
    %v1309 = vunpack.c.h.b16 %v320
    %v1310 = vunpack.c.l.b16 %v321
    %v1311 = vunpack.c.h.b16 %v321
    %v1312 = vunpack.c.l.b16 %v322
    %v1313 = vunpack.c.h.b16 %v322
    %v1314 = vunpack.c.l.b16 %v323
    %v1315 = vunpack.c.h.b16 %v323
    %v1316 = vunpack.c.l.b16 %v324
    %v1317 = vunpack.c.h.b16 %v324
    %v1318 = vunpack.c.l.b16 %v325
    %v1319 = vunpack.c.h.b16 %v325
    %v1320 = vunpack.c.l.b16 %v326
    %v1321 = vunpack.c.h.b16 %v326
    %v1322 = vunpack.c.l.b16 %v327
    %v1323 = vunpack.c.h.b16 %v327
    %v1324 = vunpack.c.l.b16 %v328
    %v1325 = vunpack.c.h.b16 %v328
    %v1326 = vunpack.c.l.b16 %v329
    %v1327 = vunpack.c.h.b16 %v329
    %v1328 = vunpack.c.l.b16 %v330
    %v1329 = vunpack.c.h.b16 %v330
    %v1330 = vunpack.c.l.b16 %v331
    %v1331 = vunpack.c.h.b16 %v331
    %v1332 = vunpack.c.l.b16 %v332
    %v1333 = vunpack.c.h.b16 %v332
    %v1334 = vunpack.c.l.b16 %v333
    %v1335 = vunpack.c.h.b16 %v333
    %v1336 = vunpack.c.l.b16 %v334
    %v1337 = vunpack.c.h.b16 %v334
    %v1338 = vunpack.c.l.b16 %v335
    %v1339 = vunpack.c.h.b16 %v335
    %v1340 = vunpack.c.l.b16 %v336
    %v1341 = vunpack.c.h.b16 %v336
    %v1342 = vunpack.c.l.b16 %v337
    %v1343 = vunpack.c.h.b16 %v337
    %v1344 = vunpack.c.l.b16 %v338
    %v1345 = vunpack.c.h.b16 %v338
    %v1346 = vunpack.c.l.b16 %v339
    %v1347 = vunpack.c.h.b16 %v339
    %v1348 = vunpack.c.l.b16 %v340
    %v1349 = vunpack.c.h.b16 %v340
    %v1350 = vunpack.c.l.b16 %v341
    %v1351 = vunpack.c.h.b16 %v341
    %v1352 = vunpack.c.l.b16 %v342
    %v1353 = vunpack.c.h.b16 %v342
    %v1354 = vunpack.c.l.b16 %v343
    %v1355 = vunpack.c.h.b16 %v343
    %v1356 = vunpack.c.l.b16 %v344
    %v1357 = vunpack.c.h.b16 %v344
    %v1358 = vunpack.c.l.b16 %v345
    %v1359 = vunpack.c.h.b16 %v345
    %v1360 = vunpack.c.l.b16 %v346
    %v1361 = vunpack.c.h.b16 %v346
    %v1362 = vunpack.c.l.b16 %v347
    %v1363 = vunpack.c.h.b16 %v347
    %v1364 = vunpack.c.l.b16 %v348
    %v1365 = vunpack.c.h.b16 %v348
    %v1366 = vunpack.c.l.b16 %v349
    %v1367 = vunpack.c.h.b16 %v349
    %v1368 = vunpack.c.l.b16 %v350
    %v1369 = vunpack.c.h.b16 %v350
    %v1370 = vunpack.c.l.b16 %v351
    %v1371 = vunpack.c.h.b16 %v351
    %v1372 = vunpack.c.l.b16 %v352
    %v1373 = vunpack.c.h.b16 %v352
    %v1374 = vunpack.c.l.b16 %v353
    %v1375 = vunpack.c.h.b16 %v353
    %v1376 = vunpack.c.l.b16 %v354
    %v1377 = vunpack.c.h.b16 %v354
    %v1378 = vunpack.c.l.b16 %v355
    %v1379 = vunpack.c.h.b16 %v355
    %v1380 = vunpack.c.l.b16 %v356
    %v1381 = vunpack.c.h.b16 %v356
    %v1382 = vunpack.c.l.b16 %v357
    %v1383 = vunpack.c.h.b16 %v357
    %v1384 = vunpack.c.l.b16 %v358
    %v1385 = vunpack.c.h.b16 %v358
    %v1386 = vunpack.c.l.b16 %v359
    %v1387 = vunpack.c.h.b16 %v359
    %v1388 = vunpack.c.l.b16 %v360
    %v1389 = vunpack.c.h.b16 %v360
    %v1390 = vunpack.c.l.b16 %v361
    %v1391 = vunpack.c.h.b16 %v361
    %v1392 = vunpack.c.l.b16 %v362
    %v1393 = vunpack.c.h.b16 %v362
    %v1394 = vunpack.c.l.b16 %v363
    %v1395 = vunpack.c.h.b16 %v363
    %v1396 = vunpack.c.l.b16 %v364
    %v1397 = vunpack.c.h.b16 %v364
    %v1398 = vunpack.c.l.b16 %v365
    %v1399 = vunpack.c.h.b16 %v365
    %v1400 = vunpack.c.l.b16 %v366
    %v1401 = vunpack.c.h.b16 %v366
    %v1402 = vunpack.c.l.b16 %v367
    %v1403 = vunpack.c.h.b16 %v367
    %v1404 = vunpack.c.l.b16 %v368
    %v1405 = vunpack.c.h.b16 %v368
    %v1406 = vunpack.c.l.b16 %v369
    %v1407 = vunpack.c.h.b16 %v369
    %v1408 = vunpack.c.l.b16 %v370
    %v1409 = vunpack.c.h.b16 %v370
    %v1410 = vunpack.c.l.b16 %v371
    %v1411 = vunpack.c.h.b16 %v371
    %v1412 = vunpack.c.l.b16 %v372
    %v1413 = vunpack.c.h.b16 %v372
    %v1414 = vunpack.c.l.b16 %v373
    %v1415 = vunpack.c.h.b16 %v373
    %v1416 = vunpack.c.l.b16 %v374
    %v1417 = vunpack.c.h.b16 %v374
    %v1418 = vunpack.c.l.b16 %v375
    %v1419 = vunpack.c.h.b16 %v375
    %v1420 = vunpack.c.l.b16 %v376
    %v1421 = vunpack.c.h.b16 %v376
    %v1422 = vunpack.c.l.b16 %v377
    %v1423 = vunpack.c.h.b16 %v377
    %v1424 = vunpack.c.l.b16 %v378
    %v1425 = vunpack.c.h.b16 %v378
    %v1426 = vunpack.c.l.b16 %v379
    %v1427 = vunpack.c.h.b16 %v379
    %v1428 = vunpack.c.l.b16 %v380
    %v1429 = vunpack.c.h.b16 %v380
    %v1430 = vunpack.c.l.b16 %v381
    %v1431 = vunpack.c.h.b16 %v381
    %v1432 = vunpack.c.l.b16 %v382
    %v1433 = vunpack.c.h.b16 %v382
    %v1434 = vunpack.c.l.b16 %v383
    %v1435 = vunpack.c.h.b16 %v383
    %v1436 = vunpack.c.l.b16 %v384
    %v1437 = vunpack.c.h.b16 %v384
    %v1438 = vunpack.c.l.b16 %v385
    %v1439 = vunpack.c.h.b16 %v385
    %v1440 = vunpack.c.l.b16 %v386
    %v1441 = vunpack.c.h.b16 %v386
    %v1442 = vunpack.c.l.b16 %v387
    %v1443 = vunpack.c.h.b16 %v387
    %v1444 = vunpack.c.l.b16 %v388
    %v1445 = vunpack.c.h.b16 %v388
    %v1446 = vunpack.c.l.b16 %v389
    %v1447 = vunpack.c.h.b16 %v389
    %v1448 = vunpack.c.l.b16 %v390
    %v1449 = vunpack.c.h.b16 %v390
    %v1450 = vunpack.c.l.b16 %v391
    %v1451 = vunpack.c.h.b16 %v391
    %v1452 = vunpack.c.l.b16 %v392
    %v1453 = vunpack.c.h.b16 %v392
    %v1454 = vunpack.c.l.b16 %v393
    %v1455 = vunpack.c.h.b16 %v393
    %v1456 = vunpack.c.l.b16 %v394
    %v1457 = vunpack.c.h.b16 %v394
    %v1458 = vunpack.c.l.b16 %v395
    %v1459 = vunpack.c.h.b16 %v395
    %v1460 = vunpack.c.l.b16 %v396
    %v1461 = vunpack.c.h.b16 %v396
    %v1462 = vunpack.c.l.b16 %v397
    %v1463 = vunpack.c.h.b16 %v397
    %v1464 = vunpack.c.l.b16 %v398
    %v1465 = vunpack.c.h.b16 %v398
    %v1466 = vunpack.c.l.b16 %v399
    %v1467 = vunpack.c.h.b16 %v399
    %v1468 = vunpack.c.l.b16 %v400
    %v1469 = vunpack.c.h.b16 %v400
    %v1470 = vunpack.c.l.b16 %v401
    %v1471 = vunpack.c.h.b16 %v401
    %v1472 = vunpack.c.l.b16 %v402
    %v1473 = vunpack.c.h.b16 %v402
    %v1474 = vunpack.c.l.b16 %v403
    %v1475 = vunpack.c.h.b16 %v403
    %v1476 = vunpack.c.l.b16 %v404
    %v1477 = vunpack.c.h.b16 %v404
    %v1478 = vunpack.c.l.b16 %v405
    %v1479 = vunpack.c.h.b16 %v405
    %v1480 = vunpack.c.l.b16 %v406
    %v1481 = vunpack.c.h.b16 %v406
    %v1482 = vunpack.c.l.b16 %v407
    %v1483 = vunpack.c.h.b16 %v407
    %v1484 = vunpack.c.l.b16 %v408
    %v1485 = vunpack.c.h.b16 %v408
    %v1486 = vunpack.c.l.b16 %v409
    %v1487 = vunpack.c.h.b16 %v409
    %v1488 = vunpack.c.l.b16 %v410
    %v1489 = vunpack.c.h.b16 %v410
    %v1490 = vunpack.c.l.b16 %v411
    %v1491 = vunpack.c.h.b16 %v411
    %v1492 = vunpack.c.l.b16 %v412
    %v1493 = vunpack.c.h.b16 %v412
    %v1494 = vunpack.c.l.b16 %v413
    %v1495 = vunpack.c.h.b16 %v413
    %v1496 = vunpack.c.l.b16 %v414
    %v1497 = vunpack.c.h.b16 %v414
    %v1498 = vunpack.c.l.b16 %v415
    %v1499 = vunpack.c.h.b16 %v415
    %v1500 = vunpack.c.l.b16 %v416
    %v1501 = vunpack.c.h.b16 %v416
    %v1502 = vunpack.c.l.b16 %v417
    %v1503 = vunpack.c.h.b16 %v417
    %v1504 = vunpack.c.l.b16 %v418
    %v1505 = vunpack.c.h.b16 %v418
    %v1506 = vunpack.c.l.b16 %v419
    %v1507 = vunpack.c.h.b16 %v419
    %v1508 = vunpack.c.l.b16 %v420
    %v1509 = vunpack.c.h.b16 %v420
    %v1510 = vunpack.c.l.b16 %v421
    %v1511 = vunpack.c.h.b16 %v421
    %v1512 = vunpack.c.l.b16 %v422
    %v1513 = vunpack.c.h.b16 %v422
    %v1514 = vunpack.c.l.b16 %v423
    %v1515 = vunpack.c.h.b16 %v423
    %v1516 = vunpack.c.l.b16 %v424
    %v1517 = vunpack.c.h.b16 %v424
    %v1518 = vunpack.c.l.b16 %v425
    %v1519 = vunpack.c.h.b16 %v425
    %v1520 = vunpack.c.l.b16 %v426
    %v1521 = vunpack.c.h.b16 %v426
    %v1522 = vunpack.c.l.b16 %v427
    %v1523 = vunpack.c.h.b16 %v427
    %v1524 = vunpack.c.l.b16 %v428
    %v1525 = vunpack.c.h.b16 %v428
    %v1526 = vunpack.c.l.b16 %v429
    %v1527 = vunpack.c.h.b16 %v429
    %v1528 = vunpack.c.l.b16 %v430
    %v1529 = vunpack.c.h.b16 %v430
    %v1530 = vunpack.c.l.b16 %v431
    %v1531 = vunpack.c.h.b16 %v431
    %v1532 = vunpack.c.l.b16 %v432
    %v1533 = vunpack.c.h.b16 %v432
    %v1534 = vunpack.c.l.b16 %v433
    %v1535 = vunpack.c.h.b16 %v433
    %v1536 = vunpack.c.l.b16 %v434
    %v1537 = vunpack.c.h.b16 %v434
    %v1538 = vunpack.c.l.b16 %v435
    %v1539 = vunpack.c.h.b16 %v435
    %v1540 = vunpack.c.l.b16 %v436
    %v1541 = vunpack.c.h.b16 %v436
    %v1542 = vunpack.c.l.b16 %v437
    %v1543 = vunpack.c.h.b16 %v437
    %v1544 = vunpack.c.l.b16 %v438
    %v1545 = vunpack.c.h.b16 %v438
    %v1546 = vunpack.c.l.b16 %v439
    %v1547 = vunpack.c.h.b16 %v439
    %v1548 = vunpack.c.l.b16 %v440
    %v1549 = vunpack.c.h.b16 %v440
    %v1550 = vunpack.c.l.b16 %v441
    %v1551 = vunpack.c.h.b16 %v441
    %v1552 = vunpack.c.l.b16 %v442
    %v1553 = vunpack.c.h.b16 %v442
    %v1554 = vunpack.c.l.b16 %v443
    %v1555 = vunpack.c.h.b16 %v443
    %v1556 = vunpack.c.l.b16 %v444
    %v1557 = vunpack.c.h.b16 %v444
    %v1558 = vunpack.c.l.b16 %v445
    %v1559 = vunpack.c.h.b16 %v445
    %v1560 = vunpack.c.l.b16 %v446
    %v1561 = vunpack.c.h.b16 %v446
    %v1562 = vunpack.c.l.b16 %v447
    %v1563 = vunpack.c.h.b16 %v447
    %v1564 = vunpack.c.l.b16 %v448
    %v1565 = vunpack.c.h.b16 %v448
    %v1566 = vunpack.c.l.b16 %v449
    %v1567 = vunpack.c.h.b16 %v449
    %v1568 = vunpack.c.l.b16 %v450
    %v1569 = vunpack.c.h.b16 %v450
    %v1570 = vunpack.c.l.b16 %v451
    %v1571 = vunpack.c.h.b16 %v451
    %v1572 = vunpack.c.l.b16 %v452
    %v1573 = vunpack.c.h.b16 %v452
    %v1574 = vunpack.c.l.b16 %v453
    %v1575 = vunpack.c.h.b16 %v453
    %v1576 = vunpack.c.l.b16 %v454
    %v1577 = vunpack.c.h.b16 %v454
    %v1578 = vunpack.c.l.b16 %v455
    %v1579 = vunpack.c.h.b16 %v455
    %v1580 = vunpack.c.l.b16 %v456
    %v1581 = vunpack.c.h.b16 %v456
    %v1582 = vunpack.c.l.b16 %v457
    %v1583 = vunpack.c.h.b16 %v457
    %v1584 = vunpack.c.l.b16 %v458
    %v1585 = vunpack.c.h.b16 %v458
    %v1586 = vunpack.c.l.b16 %v459
    %v1587 = vunpack.c.h.b16 %v459
    %v1588 = vunpack.c.l.b16 %v460
    %v1589 = vunpack.c.h.b16 %v460
    %v1590 = vunpack.c.l.b16 %v461
    %v1591 = vunpack.c.h.b16 %v461
    %v1592 = vunpack.c.l.b16 %v462
    %v1593 = vunpack.c.h.b16 %v462
    %v1594 = vunpack.c.l.b16 %v463
    %v1595 = vunpack.c.h.b16 %v463
    %v1596 = vunpack.c.l.b16 %v464
    %v1597 = vunpack.c.h.b16 %v464
    %v1598 = vunpack.c.l.b16 %v465
    %v1599 = vunpack.c.h.b16 %v465
    %v1600 = vunpack.c.l.b16 %v466
    %v1601 = vunpack.c.h.b16 %v466
    %v1602 = vunpack.c.l.b16 %v467
    %v1603 = vunpack.c.h.b16 %v467
    %v1604 = vunpack.c.l.b16 %v468
    %v1605 = vunpack.c.h.b16 %v468
    %v1606 = vunpack.c.l.b16 %v469
    %v1607 = vunpack.c.h.b16 %v469
    %v1608 = vunpack.c.l.b16 %v470
    %v1609 = vunpack.c.h.b16 %v470
    %v1610 = vunpack.c.l.b16 %v471
    %v1611 = vunpack.c.h.b16 %v471
    %v1612 = vunpack.c.l.b16 %v472
    %v1613 = vunpack.c.h.b16 %v472
    %v1614 = vunpack.c.l.b16 %v473
    %v1615 = vunpack.c.h.b16 %v473
    %v1616 = vunpack.c.l.b16 %v474
    %v1617 = vunpack.c.h.b16 %v474
    %v1618 = vunpack.c.l.b16 %v475
    %v1619 = vunpack.c.h.b16 %v475
    %v1620 = vunpack.c.l.b16 %v476
    %v1621 = vunpack.c.h.b16 %v476
    %v1622 = vunpack.c.l.b16 %v477
    %v1623 = vunpack.c.h.b16 %v477
    %v1624 = vunpack.c.l.b16 %v478
    %v1625 = vunpack.c.h.b16 %v478
    %v1626 = vunpack.c.l.b16 %v479
    %v1627 = vunpack.c.h.b16 %v479
    %v1628 = vunpack.c.l.b16 %v480
    %v1629 = vunpack.c.h.b16 %v480
    %v1630 = vunpack.c.l.b16 %v481
    %v1631 = vunpack.c.h.b16 %v481
    %v1632 = vunpack.c.l.b16 %v482
    %v1633 = vunpack.c.h.b16 %v482
    %v1634 = vunpack.c.l.b16 %v483
    %v1635 = vunpack.c.h.b16 %v483
    %v1636 = vunpack.c.l.b16 %v484
    %v1637 = vunpack.c.h.b16 %v484
    %v1638 = vunpack.c.l.b16 %v485
    %v1639 = vunpack.c.h.b16 %v485
    %v1640 = vunpack.c.l.b16 %v486
    %v1641 = vunpack.c.h.b16 %v486
    %v1642 = vunpack.c.l.b16 %v487
    %v1643 = vunpack.c.h.b16 %v487
    %v1644 = vunpack.c.l.b16 %v488
    %v1645 = vunpack.c.h.b16 %v488
    %v1646 = vunpack.c.l.b16 %v489
    %v1647 = vunpack.c.h.b16 %v489
    %v1648 = vunpack.c.l.b16 %v490
    %v1649 = vunpack.c.h.b16 %v490
    %v1650 = vunpack.c.l.b16 %v491
    %v1651 = vunpack.c.h.b16 %v491
    %v1652 = vunpack.c.l.b16 %v492
    %v1653 = vunpack.c.h.b16 %v492
    %v1654 = vunpack.c.l.b16 %v493
    %v1655 = vunpack.c.h.b16 %v493
    %v1656 = vunpack.c.l.b16 %v494
    %v1657 = vunpack.c.h.b16 %v494
    %v1658 = vunpack.c.l.b16 %v495
    %v1659 = vunpack.c.h.b16 %v495
    %v1660 = vunpack.c.l.b16 %v496
    %v1661 = vunpack.c.h.b16 %v496
    %v1662 = vunpack.c.l.b16 %v497
    %v1663 = vunpack.c.h.b16 %v497
    %v1664 = vunpack.c.l.b16 %v498
    %v1665 = vunpack.c.h.b16 %v498
    %v1666 = vunpack.c.l.b16 %v499
    %v1667 = vunpack.c.h.b16 %v499
    %v1668 = vunpack.c.l.b16 %v500
    %v1669 = vunpack.c.h.b16 %v500
    %v1670 = vunpack.c.l.b16 %v501
    %v1671 = vunpack.c.h.b16 %v501
    %v1672 = vunpack.c.l.b16 %v502
    %v1673 = vunpack.c.h.b16 %v502
    %v1674 = vunpack.c.l.b16 %v503
    %v1675 = vunpack.c.h.b16 %v503
    %v1676 = vunpack.c.l.b16 %v504
    %v1677 = vunpack.c.h.b16 %v504
    %v1678 = vunpack.c.l.b16 %v505
    %v1679 = vunpack.c.h.b16 %v505
    %v1680 = vunpack.c.l.b16 %v506
    %v1681 = vunpack.c.h.b16 %v506
    %v1682 = vunpack.c.l.b16 %v507
    %v1683 = vunpack.c.h.b16 %v507
    %v1684 = vunpack.c.l.b16 %v508
    %v1685 = vunpack.c.h.b16 %v508
    %v1686 = vunpack.c.l.b16 %v509
    %v1687 = vunpack.c.h.b16 %v509
    %v1688 = vunpack.c.l.b16 %v510
    %v1689 = vunpack.c.h.b16 %v510
    %v1690 = vunpack.c.l.b16 %v511
    %v1691 = vunpack.c.h.b16 %v511
    %v1692 = vunpack.c.l.b16 %v512
    %v1693 = vunpack.c.h.b16 %v512
    %v1694 = vunpack.c.l.b16 %v513
    %v1695 = vunpack.c.h.b16 %v513
    %v1696 = vunpack.c.l.b16 %v514
    %v1697 = vunpack.c.h.b16 %v514
    %v1698 = vunpack.c.l.b16 %v515
    %v1699 = vunpack.c.h.b16 %v515
    %v1700 = vunpack.c.l.b16 %v516
    %v1701 = vunpack.c.h.b16 %v516
    %v1702 = vunpack.c.l.b16 %v517
    %v1703 = vunpack.c.h.b16 %v517
    %v1704 = vunpack.c.l.b16 %v518
    %v1705 = vunpack.c.h.b16 %v518
    %v1706 = vunpack.c.l.b16 %v519
    %v1707 = vunpack.c.h.b16 %v519
    %v1708 = vunpack.c.l.b16 %v520
    %v1709 = vunpack.c.h.b16 %v520
    %v1710 = vunpack.c.l.b16 %v521
    %v1711 = vunpack.c.h.b16 %v521
    %v1712 = vunpack.c.l.b16 %v522
    %v1713 = vunpack.c.h.b16 %v522
    %v1714 = vunpack.c.l.b16 %v523
    %v1715 = vunpack.c.h.b16 %v523
    %v1716 = vunpack.c.l.b16 %v524
    %v1717 = vunpack.c.h.b16 %v524
    %v1718 = vunpack.c.l.b16 %v525
    %v1719 = vunpack.c.h.b16 %v525
    %v1720 = vunpack.c.l.b16 %v526
    %v1721 = vunpack.c.h.b16 %v526
    %v1722 = vunpack.c.l.b16 %v527
    %v1723 = vunpack.c.h.b16 %v527
    %v1724 = vunpack.c.l.b16 %v528
    %v1725 = vunpack.c.h.b16 %v528
    %v1726 = vunpack.c.l.b16 %v529
    %v1727 = vunpack.c.h.b16 %v529
    %v1728 = vunpack.c.l.b16 %v530
    %v1729 = vunpack.c.h.b16 %v530
    %v1730 = vunpack.c.l.b16 %v531
    %v1731 = vunpack.c.h.b16 %v531
    %v1732 = vunpack.c.l.b16 %v532
    %v1733 = vunpack.c.h.b16 %v532
    %v1734 = vunpack.c.l.b16 %v533
    %v1735 = vunpack.c.h.b16 %v533
    %v1736 = vunpack.c.l.b16 %v534
    %v1737 = vunpack.c.h.b16 %v534
    %v1738 = vunpack.c.l.b16 %v535
    %v1739 = vunpack.c.h.b16 %v535
    %v1740 = vunpack.c.l.b16 %v536
    %v1741 = vunpack.c.h.b16 %v536
    %v1742 = vunpack.c.l.b16 %v537
    %v1743 = vunpack.c.h.b16 %v537
    %v1744 = vunpack.c.l.b16 %v538
    %v1745 = vunpack.c.h.b16 %v538
    %v1746 = vunpack.c.l.b16 %v539
    %v1747 = vunpack.c.h.b16 %v539
    %v1748 = vunpack.c.l.b16 %v540
    %v1749 = vunpack.c.h.b16 %v540
    %v1750 = vunpack.c.l.b16 %v541
    %v1751 = vunpack.c.h.b16 %v541
    %v1752 = vunpack.c.l.b16 %v542
    %v1753 = vunpack.c.h.b16 %v542
    %v1754 = vunpack.c.l.b16 %v543
    %v1755 = vunpack.c.h.b16 %v543
    %v1756 = vunpack.c.l.b16 %v544
    %v1757 = vunpack.c.h.b16 %v544
    %v1758 = vunpack.c.l.b16 %v545
    %v1759 = vunpack.c.h.b16 %v545
    %v1760 = vunpack.c.l.b16 %v546
    %v1761 = vunpack.c.h.b16 %v546
    %v1762 = vunpack.c.l.b16 %v547
    %v1763 = vunpack.c.h.b16 %v547
    %v1764 = vunpack.c.l.b16 %v548
    %v1765 = vunpack.c.h.b16 %v548
    %v1766 = vunpack.c.l.b16 %v549
    %v1767 = vunpack.c.h.b16 %v549
    %v1768 = vunpack.c.l.b16 %v550
    %v1769 = vunpack.c.h.b16 %v550
    %v1770 = vunpack.c.l.b16 %v551
    %v1771 = vunpack.c.h.b16 %v551
    %v1772 = vunpack.c.l.b16 %v552
    %v1773 = vunpack.c.h.b16 %v552
    %v1774 = vunpack.c.l.b16 %v553
    %v1775 = vunpack.c.h.b16 %v553
    %v1776 = vunpack.c.l.b16 %v554
    %v1777 = vunpack.c.h.b16 %v554
    %v1778 = vunpack.c.l.b16 %v555
    %v1779 = vunpack.c.h.b16 %v555
    %v1780 = vunpack.c.l.b16 %v556
    %v1781 = vunpack.c.h.b16 %v556
    %v1782 = vunpack.c.l.b16 %v557
    %v1783 = vunpack.c.h.b16 %v557
    %v1784 = vunpack.c.l.b16 %v558
    %v1785 = vunpack.c.h.b16 %v558
    %v1786 = vunpack.c.l.b16 %v559
    %v1787 = vunpack.c.h.b16 %v559
    %v1788 = vunpack.c.l.b16 %v560
    %v1789 = vunpack.c.h.b16 %v560
    %v1790 = vunpack.c.l.b16 %v561
    %v1791 = vunpack.c.h.b16 %v561
    %v1792 = vunpack.c.l.b16 %v562
    %v1793 = vunpack.c.h.b16 %v562
    %v1794 = vunpack.c.l.b16 %v563
    %v1795 = vunpack.c.h.b16 %v563
    %v1796 = vunpack.c.l.b16 %v564
    %v1797 = vunpack.c.h.b16 %v564
    %v1798 = vunpack.c.l.b16 %v565
    %v1799 = vunpack.c.h.b16 %v565
    %v1800 = vunpack.c.l.b16 %v566
    %v1801 = vunpack.c.h.b16 %v566
    %v1802 = vunpack.c.l.b16 %v567
    %v1803 = vunpack.c.h.b16 %v567
    %v1804 = vunpack.c.l.b16 %v568
    %v1805 = vunpack.c.h.b16 %v568
    %v1806 = vunpack.c.l.b16 %v569
    %v1807 = vunpack.c.h.b16 %v569
    %v1808 = vunpack.c.l.b16 %v570
    %v1809 = vunpack.c.h.b16 %v570
    %v1810 = vunpack.c.l.b16 %v571
    %v1811 = vunpack.c.h.b16 %v571
    %v1812 = vunpack.c.l.b16 %v572
    %v1813 = vunpack.c.h.b16 %v572
    %v1814 = vunpack.c.l.b16 %v573
    %v1815 = vunpack.c.h.b16 %v573
    %v1816 = vunpack.c.l.b16 %v574
    %v1817 = vunpack.c.h.b16 %v574
    %v1818 = vunpack.c.l.b16 %v575
    %v1819 = vunpack.c.h.b16 %v575
    %v1820 = vunpack.c.l.b16 %v576
    %v1821 = vunpack.c.h.b16 %v576
    %v1822 = vunpack.c.l.b16 %v577
    %v1823 = vunpack.c.h.b16 %v577
    %v1824 = vunpack.c.l.b16 %v578
    %v1825 = vunpack.c.h.b16 %v578
    %v1826 = vunpack.c.l.b16 %v579
    %v1827 = vunpack.c.h.b16 %v579
    %v1828 = vunpack.c.l.b16 %v580
    %v1829 = vunpack.c.h.b16 %v580
    %v1830 = vunpack.c.l.b16 %v581
    %v1831 = vunpack.c.h.b16 %v581
    %v1832 = vunpack.c.l.b16 %v582
    %v1833 = vunpack.c.h.b16 %v582
    %v1834 = vunpack.c.l.b16 %v583
    %v1835 = vunpack.c.h.b16 %v583
    %v1836 = vunpack.c.l.b16 %v584
    %v1837 = vunpack.c.h.b16 %v584
    %v1838 = vunpack.c.l.b16 %v585
    %v1839 = vunpack.c.h.b16 %v585
    %v1840 = vunpack.c.l.b16 %v586
    %v1841 = vunpack.c.h.b16 %v586
    %v1842 = vunpack.c.l.b16 %v587
    %v1843 = vunpack.c.h.b16 %v587
    %v1844 = vunpack.c.l.b16 %v588
    %v1845 = vunpack.c.h.b16 %v588
    %v1846 = vunpack.c.l.b16 %v589
    %v1847 = vunpack.c.h.b16 %v589
    %v1848 = vunpack.c.l.b16 %v590
    %v1849 = vunpack.c.h.b16 %v590
    %v1850 = vunpack.c.l.b16 %v591
    %v1851 = vunpack.c.h.b16 %v591
    %v1852 = vunpack.c.l.b16 %v592
    %v1853 = vunpack.c.h.b16 %v592
    %v1854 = vunpack.c.l.b16 %v593
    %v1855 = vunpack.c.h.b16 %v593
    %v1856 = vunpack.c.l.b16 %v594
    %v1857 = vunpack.c.h.b16 %v594
    %v1858 = vunpack.c.l.b16 %v595
    %v1859 = vunpack.c.h.b16 %v595
    %v1860 = vunpack.c.l.b16 %v596
    %v1861 = vunpack.c.h.b16 %v596
    %v1862 = vunpack.c.l.b16 %v597
    %v1863 = vunpack.c.h.b16 %v597
    %v1864 = vunpack.c.l.b16 %v598
    %v1865 = vunpack.c.h.b16 %v598
    %v1866 = vunpack.c.l.b16 %v599
    %v1867 = vunpack.c.h.b16 %v599
    %v1868 = vunpack.c.l.b16 %v600
    %v1869 = vunpack.c.h.b16 %v600
    %v1870 = vunpack.c.l.b16 %v601
    %v1871 = vunpack.c.h.b16 %v601
    %v1872 = vunpack.c.l.b16 %v602
    %v1873 = vunpack.c.h.b16 %v602
    %v1874 = vunpack.c.l.b16 %v603
    %v1875 = vunpack.c.h.b16 %v603
    %v1876 = vunpack.c.l.b16 %v604
    %v1877 = vunpack.c.h.b16 %v604
    %v1878 = vunpack.c.l.b16 %v605
    %v1879 = vunpack.c.h.b16 %v605
    %v1880 = vunpack.c.l.b16 %v606
    %v1881 = vunpack.c.h.b16 %v606
    %v1882 = vunpack.c.l.b16 %v607
    %v1883 = vunpack.c.h.b16 %v607
    %v1884 = vpack.c.b16 %v1118, %v1116
    %v1885 = vpack.c.b16 %v1119, %v1117
    %v1886 = vpack.c.b16 %v1122, %v1120
    %v1887 = vpack.c.b16 %v1123, %v1121
    %v1888 = vpack.c.b16 %v1126, %v1124
    %v1889 = vpack.c.b16 %v1127, %v1125
    %v1890 = vpack.c.b16 %v1130, %v1128
    %v1891 = vpack.c.b16 %v1131, %v1129
    %v1892 = vpack.c.b16 %v1134, %v1132
    %v1893 = vpack.c.b16 %v1135, %v1133
    %v1894 = vpack.c.b16 %v1138, %v1136
    %v1895 = vpack.c.b16 %v1139, %v1137
    %v1896 = vpack.c.b16 %v1142, %v1140
    %v1897 = vpack.c.b16 %v1143, %v1141
    %v1898 = vpack.c.b16 %v1146, %v1144
    %v1899 = vpack.c.b16 %v1147, %v1145
    %v1900 = vpack.c.b16 %v1150, %v1148
    %v1901 = vpack.c.b16 %v1151, %v1149
    %v1902 = vpack.c.b16 %v1154, %v1152
    %v1903 = vpack.c.b16 %v1155, %v1153
    %v1904 = vpack.c.b16 %v1158, %v1156
    %v1905 = vpack.c.b16 %v1159, %v1157
    %v1906 = vpack.c.b16 %v1162, %v1160
    %v1907 = vpack.c.b16 %v1163, %v1161
    %v1908 = vpack.c.b16 %v1166, %v1164
    %v1909 = vpack.c.b16 %v1167, %v1165
    %v1910 = vpack.c.b16 %v1170, %v1168
    %v1911 = vpack.c.b16 %v1171, %v1169
    %v1912 = vpack.c.b16 %v1174, %v1172
    %v1913 = vpack.c.b16 %v1175, %v1173
    %v1914 = vpack.c.b16 %v1178, %v1176
    %v1915 = vpack.c.b16 %v1179, %v1177
    %v1916 = vpack.c.b16 %v1182, %v1180
    %v1917 = vpack.c.b16 %v1183, %v1181
    %v1918 = vpack.c.b16 %v1186, %v1184
    %v1919 = vpack.c.b16 %v1187, %v1185
    %v1920 = vpack.c.b16 %v1190, %v1188
    %v1921 = vpack.c.b16 %v1191, %v1189
    %v1922 = vpack.c.b16 %v1194, %v1192
    %v1923 = vpack.c.b16 %v1195, %v1193
    %v1924 = vpack.c.b16 %v1198, %v1196
    %v1925 = vpack.c.b16 %v1199, %v1197
    %v1926 = vpack.c.b16 %v1202, %v1200
    %v1927 = vpack.c.b16 %v1203, %v1201
    %v1928 = vpack.c.b16 %v1206, %v1204
    %v1929 = vpack.c.b16 %v1207, %v1205
    %v1930 = vpack.c.b16 %v1210, %v1208
    %v1931 = vpack.c.b16 %v1211, %v1209
    %v1932 = vpack.c.b16 %v1214, %v1212
    %v1933 = vpack.c.b16 %v1215, %v1213
    %v1934 = vpack.c.b16 %v1218, %v1216
    %v1935 = vpack.c.b16 %v1219, %v1217
    %v1936 = vpack.c.b16 %v1222, %v1220
    %v1937 = vpack.c.b16 %v1223, %v1221
    %v1938 = vpack.c.b16 %v1226, %v1224
    %v1939 = vpack.c.b16 %v1227, %v1225
    %v1940 = vpack.c.b16 %v1230, %v1228
    %v1941 = vpack.c.b16 %v1231, %v1229
    %v1942 = vpack.c.b16 %v1234, %v1232
    %v1943 = vpack.c.b16 %v1235, %v1233
    %v1944 = vpack.c.b16 %v1238, %v1236
    %v1945 = vpack.c.b16 %v1239, %v1237
    %v1946 = vpack.c.b16 %v1242, %v1240
    %v1947 = vpack.c.b16 %v1243, %v1241
    %v1948 = vpack.c.b16 %v1246, %v1244
    %v1949 = vpack.c.b16 %v1247, %v1245
    %v1950 = vpack.c.b16 %v1250, %v1248
    %v1951 = vpack.c.b16 %v1251, %v1249
    %v1952 = vpack.c.b16 %v1254, %v1252
    %v1953 = vpack.c.b16 %v1255, %v1253
    %v1954 = vpack.c.b16 %v1258, %v1256
    %v1955 = vpack.c.b16 %v1259, %v1257
    %v1956 = vpack.c.b16 %v1262, %v1260
    %v1957 = vpack.c.b16 %v1263, %v1261
    %v1958 = vpack.c.b16 %v1266, %v1264
    %v1959 = vpack.c.b16 %v1267, %v1265
    %v1960 = vpack.c.b16 %v1270, %v1268
    %v1961 = vpack.c.b16 %v1271, %v1269
    %v1962 = vpack.c.b16 %v1274, %v1272
    %v1963 = vpack.c.b16 %v1275, %v1273
    %v1964 = vpack.c.b16 %v1278, %v1276
    %v1965 = vpack.c.b16 %v1279, %v1277
    %v1966 = vpack.c.b16 %v1282, %v1280
    %v1967 = vpack.c.b16 %v1283, %v1281
    %v1968 = vpack.c.b16 %v1286, %v1284
    %v1969 = vpack.c.b16 %v1287, %v1285
    %v1970 = vpack.c.b16 %v1290, %v1288
    %v1971 = vpack.c.b16 %v1291, %v1289
    %v1972 = vpack.c.b16 %v1294, %v1292
    %v1973 = vpack.c.b16 %v1295, %v1293
    %v1974 = vpack.c.b16 %v1298, %v1296
    %v1975 = vpack.c.b16 %v1299, %v1297
    %v1976 = vpack.c.b16 %v1302, %v1300
    %v1977 = vpack.c.b16 %v1303, %v1301
    %v1978 = vpack.c.b16 %v1306, %v1304
    %v1979 = vpack.c.b16 %v1307, %v1305
    %v1980 = vpack.c.b16 %v1310, %v1308
    %v1981 = vpack.c.b16 %v1311, %v1309
    %v1982 = vpack.c.b16 %v1314, %v1312
    %v1983 = vpack.c.b16 %v1315, %v1313
    %v1984 = vpack.c.b16 %v1318, %v1316
    %v1985 = vpack.c.b16 %v1319, %v1317
    %v1986 = vpack.c.b16 %v1322, %v1320
    %v1987 = vpack.c.b16 %v1323, %v1321
    %v1988 = vpack.c.b16 %v1326, %v1324
    %v1989 = vpack.c.b16 %v1327, %v1325
    %v1990 = vpack.c.b16 %v1330, %v1328
    %v1991 = vpack.c.b16 %v1331, %v1329
    %v1992 = vpack.c.b16 %v1334, %v1332
    %v1993 = vpack.c.b16 %v1335, %v1333
    %v1994 = vpack.c.b16 %v1338, %v1336
    %v1995 = vpack.c.b16 %v1339, %v1337
    %v1996 = vpack.c.b16 %v1342, %v1340
    %v1997 = vpack.c.b16 %v1343, %v1341
    %v1998 = vpack.c.b16 %v1346, %v1344
    %v1999 = vpack.c.b16 %v1347, %v1345
    %v2000 = vpack.c.b16 %v1350, %v1348
    %v2001 = vpack.c.b16 %v1351, %v1349
    %v2002 = vpack.c.b16 %v1354, %v1352
    %v2003 = vpack.c.b16 %v1355, %v1353
    %v2004 = vpack.c.b16 %v1358, %v1356
    %v2005 = vpack.c.b16 %v1359, %v1357
    %v2006 = vpack.c.b16 %v1362, %v1360
    %v2007 = vpack.c.b16 %v1363, %v1361
    %v2008 = vpack.c.b16 %v1366, %v1364
    %v2009 = vpack.c.b16 %v1367, %v1365
    %v2010 = vpack.c.b16 %v1370, %v1368
    %v2011 = vpack.c.b16 %v1371, %v1369
    %v2012 = vpack.c.b16 %v1374, %v1372
    %v2013 = vpack.c.b16 %v1375, %v1373
    %v2014 = vpack.c.b16 %v1378, %v1376
    %v2015 = vpack.c.b16 %v1379, %v1377
    %v2016 = vpack.c.b16 %v1382, %v1380
    %v2017 = vpack.c.b16 %v1383, %v1381
    %v2018 = vpack.c.b16 %v1386, %v1384
    %v2019 = vpack.c.b16 %v1387, %v1385
    %v2020 = vpack.c.b16 %v1390, %v1388
    %v2021 = vpack.c.b16 %v1391, %v1389
    %v2022 = vpack.c.b16 %v1394, %v1392
    %v2023 = vpack.c.b16 %v1395, %v1393
    %v2024 = vpack.c.b16 %v1398, %v1396
    %v2025 = vpack.c.b16 %v1399, %v1397
    %v2026 = vpack.c.b16 %v1402, %v1400
    %v2027 = vpack.c.b16 %v1403, %v1401
    %v2028 = vpack.c.b16 %v1406, %v1404
    %v2029 = vpack.c.b16 %v1407, %v1405
    %v2030 = vpack.c.b16 %v1410, %v1408
    %v2031 = vpack.c.b16 %v1411, %v1409
    %v2032 = vpack.c.b16 %v1414, %v1412
    %v2033 = vpack.c.b16 %v1415, %v1413
    %v2034 = vpack.c.b16 %v1418, %v1416
    %v2035 = vpack.c.b16 %v1419, %v1417
    %v2036 = vpack.c.b16 %v1422, %v1420
    %v2037 = vpack.c.b16 %v1423, %v1421
    %v2038 = vpack.c.b16 %v1426, %v1424
    %v2039 = vpack.c.b16 %v1427, %v1425
    %v2040 = vpack.c.b16 %v1430, %v1428
    %v2041 = vpack.c.b16 %v1431, %v1429
    %v2042 = vpack.c.b16 %v1434, %v1432
    %v2043 = vpack.c.b16 %v1435, %v1433
    %v2044 = vpack.c.b16 %v1438, %v1436
    %v2045 = vpack.c.b16 %v1439, %v1437
    %v2046 = vpack.c.b16 %v1442, %v1440
    %v2047 = vpack.c.b16 %v1443, %v1441
    %v2048 = vpack.c.b16 %v1446, %v1444
    %v2049 = vpack.c.b16 %v1447, %v1445
    %v2050 = vpack.c.b16 %v1450, %v1448
    %v2051 = vpack.c.b16 %v1451, %v1449
    %v2052 = vpack.c.b16 %v1454, %v1452
    %v2053 = vpack.c.b16 %v1455, %v1453
    %v2054 = vpack.c.b16 %v1458, %v1456
    %v2055 = vpack.c.b16 %v1459, %v1457
    %v2056 = vpack.c.b16 %v1462, %v1460
    %v2057 = vpack.c.b16 %v1463, %v1461
    %v2058 = vpack.c.b16 %v1466, %v1464
    %v2059 = vpack.c.b16 %v1467, %v1465
    %v2060 = vpack.c.b16 %v1470, %v1468
    %v2061 = vpack.c.b16 %v1471, %v1469
    %v2062 = vpack.c.b16 %v1474, %v1472
    %v2063 = vpack.c.b16 %v1475, %v1473
    %v2064 = vpack.c.b16 %v1478, %v1476
    %v2065 = vpack.c.b16 %v1479, %v1477
    %v2066 = vpack.c.b16 %v1482, %v1480
    %v2067 = vpack.c.b16 %v1483, %v1481
    %v2068 = vpack.c.b16 %v1486, %v1484
    %v2069 = vpack.c.b16 %v1487, %v1485
    %v2070 = vpack.c.b16 %v1490, %v1488
    %v2071 = vpack.c.b16 %v1491, %v1489
    %v2072 = vpack.c.b16 %v1494, %v1492
    %v2073 = vpack.c.b16 %v1495, %v1493
    %v2074 = vpack.c.b16 %v1498, %v1496
    %v2075 = vpack.c.b16 %v1499, %v1497
    %v2076 = vpack.c.b16 %v1502, %v1500
    %v2077 = vpack.c.b16 %v1503, %v1501
    %v2078 = vpack.c.b16 %v1506, %v1504
    %v2079 = vpack.c.b16 %v1507, %v1505
    %v2080 = vpack.c.b16 %v1510, %v1508
    %v2081 = vpack.c.b16 %v1511, %v1509
    %v2082 = vpack.c.b16 %v1514, %v1512
    %v2083 = vpack.c.b16 %v1515, %v1513
    %v2084 = vpack.c.b16 %v1518, %v1516
    %v2085 = vpack.c.b16 %v1519, %v1517
    %v2086 = vpack.c.b16 %v1522, %v1520
    %v2087 = vpack.c.b16 %v1523, %v1521
    %v2088 = vpack.c.b16 %v1526, %v1524
    %v2089 = vpack.c.b16 %v1527, %v1525
    %v2090 = vpack.c.b16 %v1530, %v1528
    %v2091 = vpack.c.b16 %v1531, %v1529
    %v2092 = vpack.c.b16 %v1534, %v1532
    %v2093 = vpack.c.b16 %v1535, %v1533
    %v2094 = vpack.c.b16 %v1538, %v1536
    %v2095 = vpack.c.b16 %v1539, %v1537
    %v2096 = vpack.c.b16 %v1542, %v1540
    %v2097 = vpack.c.b16 %v1543, %v1541
    %v2098 = vpack.c.b16 %v1546, %v1544
    %v2099 = vpack.c.b16 %v1547, %v1545
    %v2100 = vpack.c.b16 %v1550, %v1548
    %v2101 = vpack.c.b16 %v1551, %v1549
    %v2102 = vpack.c.b16 %v1554, %v1552
    %v2103 = vpack.c.b16 %v1555, %v1553
    %v2104 = vpack.c.b16 %v1558, %v1556
    %v2105 = vpack.c.b16 %v1559, %v1557
    %v2106 = vpack.c.b16 %v1562, %v1560
    %v2107 = vpack.c.b16 %v1563, %v1561
    %v2108 = vpack.c.b16 %v1566, %v1564
    %v2109 = vpack.c.b16 %v1567, %v1565
    %v2110 = vpack.c.b16 %v1570, %v1568
    %v2111 = vpack.c.b16 %v1571, %v1569
    %v2112 = vpack.c.b16 %v1574, %v1572
    %v2113 = vpack.c.b16 %v1575, %v1573
    %v2114 = vpack.c.b16 %v1578, %v1576
    %v2115 = vpack.c.b16 %v1579, %v1577
    %v2116 = vpack.c.b16 %v1582, %v1580
    %v2117 = vpack.c.b16 %v1583, %v1581
    %v2118 = vpack.c.b16 %v1586, %v1584
    %v2119 = vpack.c.b16 %v1587, %v1585
    %v2120 = vpack.c.b16 %v1590, %v1588
    %v2121 = vpack.c.b16 %v1591, %v1589
    %v2122 = vpack.c.b16 %v1594, %v1592
    %v2123 = vpack.c.b16 %v1595, %v1593
    %v2124 = vpack.c.b16 %v1598, %v1596
    %v2125 = vpack.c.b16 %v1599, %v1597
    %v2126 = vpack.c.b16 %v1602, %v1600
    %v2127 = vpack.c.b16 %v1603, %v1601
    %v2128 = vpack.c.b16 %v1606, %v1604
    %v2129 = vpack.c.b16 %v1607, %v1605
    %v2130 = vpack.c.b16 %v1610, %v1608
    %v2131 = vpack.c.b16 %v1611, %v1609
    %v2132 = vpack.c.b16 %v1614, %v1612
    %v2133 = vpack.c.b16 %v1615, %v1613
    %v2134 = vpack.c.b16 %v1618, %v1616
    %v2135 = vpack.c.b16 %v1619, %v1617
    %v2136 = vpack.c.b16 %v1622, %v1620
    %v2137 = vpack.c.b16 %v1623, %v1621
    %v2138 = vpack.c.b16 %v1626, %v1624
    %v2139 = vpack.c.b16 %v1627, %v1625
    %v2140 = vpack.c.b16 %v1630, %v1628
    %v2141 = vpack.c.b16 %v1631, %v1629
    %v2142 = vpack.c.b16 %v1634, %v1632
    %v2143 = vpack.c.b16 %v1635, %v1633
    %v2144 = vpack.c.b16 %v1638, %v1636
    %v2145 = vpack.c.b16 %v1639, %v1637
    %v2146 = vpack.c.b16 %v1642, %v1640
    %v2147 = vpack.c.b16 %v1643, %v1641
    %v2148 = vpack.c.b16 %v1646, %v1644
    %v2149 = vpack.c.b16 %v1647, %v1645
    %v2150 = vpack.c.b16 %v1650, %v1648
    %v2151 = vpack.c.b16 %v1651, %v1649
    %v2152 = vpack.c.b16 %v1654, %v1652
    %v2153 = vpack.c.b16 %v1655, %v1653
    %v2154 = vpack.c.b16 %v1658, %v1656
    %v2155 = vpack.c.b16 %v1659, %v1657
    %v2156 = vpack.c.b16 %v1662, %v1660
    %v2157 = vpack.c.b16 %v1663, %v1661
    %v2158 = vpack.c.b16 %v1666, %v1664
    %v2159 = vpack.c.b16 %v1667, %v1665
    %v2160 = vpack.c.b16 %v1670, %v1668
    %v2161 = vpack.c.b16 %v1671, %v1669
    %v2162 = vpack.c.b16 %v1674, %v1672
    %v2163 = vpack.c.b16 %v1675, %v1673
    %v2164 = vpack.c.b16 %v1678, %v1676
    %v2165 = vpack.c.b16 %v1679, %v1677
    %v2166 = vpack.c.b16 %v1682, %v1680
    %v2167 = vpack.c.b16 %v1683, %v1681
    %v2168 = vpack.c.b16 %v1686, %v1684
    %v2169 = vpack.c.b16 %v1687, %v1685
    %v2170 = vpack.c.b16 %v1690, %v1688
    %v2171 = vpack.c.b16 %v1691, %v1689
    %v2172 = vpack.c.b16 %v1694, %v1692
    %v2173 = vpack.c.b16 %v1695, %v1693
    %v2174 = vpack.c.b16 %v1698, %v1696
    %v2175 = vpack.c.b16 %v1699, %v1697
    %v2176 = vpack.c.b16 %v1702, %v1700
    %v2177 = vpack.c.b16 %v1703, %v1701
    %v2178 = vpack.c.b16 %v1706, %v1704
    %v2179 = vpack.c.b16 %v1707, %v1705
    %v2180 = vpack.c.b16 %v1710, %v1708
    %v2181 = vpack.c.b16 %v1711, %v1709
    %v2182 = vpack.c.b16 %v1714, %v1712
    %v2183 = vpack.c.b16 %v1715, %v1713
    %v2184 = vpack.c.b16 %v1718, %v1716
    %v2185 = vpack.c.b16 %v1719, %v1717
    %v2186 = vpack.c.b16 %v1722, %v1720
    %v2187 = vpack.c.b16 %v1723, %v1721
    %v2188 = vpack.c.b16 %v1726, %v1724
    %v2189 = vpack.c.b16 %v1727, %v1725
    %v2190 = vpack.c.b16 %v1730, %v1728
    %v2191 = vpack.c.b16 %v1731, %v1729
    %v2192 = vpack.c.b16 %v1734, %v1732
    %v2193 = vpack.c.b16 %v1735, %v1733
    %v2194 = vpack.c.b16 %v1738, %v1736
    %v2195 = vpack.c.b16 %v1739, %v1737
    %v2196 = vpack.c.b16 %v1742, %v1740
    %v2197 = vpack.c.b16 %v1743, %v1741
    %v2198 = vpack.c.b16 %v1746, %v1744
    %v2199 = vpack.c.b16 %v1747, %v1745
    %v2200 = vpack.c.b16 %v1750, %v1748
    %v2201 = vpack.c.b16 %v1751, %v1749
    %v2202 = vpack.c.b16 %v1754, %v1752
    %v2203 = vpack.c.b16 %v1755, %v1753
    %v2204 = vpack.c.b16 %v1758, %v1756
    %v2205 = vpack.c.b16 %v1759, %v1757
    %v2206 = vpack.c.b16 %v1762, %v1760
    %v2207 = vpack.c.b16 %v1763, %v1761
    %v2208 = vpack.c.b16 %v1766, %v1764
    %v2209 = vpack.c.b16 %v1767, %v1765
    %v2210 = vpack.c.b16 %v1770, %v1768
    %v2211 = vpack.c.b16 %v1771, %v1769
    %v2212 = vpack.c.b16 %v1774, %v1772
    %v2213 = vpack.c.b16 %v1775, %v1773
    %v2214 = vpack.c.b16 %v1778, %v1776
    %v2215 = vpack.c.b16 %v1779, %v1777
    %v2216 = vpack.c.b16 %v1782, %v1780
    %v2217 = vpack.c.b16 %v1783, %v1781
    %v2218 = vpack.c.b16 %v1786, %v1784
    %v2219 = vpack.c.b16 %v1787, %v1785
    %v2220 = vpack.c.b16 %v1790, %v1788
    %v2221 = vpack.c.b16 %v1791, %v1789
    %v2222 = vpack.c.b16 %v1794, %v1792
    %v2223 = vpack.c.b16 %v1795, %v1793
    %v2224 = vpack.c.b16 %v1798, %v1796
    %v2225 = vpack.c.b16 %v1799, %v1797
    %v2226 = vpack.c.b16 %v1802, %v1800
    %v2227 = vpack.c.b16 %v1803, %v1801
    %v2228 = vpack.c.b16 %v1806, %v1804
    %v2229 = vpack.c.b16 %v1807, %v1805
    %v2230 = vpack.c.b16 %v1810, %v1808
    %v2231 = vpack.c.b16 %v1811, %v1809
    %v2232 = vpack.c.b16 %v1814, %v1812
    %v2233 = vpack.c.b16 %v1815, %v1813
    %v2234 = vpack.c.b16 %v1818, %v1816
    %v2235 = vpack.c.b16 %v1819, %v1817
    %v2236 = vpack.c.b16 %v1822, %v1820
    %v2237 = vpack.c.b16 %v1823, %v1821
    %v2238 = vpack.c.b16 %v1826, %v1824
    %v2239 = vpack.c.b16 %v1827, %v1825
    %v2240 = vpack.c.b16 %v1830, %v1828
    %v2241 = vpack.c.b16 %v1831, %v1829
    %v2242 = vpack.c.b16 %v1834, %v1832
    %v2243 = vpack.c.b16 %v1835, %v1833
    %v2244 = vpack.c.b16 %v1838, %v1836
    %v2245 = vpack.c.b16 %v1839, %v1837
    %v2246 = vpack.c.b16 %v1842, %v1840
    %v2247 = vpack.c.b16 %v1843, %v1841
    %v2248 = vpack.c.b16 %v1846, %v1844
    %v2249 = vpack.c.b16 %v1847, %v1845
    %v2250 = vpack.c.b16 %v1850, %v1848
    %v2251 = vpack.c.b16 %v1851, %v1849
    %v2252 = vpack.c.b16 %v1854, %v1852
    %v2253 = vpack.c.b16 %v1855, %v1853
    %v2254 = vpack.c.b16 %v1858, %v1856
    %v2255 = vpack.c.b16 %v1859, %v1857
    %v2256 = vpack.c.b16 %v1862, %v1860
    %v2257 = vpack.c.b16 %v1863, %v1861
    %v2258 = vpack.c.b16 %v1866, %v1864
    %v2259 = vpack.c.b16 %v1867, %v1865
    %v2260 = vpack.c.b16 %v1870, %v1868
    %v2261 = vpack.c.b16 %v1871, %v1869
    %v2262 = vpack.c.b16 %v1874, %v1872
    %v2263 = vpack.c.b16 %v1875, %v1873
    %v2264 = vpack.c.b16 %v1878, %v1876
    %v2265 = vpack.c.b16 %v1879, %v1877
    %v2266 = vpack.c.b16 %v1882, %v1880
    %v2267 = vpack.c.b16 %v1883, %v1881
    %2652 = vmatpush.bf16.msra.mxu0 %v1898
    %2653 = vmatpush.bf16.msra.mxu0 %v1896
    %2654 = vmatpush.bf16.msra.mxu0 %v1894
    %2655 = vmatpush.bf16.msra.mxu0 %v1892
    %2656 = vmatpush.bf16.msra.mxu0 %v1890
    %2657 = vmatpush.bf16.msra.mxu0 %v1888
    %2658 = vmatpush.bf16.msra.mxu0 %v1886
    %2659 = vmatpush.bf16.msra.mxu0 %v1884
    %2660 = vmatmul.bf16.gmra.mxu0 %v200
    %v2661 = vpop.f32.mrf.mxu0
    %v2662 = vadd.f32 %v716, %v2661
    %v2663 = vpop.f32.mrf.mxu0
    %2664 = vdwg.mxu0
    %2665 = vmatpush.bf16.msra.mxu0 %v1914
    %2666 = vmatpush.bf16.msra.mxu0 %v1912
    %2667 = vmatpush.bf16.msra.mxu0 %v1910
    %2668 = vmatpush.bf16.msra.mxu0 %v1908
    %2669 = vmatpush.bf16.msra.mxu0 %v1906
    %2670 = vmatpush.bf16.msra.mxu0 %v1904
    %2671 = vmatpush.bf16.msra.mxu0 %v1902
    %2672 = vmatpush.bf16.msra.mxu0 %v1900
    %2673 = vmatmul.bf16.gmra.mxu0 %v201
    %v2674 = vpop.f32.mrf.mxu0
    %v2675 = vadd.f32 %v2662, %v2674
    %v2676 = vpop.f32.mrf.mxu0
    %2677 = vdwg.mxu0
    %2678 = vmatpush.bf16.msra.mxu0 %v1930
    %2679 = vmatpush.bf16.msra.mxu0 %v1928
    %2680 = vmatpush.bf16.msra.mxu0 %v1926
    %2681 = vmatpush.bf16.msra.mxu0 %v1924
    %2682 = vmatpush.bf16.msra.mxu0 %v1922
    %2683 = vmatpush.bf16.msra.mxu0 %v1920
    %2684 = vmatpush.bf16.msra.mxu0 %v1918
    %2685 = vmatpush.bf16.msra.mxu0 %v1916
    %2686 = vmatmul.bf16.gmra.mxu0 %v202
    %v2687 = vpop.f32.mrf.mxu0
    %v2688 = vadd.f32 %v2675, %v2687
    %v2689 = vpop.f32.mrf.mxu0
    %2690 = vdwg.mxu0
    %2691 = vmatpush.bf16.msra.mxu0 %v1946
    %2692 = vmatpush.bf16.msra.mxu0 %v1944
    %2693 = vmatpush.bf16.msra.mxu0 %v1942
    %2694 = vmatpush.bf16.msra.mxu0 %v1940
    %2695 = vmatpush.bf16.msra.mxu0 %v1938
    %2696 = vmatpush.bf16.msra.mxu0 %v1936
    %2697 = vmatpush.bf16.msra.mxu0 %v1934
    %2698 = vmatpush.bf16.msra.mxu0 %v1932
    %2699 = vmatmul.bf16.gmra.mxu0 %v203
    %v2700 = vpop.f32.mrf.mxu0
    %v2701 = vadd.f32 %v2688, %v2700
    %v2702 = vpop.f32.mrf.mxu0
    %2703 = vdwg.mxu0
    %2704 = vmatpush.bf16.msra.mxu0 %v1962
    %2705 = vmatpush.bf16.msra.mxu0 %v1960
    %2706 = vmatpush.bf16.msra.mxu0 %v1958
    %2707 = vmatpush.bf16.msra.mxu0 %v1956
    %2708 = vmatpush.bf16.msra.mxu0 %v1954
    %2709 = vmatpush.bf16.msra.mxu0 %v1952
    %2710 = vmatpush.bf16.msra.mxu0 %v1950
    %2711 = vmatpush.bf16.msra.mxu0 %v1948
    %2712 = vmatmul.bf16.gmra.mxu0 %v204
    %v2713 = vpop.f32.mrf.mxu0
    %v2714 = vadd.f32 %v2701, %v2713
    %v2715 = vpop.f32.mrf.mxu0
    %2716 = vdwg.mxu0
    %2717 = vmatpush.bf16.msra.mxu0 %v1978
    %2718 = vmatpush.bf16.msra.mxu0 %v1976
    %2719 = vmatpush.bf16.msra.mxu0 %v1974
    %2720 = vmatpush.bf16.msra.mxu0 %v1972
    %2721 = vmatpush.bf16.msra.mxu0 %v1970
    %2722 = vmatpush.bf16.msra.mxu0 %v1968
    %2723 = vmatpush.bf16.msra.mxu0 %v1966
    %2724 = vmatpush.bf16.msra.mxu0 %v1964
    %2725 = vmatmul.bf16.gmra.mxu0 %v205
    %v2726 = vpop.f32.mrf.mxu0
    %v2727 = vadd.f32 %v2714, %v2726
    %v2728 = vpop.f32.mrf.mxu0
    %2729 = vdwg.mxu0
    %2730 = vmatpush.bf16.msra.mxu0 %v1994
    %2731 = vmatpush.bf16.msra.mxu0 %v1992
    %2732 = vmatpush.bf16.msra.mxu0 %v1990
    %2733 = vmatpush.bf16.msra.mxu0 %v1988
    %2734 = vmatpush.bf16.msra.mxu0 %v1986
    %2735 = vmatpush.bf16.msra.mxu0 %v1984
    %2736 = vmatpush.bf16.msra.mxu0 %v1982
    %2737 = vmatpush.bf16.msra.mxu0 %v1980
    %2738 = vmatmul.bf16.gmra.mxu0 %v206
    %v2739 = vpop.f32.mrf.mxu0
    %v2740 = vadd.f32 %v2727, %v2739
    %v2741 = vpop.f32.mrf.mxu0
    %2742 = vdwg.mxu0
    %2743 = vmatpush.bf16.msra.mxu0 %v2010
    %2744 = vmatpush.bf16.msra.mxu0 %v2008
    %2745 = vmatpush.bf16.msra.mxu0 %v2006
    %2746 = vmatpush.bf16.msra.mxu0 %v2004
    %2747 = vmatpush.bf16.msra.mxu0 %v2002
    %2748 = vmatpush.bf16.msra.mxu0 %v2000
    %2749 = vmatpush.bf16.msra.mxu0 %v1998
    %2750 = vmatpush.bf16.msra.mxu0 %v1996
    %2751 = vmatmul.bf16.gmra.mxu0 %v207
    %v2752 = vpop.f32.mrf.mxu0
    %v2753 = vadd.f32 %v2740, %v2752
    %v2754 = vpop.f32.mrf.mxu0
    %2755 = vdwg.mxu0
    %2756 = vmatpush.bf16.msra.mxu0 %v2026
    %2757 = vmatpush.bf16.msra.mxu0 %v2024
    %2758 = vmatpush.bf16.msra.mxu0 %v2022
    %2759 = vmatpush.bf16.msra.mxu0 %v2020
    %2760 = vmatpush.bf16.msra.mxu0 %v2018
    %2761 = vmatpush.bf16.msra.mxu0 %v2016
    %2762 = vmatpush.bf16.msra.mxu0 %v2014
    %2763 = vmatpush.bf16.msra.mxu0 %v2012
    %2764 = vmatmul.bf16.gmra.mxu0 %v208
    %v2765 = vpop.f32.mrf.mxu0
    %v2766 = vadd.f32 %v2753, %v2765
    %v2767 = vpop.f32.mrf.mxu0
    %2768 = vdwg.mxu0
    %2769 = vmatpush.bf16.msra.mxu0 %v2042
    %2770 = vmatpush.bf16.msra.mxu0 %v2040
    %2771 = vmatpush.bf16.msra.mxu0 %v2038
    %2772 = vmatpush.bf16.msra.mxu0 %v2036
    %2773 = vmatpush.bf16.msra.mxu0 %v2034
    %2774 = vmatpush.bf16.msra.mxu0 %v2032
    %2775 = vmatpush.bf16.msra.mxu0 %v2030
    %2776 = vmatpush.bf16.msra.mxu0 %v2028
    %2777 = vmatmul.bf16.gmra.mxu0 %v209
    %v2778 = vpop.f32.mrf.mxu0
    %v2779 = vadd.f32 %v2766, %v2778
    %v2780 = vpop.f32.mrf.mxu0
    %2781 = vdwg.mxu0
    %2782 = vmatpush.bf16.msra.mxu0 %v2058
    %2783 = vmatpush.bf16.msra.mxu0 %v2056
    %2784 = vmatpush.bf16.msra.mxu0 %v2054
    %2785 = vmatpush.bf16.msra.mxu0 %v2052
    %2786 = vmatpush.bf16.msra.mxu0 %v2050
    %2787 = vmatpush.bf16.msra.mxu0 %v2048
    %2788 = vmatpush.bf16.msra.mxu0 %v2046
    %2789 = vmatpush.bf16.msra.mxu0 %v2044
    %2790 = vmatmul.bf16.gmra.mxu0 %v210
    %v2791 = vpop.f32.mrf.mxu0
    %v2792 = vadd.f32 %v2779, %v2791
    %v2793 = vpop.f32.mrf.mxu0
    %2794 = vdwg.mxu0
    %2795 = vmatpush.bf16.msra.mxu0 %v2074
    %2796 = vmatpush.bf16.msra.mxu0 %v2072
    %2797 = vmatpush.bf16.msra.mxu0 %v2070
    %2798 = vmatpush.bf16.msra.mxu0 %v2068
    %2799 = vmatpush.bf16.msra.mxu0 %v2066
    %2800 = vmatpush.bf16.msra.mxu0 %v2064
    %2801 = vmatpush.bf16.msra.mxu0 %v2062
    %2802 = vmatpush.bf16.msra.mxu0 %v2060
    %2803 = vmatmul.bf16.gmra.mxu0 %v211
    %v2804 = vpop.f32.mrf.mxu0
    %v2805 = vadd.f32 %v2792, %v2804
    %v2806 = vpop.f32.mrf.mxu0
    %2807 = vdwg.mxu0
    %2808 = vmatpush.bf16.msra.mxu0 %v2090
    %2809 = vmatpush.bf16.msra.mxu0 %v2088
    %2810 = vmatpush.bf16.msra.mxu0 %v2086
    %2811 = vmatpush.bf16.msra.mxu0 %v2084
    %2812 = vmatpush.bf16.msra.mxu0 %v2082
    %2813 = vmatpush.bf16.msra.mxu0 %v2080
    %2814 = vmatpush.bf16.msra.mxu0 %v2078
    %2815 = vmatpush.bf16.msra.mxu0 %v2076
    %2816 = vmatmul.bf16.gmra.mxu0 %v212
    %v2817 = vpop.f32.mrf.mxu0
    %v2818 = vadd.f32 %v2805, %v2817
    %v2819 = vpop.f32.mrf.mxu0
    %2820 = vdwg.mxu0
    %2821 = vmatpush.bf16.msra.mxu0 %v2106
    %2822 = vmatpush.bf16.msra.mxu0 %v2104
    %2823 = vmatpush.bf16.msra.mxu0 %v2102
    %2824 = vmatpush.bf16.msra.mxu0 %v2100
    %2825 = vmatpush.bf16.msra.mxu0 %v2098
    %2826 = vmatpush.bf16.msra.mxu0 %v2096
    %2827 = vmatpush.bf16.msra.mxu0 %v2094
    %2828 = vmatpush.bf16.msra.mxu0 %v2092
    %2829 = vmatmul.bf16.gmra.mxu0 %v213
    %v2830 = vpop.f32.mrf.mxu0
    %v2831 = vadd.f32 %v2818, %v2830
    %v2832 = vpop.f32.mrf.mxu0
    %2833 = vdwg.mxu0
    %2834 = vmatpush.bf16.msra.mxu0 %v2122
    %2835 = vmatpush.bf16.msra.mxu0 %v2120
    %2836 = vmatpush.bf16.msra.mxu0 %v2118
    %2837 = vmatpush.bf16.msra.mxu0 %v2116
    %2838 = vmatpush.bf16.msra.mxu0 %v2114
    %2839 = vmatpush.bf16.msra.mxu0 %v2112
    %2840 = vmatpush.bf16.msra.mxu0 %v2110
    %2841 = vmatpush.bf16.msra.mxu0 %v2108
    %2842 = vmatmul.bf16.gmra.mxu0 %v214
    %v2843 = vpop.f32.mrf.mxu0
    %v2844 = vadd.f32 %v2831, %v2843
    %v2845 = vpop.f32.mrf.mxu0
    %2846 = vdwg.mxu0
    %2847 = vmatpush.bf16.msra.mxu0 %v2138
    %2848 = vmatpush.bf16.msra.mxu0 %v2136
    %2849 = vmatpush.bf16.msra.mxu0 %v2134
    %2850 = vmatpush.bf16.msra.mxu0 %v2132
    %2851 = vmatpush.bf16.msra.mxu0 %v2130
    %2852 = vmatpush.bf16.msra.mxu0 %v2128
    %2853 = vmatpush.bf16.msra.mxu0 %v2126
    %2854 = vmatpush.bf16.msra.mxu0 %v2124
    %2855 = vmatmul.bf16.gmra.mxu0 %v215
    %v2856 = vpop.f32.mrf.mxu0
    %v2857 = vadd.f32 %v2844, %v2856
    %v2858 = vpop.f32.mrf.mxu0
    %2859 = vdwg.mxu0
    %2860 = vmatpush.bf16.msra.mxu0 %v2154
    %2861 = vmatpush.bf16.msra.mxu0 %v2152
    %2862 = vmatpush.bf16.msra.mxu0 %v2150
    %2863 = vmatpush.bf16.msra.mxu0 %v2148
    %2864 = vmatpush.bf16.msra.mxu0 %v2146
    %2865 = vmatpush.bf16.msra.mxu0 %v2144
    %2866 = vmatpush.bf16.msra.mxu0 %v2142
    %2867 = vmatpush.bf16.msra.mxu0 %v2140
    %2868 = vmatmul.bf16.gmra.mxu0 %v216
    %v2869 = vpop.f32.mrf.mxu0
    %v2870 = vadd.f32 %v2857, %v2869
    %v2871 = vpop.f32.mrf.mxu0
    %2872 = vdwg.mxu0
    %2873 = vmatpush.bf16.msra.mxu0 %v2170
    %2874 = vmatpush.bf16.msra.mxu0 %v2168
    %2875 = vmatpush.bf16.msra.mxu0 %v2166
    %2876 = vmatpush.bf16.msra.mxu0 %v2164
    %2877 = vmatpush.bf16.msra.mxu0 %v2162
    %2878 = vmatpush.bf16.msra.mxu0 %v2160
    %2879 = vmatpush.bf16.msra.mxu0 %v2158
    %2880 = vmatpush.bf16.msra.mxu0 %v2156
    %2881 = vmatmul.bf16.gmra.mxu0 %v217
    %v2882 = vpop.f32.mrf.mxu0
    %v2883 = vadd.f32 %v2870, %v2882
    %v2884 = vpop.f32.mrf.mxu0
    %2885 = vdwg.mxu0
    %2886 = vmatpush.bf16.msra.mxu0 %v2186
    %2887 = vmatpush.bf16.msra.mxu0 %v2184
    %2888 = vmatpush.bf16.msra.mxu0 %v2182
    %2889 = vmatpush.bf16.msra.mxu0 %v2180
    %2890 = vmatpush.bf16.msra.mxu0 %v2178
    %2891 = vmatpush.bf16.msra.mxu0 %v2176
    %2892 = vmatpush.bf16.msra.mxu0 %v2174
    %2893 = vmatpush.bf16.msra.mxu0 %v2172
    %2894 = vmatmul.bf16.gmra.mxu0 %v218
    %v2895 = vpop.f32.mrf.mxu0
    %v2896 = vadd.f32 %v2883, %v2895
    %v2897 = vpop.f32.mrf.mxu0
    %2898 = vdwg.mxu0
    %2899 = vmatpush.bf16.msra.mxu0 %v2202
    %2900 = vmatpush.bf16.msra.mxu0 %v2200
    %2901 = vmatpush.bf16.msra.mxu0 %v2198
    %2902 = vmatpush.bf16.msra.mxu0 %v2196
    %2903 = vmatpush.bf16.msra.mxu0 %v2194
    %2904 = vmatpush.bf16.msra.mxu0 %v2192
    %2905 = vmatpush.bf16.msra.mxu0 %v2190
    %2906 = vmatpush.bf16.msra.mxu0 %v2188
    %2907 = vmatmul.bf16.gmra.mxu0 %v219
    %v2908 = vpop.f32.mrf.mxu0
    %v2909 = vadd.f32 %v2896, %v2908
    %v2910 = vpop.f32.mrf.mxu0
    %2911 = vdwg.mxu0
    %2912 = vmatpush.bf16.msra.mxu0 %v2218
    %2913 = vmatpush.bf16.msra.mxu0 %v2216
    %2914 = vmatpush.bf16.msra.mxu0 %v2214
    %2915 = vmatpush.bf16.msra.mxu0 %v2212
    %2916 = vmatpush.bf16.msra.mxu0 %v2210
    %2917 = vmatpush.bf16.msra.mxu0 %v2208
    %2918 = vmatpush.bf16.msra.mxu0 %v2206
    %2919 = vmatpush.bf16.msra.mxu0 %v2204
    %2920 = vmatmul.bf16.gmra.mxu0 %v220
    %v2921 = vpop.f32.mrf.mxu0
    %v2922 = vadd.f32 %v2909, %v2921
    %v2923 = vpop.f32.mrf.mxu0
    %2924 = vdwg.mxu0
    %2925 = vmatpush.bf16.msra.mxu0 %v2234
    %2926 = vmatpush.bf16.msra.mxu0 %v2232
    %2927 = vmatpush.bf16.msra.mxu0 %v2230
    %2928 = vmatpush.bf16.msra.mxu0 %v2228
    %2929 = vmatpush.bf16.msra.mxu0 %v2226
    %2930 = vmatpush.bf16.msra.mxu0 %v2224
    %2931 = vmatpush.bf16.msra.mxu0 %v2222
    %2932 = vmatpush.bf16.msra.mxu0 %v2220
    %2933 = vmatmul.bf16.gmra.mxu0 %v221
    %v2934 = vpop.f32.mrf.mxu0
    %v2935 = vadd.f32 %v2922, %v2934
    %v2936 = vpop.f32.mrf.mxu0
    %2937 = vdwg.mxu0
    %2938 = vmatpush.bf16.msra.mxu0 %v2250
    %2939 = vmatpush.bf16.msra.mxu0 %v2248
    %2940 = vmatpush.bf16.msra.mxu0 %v2246
    %2941 = vmatpush.bf16.msra.mxu0 %v2244
    %2942 = vmatpush.bf16.msra.mxu0 %v2242
    %2943 = vmatpush.bf16.msra.mxu0 %v2240
    %2944 = vmatpush.bf16.msra.mxu0 %v2238
    %2945 = vmatpush.bf16.msra.mxu0 %v2236
    %2946 = vmatmul.bf16.gmra.mxu0 %v222
    %v2947 = vpop.f32.mrf.mxu0
    %v2948 = vadd.f32 %v2935, %v2947
    %v2949 = vpop.f32.mrf.mxu0
    %2950 = vdwg.mxu0
    %2951 = vmatpush.bf16.msra.mxu0 %v2266
    %2952 = vmatpush.bf16.msra.mxu0 %v2264
    %2953 = vmatpush.bf16.msra.mxu0 %v2262
    %2954 = vmatpush.bf16.msra.mxu0 %v2260
    %2955 = vmatpush.bf16.msra.mxu0 %v2258
    %2956 = vmatpush.bf16.msra.mxu0 %v2256
    %2957 = vmatpush.bf16.msra.mxu0 %v2254
    %2958 = vmatpush.bf16.msra.mxu0 %v2252
    %2959 = vmatmul.bf16.gmra.mxu0 %v223
    %v2960 = vpop.f32.mrf.mxu0
    %v2961 = vadd.f32 %v2948, %v2960
    %v2962 = vpop.f32.mrf.mxu0
    %2963 = vdwg.mxu0
    %2964 = vmatpush.bf16.msra.mxu0 %v1899
    %2965 = vmatpush.bf16.msra.mxu0 %v1897
    %2966 = vmatpush.bf16.msra.mxu0 %v1895
    %2967 = vmatpush.bf16.msra.mxu0 %v1893
    %2968 = vmatpush.bf16.msra.mxu0 %v1891
    %2969 = vmatpush.bf16.msra.mxu0 %v1889
    %2970 = vmatpush.bf16.msra.mxu0 %v1887
    %2971 = vmatpush.bf16.msra.mxu0 %v1885
    %2972 = vmatmul.bf16.gmra.mxu0 %v200
    %v2973 = vpop.f32.mrf.mxu0
    %v2974 = vadd.f32 %v729, %v2973
    %v2975 = vpop.f32.mrf.mxu0
    %2976 = vdwg.mxu0
    %2977 = vmatpush.bf16.msra.mxu0 %v1915
    %2978 = vmatpush.bf16.msra.mxu0 %v1913
    %2979 = vmatpush.bf16.msra.mxu0 %v1911
    %2980 = vmatpush.bf16.msra.mxu0 %v1909
    %2981 = vmatpush.bf16.msra.mxu0 %v1907
    %2982 = vmatpush.bf16.msra.mxu0 %v1905
    %2983 = vmatpush.bf16.msra.mxu0 %v1903
    %2984 = vmatpush.bf16.msra.mxu0 %v1901
    %2985 = vmatmul.bf16.gmra.mxu0 %v201
    %v2986 = vpop.f32.mrf.mxu0
    %v2987 = vadd.f32 %v2974, %v2986
    %v2988 = vpop.f32.mrf.mxu0
    %2989 = vdwg.mxu0
    %2990 = vmatpush.bf16.msra.mxu0 %v1931
    %2991 = vmatpush.bf16.msra.mxu0 %v1929
    %2992 = vmatpush.bf16.msra.mxu0 %v1927
    %2993 = vmatpush.bf16.msra.mxu0 %v1925
    %2994 = vmatpush.bf16.msra.mxu0 %v1923
    %2995 = vmatpush.bf16.msra.mxu0 %v1921
    %2996 = vmatpush.bf16.msra.mxu0 %v1919
    %2997 = vmatpush.bf16.msra.mxu0 %v1917
    %2998 = vmatmul.bf16.gmra.mxu0 %v202
    %v2999 = vpop.f32.mrf.mxu0
    %v3000 = vadd.f32 %v2987, %v2999
    %v3001 = vpop.f32.mrf.mxu0
    %3002 = vdwg.mxu0
    %3003 = vmatpush.bf16.msra.mxu0 %v1947
    %3004 = vmatpush.bf16.msra.mxu0 %v1945
    %3005 = vmatpush.bf16.msra.mxu0 %v1943
    %3006 = vmatpush.bf16.msra.mxu0 %v1941
    %3007 = vmatpush.bf16.msra.mxu0 %v1939
    %3008 = vmatpush.bf16.msra.mxu0 %v1937
    %3009 = vmatpush.bf16.msra.mxu0 %v1935
    %3010 = vmatpush.bf16.msra.mxu0 %v1933
    %3011 = vmatmul.bf16.gmra.mxu0 %v203
    %v3012 = vpop.f32.mrf.mxu0
    %v3013 = vadd.f32 %v3000, %v3012
    %v3014 = vpop.f32.mrf.mxu0
    %3015 = vdwg.mxu0
    %3016 = vmatpush.bf16.msra.mxu0 %v1963
    %3017 = vmatpush.bf16.msra.mxu0 %v1961
    %3018 = vmatpush.bf16.msra.mxu0 %v1959
    %3019 = vmatpush.bf16.msra.mxu0 %v1957
    %3020 = vmatpush.bf16.msra.mxu0 %v1955
    %3021 = vmatpush.bf16.msra.mxu0 %v1953
    %3022 = vmatpush.bf16.msra.mxu0 %v1951
    %3023 = vmatpush.bf16.msra.mxu0 %v1949
    %3024 = vmatmul.bf16.gmra.mxu0 %v204
    %v3025 = vpop.f32.mrf.mxu0
    %v3026 = vadd.f32 %v3013, %v3025
    %v3027 = vpop.f32.mrf.mxu0
    %3028 = vdwg.mxu0
    %3029 = vmatpush.bf16.msra.mxu0 %v1979
    %3030 = vmatpush.bf16.msra.mxu0 %v1977
    %3031 = vmatpush.bf16.msra.mxu0 %v1975
    %3032 = vmatpush.bf16.msra.mxu0 %v1973
    %3033 = vmatpush.bf16.msra.mxu0 %v1971
    %3034 = vmatpush.bf16.msra.mxu0 %v1969
    %3035 = vmatpush.bf16.msra.mxu0 %v1967
    %3036 = vmatpush.bf16.msra.mxu0 %v1965
    %3037 = vmatmul.bf16.gmra.mxu0 %v205
    %v3038 = vpop.f32.mrf.mxu0
    %v3039 = vadd.f32 %v3026, %v3038
    %v3040 = vpop.f32.mrf.mxu0
    %3041 = vdwg.mxu0
    %3042 = vmatpush.bf16.msra.mxu0 %v1995
    %3043 = vmatpush.bf16.msra.mxu0 %v1993
    %3044 = vmatpush.bf16.msra.mxu0 %v1991
    %3045 = vmatpush.bf16.msra.mxu0 %v1989
    %3046 = vmatpush.bf16.msra.mxu0 %v1987
    %3047 = vmatpush.bf16.msra.mxu0 %v1985
    %3048 = vmatpush.bf16.msra.mxu0 %v1983
    %3049 = vmatpush.bf16.msra.mxu0 %v1981
    %3050 = vmatmul.bf16.gmra.mxu0 %v206
    %v3051 = vpop.f32.mrf.mxu0
    %v3052 = vadd.f32 %v3039, %v3051
    %v3053 = vpop.f32.mrf.mxu0
    %3054 = vdwg.mxu0
    %3055 = vmatpush.bf16.msra.mxu0 %v2011
    %3056 = vmatpush.bf16.msra.mxu0 %v2009
    %3057 = vmatpush.bf16.msra.mxu0 %v2007
    %3058 = vmatpush.bf16.msra.mxu0 %v2005
    %3059 = vmatpush.bf16.msra.mxu0 %v2003
    %3060 = vmatpush.bf16.msra.mxu0 %v2001
    %3061 = vmatpush.bf16.msra.mxu0 %v1999
    %3062 = vmatpush.bf16.msra.mxu0 %v1997
    %3063 = vmatmul.bf16.gmra.mxu0 %v207
    %v3064 = vpop.f32.mrf.mxu0
    %v3065 = vadd.f32 %v3052, %v3064
    %v3066 = vpop.f32.mrf.mxu0
    %3067 = vdwg.mxu0
    %3068 = vmatpush.bf16.msra.mxu0 %v2027
    %3069 = vmatpush.bf16.msra.mxu0 %v2025
    %3070 = vmatpush.bf16.msra.mxu0 %v2023
    %3071 = vmatpush.bf16.msra.mxu0 %v2021
    %3072 = vmatpush.bf16.msra.mxu0 %v2019
    %3073 = vmatpush.bf16.msra.mxu0 %v2017
    %3074 = vmatpush.bf16.msra.mxu0 %v2015
    %3075 = vmatpush.bf16.msra.mxu0 %v2013
    %3076 = vmatmul.bf16.gmra.mxu0 %v208
    %v3077 = vpop.f32.mrf.mxu0
    %v3078 = vadd.f32 %v3065, %v3077
    %v3079 = vpop.f32.mrf.mxu0
    %3080 = vdwg.mxu0
    %3081 = vmatpush.bf16.msra.mxu0 %v2043
    %3082 = vmatpush.bf16.msra.mxu0 %v2041
    %3083 = vmatpush.bf16.msra.mxu0 %v2039
    %3084 = vmatpush.bf16.msra.mxu0 %v2037
    %3085 = vmatpush.bf16.msra.mxu0 %v2035
    %3086 = vmatpush.bf16.msra.mxu0 %v2033
    %3087 = vmatpush.bf16.msra.mxu0 %v2031
    %3088 = vmatpush.bf16.msra.mxu0 %v2029
    %3089 = vmatmul.bf16.gmra.mxu0 %v209
    %v3090 = vpop.f32.mrf.mxu0
    %v3091 = vadd.f32 %v3078, %v3090
    %v3092 = vpop.f32.mrf.mxu0
    %3093 = vdwg.mxu0
    %3094 = vmatpush.bf16.msra.mxu0 %v2059
    %3095 = vmatpush.bf16.msra.mxu0 %v2057
    %3096 = vmatpush.bf16.msra.mxu0 %v2055
    %3097 = vmatpush.bf16.msra.mxu0 %v2053
    %3098 = vmatpush.bf16.msra.mxu0 %v2051
    %3099 = vmatpush.bf16.msra.mxu0 %v2049
    %3100 = vmatpush.bf16.msra.mxu0 %v2047
    %3101 = vmatpush.bf16.msra.mxu0 %v2045
    %3102 = vmatmul.bf16.gmra.mxu0 %v210
    %v3103 = vpop.f32.mrf.mxu0
    %v3104 = vadd.f32 %v3091, %v3103
    %v3105 = vpop.f32.mrf.mxu0
    %3106 = vdwg.mxu0
    %3107 = vmatpush.bf16.msra.mxu0 %v2075
    %3108 = vmatpush.bf16.msra.mxu0 %v2073
    %3109 = vmatpush.bf16.msra.mxu0 %v2071
    %3110 = vmatpush.bf16.msra.mxu0 %v2069
    %3111 = vmatpush.bf16.msra.mxu0 %v2067
    %3112 = vmatpush.bf16.msra.mxu0 %v2065
    %3113 = vmatpush.bf16.msra.mxu0 %v2063
    %3114 = vmatpush.bf16.msra.mxu0 %v2061
    %3115 = vmatmul.bf16.gmra.mxu0 %v211
    %v3116 = vpop.f32.mrf.mxu0
    %v3117 = vadd.f32 %v3104, %v3116
    %v3118 = vpop.f32.mrf.mxu0
    %3119 = vdwg.mxu0
    %3120 = vmatpush.bf16.msra.mxu0 %v2091
    %3121 = vmatpush.bf16.msra.mxu0 %v2089
    %3122 = vmatpush.bf16.msra.mxu0 %v2087
    %3123 = vmatpush.bf16.msra.mxu0 %v2085
    %3124 = vmatpush.bf16.msra.mxu0 %v2083
    %3125 = vmatpush.bf16.msra.mxu0 %v2081
    %3126 = vmatpush.bf16.msra.mxu0 %v2079
    %3127 = vmatpush.bf16.msra.mxu0 %v2077
    %3128 = vmatmul.bf16.gmra.mxu0 %v212
    %v3129 = vpop.f32.mrf.mxu0
    %v3130 = vadd.f32 %v3117, %v3129
    %v3131 = vpop.f32.mrf.mxu0
    %3132 = vdwg.mxu0
    %3133 = vmatpush.bf16.msra.mxu0 %v2107
    %3134 = vmatpush.bf16.msra.mxu0 %v2105
    %3135 = vmatpush.bf16.msra.mxu0 %v2103
    %3136 = vmatpush.bf16.msra.mxu0 %v2101
    %3137 = vmatpush.bf16.msra.mxu0 %v2099
    %3138 = vmatpush.bf16.msra.mxu0 %v2097
    %3139 = vmatpush.bf16.msra.mxu0 %v2095
    %3140 = vmatpush.bf16.msra.mxu0 %v2093
    %3141 = vmatmul.bf16.gmra.mxu0 %v213
    %v3142 = vpop.f32.mrf.mxu0
    %v3143 = vadd.f32 %v3130, %v3142
    %v3144 = vpop.f32.mrf.mxu0
    %3145 = vdwg.mxu0
    %3146 = vmatpush.bf16.msra.mxu0 %v2123
    %3147 = vmatpush.bf16.msra.mxu0 %v2121
    %3148 = vmatpush.bf16.msra.mxu0 %v2119
    %3149 = vmatpush.bf16.msra.mxu0 %v2117
    %3150 = vmatpush.bf16.msra.mxu0 %v2115
    %3151 = vmatpush.bf16.msra.mxu0 %v2113
    %3152 = vmatpush.bf16.msra.mxu0 %v2111
    %3153 = vmatpush.bf16.msra.mxu0 %v2109
    %3154 = vmatmul.bf16.gmra.mxu0 %v214
    %v3155 = vpop.f32.mrf.mxu0
    %v3156 = vadd.f32 %v3143, %v3155
    %v3157 = vpop.f32.mrf.mxu0
    %3158 = vdwg.mxu0
    %3159 = vmatpush.bf16.msra.mxu0 %v2139
    %3160 = vmatpush.bf16.msra.mxu0 %v2137
    %3161 = vmatpush.bf16.msra.mxu0 %v2135
    %3162 = vmatpush.bf16.msra.mxu0 %v2133
    %3163 = vmatpush.bf16.msra.mxu0 %v2131
    %3164 = vmatpush.bf16.msra.mxu0 %v2129
    %3165 = vmatpush.bf16.msra.mxu0 %v2127
    %3166 = vmatpush.bf16.msra.mxu0 %v2125
    %3167 = vmatmul.bf16.gmra.mxu0 %v215
    %v3168 = vpop.f32.mrf.mxu0
    %v3169 = vadd.f32 %v3156, %v3168
    %v3170 = vpop.f32.mrf.mxu0
    %3171 = vdwg.mxu0
    %3172 = vmatpush.bf16.msra.mxu0 %v2155
    %3173 = vmatpush.bf16.msra.mxu0 %v2153
    %3174 = vmatpush.bf16.msra.mxu0 %v2151
    %3175 = vmatpush.bf16.msra.mxu0 %v2149
    %3176 = vmatpush.bf16.msra.mxu0 %v2147
    %3177 = vmatpush.bf16.msra.mxu0 %v2145
    %3178 = vmatpush.bf16.msra.mxu0 %v2143
    %3179 = vmatpush.bf16.msra.mxu0 %v2141
    %3180 = vmatmul.bf16.gmra.mxu0 %v216
    %v3181 = vpop.f32.mrf.mxu0
    %v3182 = vadd.f32 %v3169, %v3181
    %v3183 = vpop.f32.mrf.mxu0
    %3184 = vdwg.mxu0
    %3185 = vmatpush.bf16.msra.mxu0 %v2171
    %3186 = vmatpush.bf16.msra.mxu0 %v2169
    %3187 = vmatpush.bf16.msra.mxu0 %v2167
    %3188 = vmatpush.bf16.msra.mxu0 %v2165
    %3189 = vmatpush.bf16.msra.mxu0 %v2163
    %3190 = vmatpush.bf16.msra.mxu0 %v2161
    %3191 = vmatpush.bf16.msra.mxu0 %v2159
    %3192 = vmatpush.bf16.msra.mxu0 %v2157
    %3193 = vmatmul.bf16.gmra.mxu0 %v217
    %v3194 = vpop.f32.mrf.mxu0
    %v3195 = vadd.f32 %v3182, %v3194
    %v3196 = vpop.f32.mrf.mxu0
    %3197 = vdwg.mxu0
    %3198 = vmatpush.bf16.msra.mxu0 %v2187
    %3199 = vmatpush.bf16.msra.mxu0 %v2185
    %3200 = vmatpush.bf16.msra.mxu0 %v2183
    %3201 = vmatpush.bf16.msra.mxu0 %v2181
    %3202 = vmatpush.bf16.msra.mxu0 %v2179
    %3203 = vmatpush.bf16.msra.mxu0 %v2177
    %3204 = vmatpush.bf16.msra.mxu0 %v2175
    %3205 = vmatpush.bf16.msra.mxu0 %v2173
    %3206 = vmatmul.bf16.gmra.mxu0 %v218
    %v3207 = vpop.f32.mrf.mxu0
    %v3208 = vadd.f32 %v3195, %v3207
    %v3209 = vpop.f32.mrf.mxu0
    %3210 = vdwg.mxu0
    %3211 = vmatpush.bf16.msra.mxu0 %v2203
    %3212 = vmatpush.bf16.msra.mxu0 %v2201
    %3213 = vmatpush.bf16.msra.mxu0 %v2199
    %3214 = vmatpush.bf16.msra.mxu0 %v2197
    %3215 = vmatpush.bf16.msra.mxu0 %v2195
    %3216 = vmatpush.bf16.msra.mxu0 %v2193
    %3217 = vmatpush.bf16.msra.mxu0 %v2191
    %3218 = vmatpush.bf16.msra.mxu0 %v2189
    %3219 = vmatmul.bf16.gmra.mxu0 %v219
    %v3220 = vpop.f32.mrf.mxu0
    %v3221 = vadd.f32 %v3208, %v3220
    %v3222 = vpop.f32.mrf.mxu0
    %3223 = vdwg.mxu0
    %3224 = vmatpush.bf16.msra.mxu0 %v2219
    %3225 = vmatpush.bf16.msra.mxu0 %v2217
    %3226 = vmatpush.bf16.msra.mxu0 %v2215
    %3227 = vmatpush.bf16.msra.mxu0 %v2213
    %3228 = vmatpush.bf16.msra.mxu0 %v2211
    %3229 = vmatpush.bf16.msra.mxu0 %v2209
    %3230 = vmatpush.bf16.msra.mxu0 %v2207
    %3231 = vmatpush.bf16.msra.mxu0 %v2205
    %3232 = vmatmul.bf16.gmra.mxu0 %v220
    %v3233 = vpop.f32.mrf.mxu0
    %v3234 = vadd.f32 %v3221, %v3233
    %v3235 = vpop.f32.mrf.mxu0
    %3236 = vdwg.mxu0
    %3237 = vmatpush.bf16.msra.mxu0 %v2235
    %3238 = vmatpush.bf16.msra.mxu0 %v2233
    %3239 = vmatpush.bf16.msra.mxu0 %v2231
    %3240 = vmatpush.bf16.msra.mxu0 %v2229
    %3241 = vmatpush.bf16.msra.mxu0 %v2227
    %3242 = vmatpush.bf16.msra.mxu0 %v2225
    %3243 = vmatpush.bf16.msra.mxu0 %v2223
    %3244 = vmatpush.bf16.msra.mxu0 %v2221
    %3245 = vmatmul.bf16.gmra.mxu0 %v221
    %v3246 = vpop.f32.mrf.mxu0
    %v3247 = vadd.f32 %v3234, %v3246
    %v3248 = vpop.f32.mrf.mxu0
    %3249 = vdwg.mxu0
    %3250 = vmatpush.bf16.msra.mxu0 %v2251
    %3251 = vmatpush.bf16.msra.mxu0 %v2249
    %3252 = vmatpush.bf16.msra.mxu0 %v2247
    %3253 = vmatpush.bf16.msra.mxu0 %v2245
    %3254 = vmatpush.bf16.msra.mxu0 %v2243
    %3255 = vmatpush.bf16.msra.mxu0 %v2241
    %3256 = vmatpush.bf16.msra.mxu0 %v2239
    %3257 = vmatpush.bf16.msra.mxu0 %v2237
    %3258 = vmatmul.bf16.gmra.mxu0 %v222
    %v3259 = vpop.f32.mrf.mxu0
    %v3260 = vadd.f32 %v3247, %v3259
    %v3261 = vpop.f32.mrf.mxu0
    %3262 = vdwg.mxu0
    %3263 = vmatpush.bf16.msra.mxu0 %v2267
    %3264 = vmatpush.bf16.msra.mxu0 %v2265
    %3265 = vmatpush.bf16.msra.mxu0 %v2263
    %3266 = vmatpush.bf16.msra.mxu0 %v2261
    %3267 = vmatpush.bf16.msra.mxu0 %v2259
    %3268 = vmatpush.bf16.msra.mxu0 %v2257
    %3269 = vmatpush.bf16.msra.mxu0 %v2255
    %3270 = vmatpush.bf16.msra.mxu0 %v2253
    %3271 = vmatmul.bf16.gmra.mxu0 %v223
    %v3272 = vpop.f32.mrf.mxu0
    %v3273 = vadd.f32 %v3260, %v3272
    %v3274 = vpop.f32.mrf.mxu0
    %3275 = vdwg.mxu0
    %v3276 = vld [vmem:[%s0] sm:$0xff]
    %v3277 = vld [vmem:[#allocation3] sm:$0x3]
    %3279 = vset.pattern.permute.xlu0 0
    %3280 = vperm.xlu0 %3279, %v3276
    %v3281 = vpop.permute.xlu0 %3280
    %v3284 = vperm.slane %v3277, 0
    %v3285 = vperm.slane %v3277, 1
    %v3288 = vmul.f32 %v3281, %v3284
    %v3289 = vmul.f32 %v3281, %v3285
    %v3290 = vadd.f32 %v2961, %v3288
    %v3291 = vadd.f32 %v3273, %v3289
    %v3292 = vld [vmem:[#allocation8] sm:$0x3]
    %v3294 = vperm.slane %v3292, 0
    %v3295 = vperm.slane %v3292, 1
    %v3298 = vadd.f32 %v3290, %v3294
    %v3299 = vadd.f32 %v3291, %v3295
    %vm3300 = vcmp.gt.f32.partialorder %v3298, 0.0
    %vm3301 = vcmp.gt.f32.partialorder %v3299, 0.0
    %v3302 = vmul.f32 %v3298, 0.01
    %v3303 = vmul.f32 %v3299, 0.01
    %v3304 = vsel %vm3300, %v3298, %v3302
    %v3305 = vsel %vm3301, %v3299, %v3303
    %v3306 = vpack.c.bf16 %v3304, %v3304
    %v3307 = vpack.c.bf16 %v3305, %v3305
    %v3308 = vld [vmem:[#allocation10] sm:$0xf]
    %v3309 = vld [vmem:[#allocation10 + $0x4] sm:$0xf]
    %v3310 = vld [vmem:[#allocation10 + $0x8] sm:$0xf]
    %v3311 = vld [vmem:[#allocation10 + $0xc] sm:$0xf]
    %v3312 = vld [vmem:[#allocation10 + $0x10] sm:$0xf]
    %v3313 = vld [vmem:[#allocation10 + $0x14] sm:$0xf]
    %v3314 = vld [vmem:[#allocation10 + $0x18] sm:$0xf]
    %v3315 = vld [vmem:[#allocation10 + $0x1c] sm:$0xf]
    %v3316 = vld [vmem:[#allocation10 + $0x20] sm:$0xf]
    %v3317 = vld [vmem:[#allocation10 + $0x24] sm:$0xf]
    %v3318 = vld [vmem:[#allocation10 + $0x28] sm:$0xf]
    %v3319 = vld [vmem:[#allocation10 + $0x2c] sm:$0xf]
    %v3320 = vld [vmem:[#allocation10 + $0x30] sm:$0xf]
    %v3321 = vld [vmem:[#allocation10 + $0x34] sm:$0xf]
    %v3322 = vld [vmem:[#allocation10 + $0x38] sm:$0xf]
    %v3323 = vld [vmem:[#allocation10 + $0x3c] sm:$0xf]
    %v3324 = vld [vmem:[#allocation10 + $0x40] sm:$0xf]
    %v3325 = vld [vmem:[#allocation10 + $0x44] sm:$0xf]
    %v3326 = vld [vmem:[#allocation10 + $0x48] sm:$0xf]
    %v3327 = vld [vmem:[#allocation10 + $0x4c] sm:$0xf]
    %v3328 = vld [vmem:[#allocation10 + $0x50] sm:$0xf]
    %v3329 = vld [vmem:[#allocation10 + $0x54] sm:$0xf]
    %v3330 = vld [vmem:[#allocation10 + $0x58] sm:$0xf]
    %v3331 = vld [vmem:[#allocation10 + $0x5c] sm:$0xf]
    %v3332 = vld [vmem:[#allocation10 + $0x60] sm:$0xf]
    %v3333 = vld [vmem:[#allocation10 + $0x64] sm:$0xf]
    %v3334 = vld [vmem:[#allocation10 + $0x68] sm:$0xf]
    %v3335 = vld [vmem:[#allocation10 + $0x6c] sm:$0xf]
    %v3336 = vld [vmem:[#allocation10 + $0x70] sm:$0xf]
    %v3337 = vld [vmem:[#allocation10 + $0x74] sm:$0xf]
    %v3338 = vld [vmem:[#allocation10 + $0x78] sm:$0xf]
    %v3339 = vld [vmem:[#allocation10 + $0x7c] sm:$0xf]
    %v3340 = vld [vmem:[#allocation11] sm:$0x1]
    %v3342 = vperm.slane %v3340, 0
    %v3376 = vunpack.c.l.b16 %v3308
    %v3377 = vunpack.c.l.b16 %v3309
    %v3378 = vunpack.c.l.b16 %v3310
    %v3379 = vunpack.c.l.b16 %v3311
    %v3380 = vunpack.c.l.b16 %v3312
    %v3381 = vunpack.c.l.b16 %v3313
    %v3382 = vunpack.c.l.b16 %v3314
    %v3383 = vunpack.c.l.b16 %v3315
    %v3384 = vunpack.c.l.b16 %v3316
    %v3385 = vunpack.c.l.b16 %v3317
    %v3386 = vunpack.c.l.b16 %v3318
    %v3387 = vunpack.c.l.b16 %v3319
    %v3388 = vunpack.c.l.b16 %v3320
    %v3389 = vunpack.c.l.b16 %v3321
    %v3390 = vunpack.c.l.b16 %v3322
    %v3391 = vunpack.c.l.b16 %v3323
    %v3392 = vunpack.c.l.b16 %v3324
    %v3393 = vunpack.c.l.b16 %v3325
    %v3394 = vunpack.c.l.b16 %v3326
    %v3395 = vunpack.c.l.b16 %v3327
    %v3396 = vunpack.c.l.b16 %v3328
    %v3397 = vunpack.c.l.b16 %v3329
    %v3398 = vunpack.c.l.b16 %v3330
    %v3399 = vunpack.c.l.b16 %v3331
    %v3400 = vunpack.c.l.b16 %v3332
    %v3401 = vunpack.c.l.b16 %v3333
    %v3402 = vunpack.c.l.b16 %v3334
    %v3403 = vunpack.c.l.b16 %v3335
    %v3404 = vunpack.c.l.b16 %v3336
    %v3405 = vunpack.c.l.b16 %v3337
    %v3406 = vunpack.c.l.b16 %v3338
    %v3407 = vunpack.c.l.b16 %v3339
    %v3408 = vpack.c.b16 %v3377, %v3376
    %v3409 = vpack.c.b16 %v3379, %v3378
    %v3410 = vpack.c.b16 %v3381, %v3380
    %v3411 = vpack.c.b16 %v3383, %v3382
    %v3412 = vpack.c.b16 %v3385, %v3384
    %v3413 = vpack.c.b16 %v3387, %v3386
    %v3414 = vpack.c.b16 %v3389, %v3388
    %v3415 = vpack.c.b16 %v3391, %v3390
    %v3416 = vpack.c.b16 %v3393, %v3392
    %v3417 = vpack.c.b16 %v3395, %v3394
    %v3418 = vpack.c.b16 %v3397, %v3396
    %v3419 = vpack.c.b16 %v3399, %v3398
    %v3420 = vpack.c.b16 %v3401, %v3400
    %v3421 = vpack.c.b16 %v3403, %v3402
    %v3422 = vpack.c.b16 %v3405, %v3404
    %v3423 = vpack.c.b16 %v3407, %v3406
    %3440 = vmatpush.bf16.msra.mxu0 %v3415
    %3441 = vmatpush.bf16.msra.mxu0 %v3414
    %3442 = vmatpush.bf16.msra.mxu0 %v3413
    %3443 = vmatpush.bf16.msra.mxu0 %v3412
    %3444 = vmatpush.bf16.msra.mxu0 %v3411
    %3445 = vmatpush.bf16.msra.mxu0 %v3410
    %3446 = vmatpush.bf16.msra.mxu0 %v3409
    %3447 = vmatpush.bf16.msra.mxu0 %v3408
    %3448 = vmatmul.bf16.gmra.mxu0 %v3306
    %v3449 = vpop.f32.mrf.mxu0
    %v3450 = vadd.f32 %v3342, %v3449
    %v3451 = vpop.f32.mrf.mxu0
    %3452 = vdwg.mxu0
    %3453 = vmatpush.bf16.msra.mxu0 %v3423
    %3454 = vmatpush.bf16.msra.mxu0 %v3422
    %3455 = vmatpush.bf16.msra.mxu0 %v3421
    %3456 = vmatpush.bf16.msra.mxu0 %v3420
    %3457 = vmatpush.bf16.msra.mxu0 %v3419
    %3458 = vmatpush.bf16.msra.mxu0 %v3418
    %3459 = vmatpush.bf16.msra.mxu0 %v3417
    %3460 = vmatpush.bf16.msra.mxu0 %v3416
    %3461 = vmatmul.bf16.gmra.mxu0 %v3307
    %v3462 = vpop.f32.mrf.mxu0
    %v3463 = vadd.f32 %v3450, %v3462
    %v3464 = vpop.f32.mrf.mxu0
    %3465 = vdwg.mxu0
    %vm3466 = vcmp.gt.f32.partialorder %v3463, 0.0
    %v3467 = vmul.f32 %v3463, 0.01
    %v3468 = vsel %vm3466, %v3463, %v3467
    %v3469 = vpack.c.bf16 %v3468, %v3468
    %v3470 = vld [vmem:[#allocation13] sm:$0xff]
    %v3471 = vld [vmem:[#allocation13 + $0x8] sm:$0xff]
    %v3472 = vld [vmem:[#allocation13 + $0x10] sm:$0xff]
    %v3473 = vld [vmem:[#allocation13 + $0x18] sm:$0xff]
    %v3474 = vld [vmem:[#allocation13 + $0x20] sm:$0xff]
    %v3475 = vld [vmem:[#allocation13 + $0x28] sm:$0xff]
    %v3476 = vld [vmem:[#allocation13 + $0x30] sm:$0xff]
    %v3477 = vld [vmem:[#allocation13 + $0x38] sm:$0xff]
    %v3478 = vld [vmem:[#allocation13 + $0x40] sm:$0xff]
    %v3479 = vld [vmem:[#allocation13 + $0x48] sm:$0xff]
    %v3480 = vld [vmem:[#allocation13 + $0x50] sm:$0xff]
    %v3481 = vld [vmem:[#allocation13 + $0x58] sm:$0xff]
    %v3482 = vld [vmem:[#allocation13 + $0x60] sm:$0xff]
    %v3483 = vld [vmem:[#allocation13 + $0x68] sm:$0xff]
    %v3484 = vld [vmem:[#allocation13 + $0x70] sm:$0xff]
    %v3485 = vld [vmem:[#allocation13 + $0x78] sm:$0xff]
    %v3486 = vld [vmem:[#allocation14] sm:$0x3]
    %v3488 = vperm.slane %v3486, 0
    %v3489 = vperm.slane %v3486, 1
    %v3508 = vunpack.c.l.b16 %v3470
    %v3509 = vunpack.c.h.b16 %v3470
    %v3510 = vunpack.c.l.b16 %v3471
    %v3511 = vunpack.c.h.b16 %v3471
    %v3512 = vunpack.c.l.b16 %v3472
    %v3513 = vunpack.c.h.b16 %v3472
    %v3514 = vunpack.c.l.b16 %v3473
    %v3515 = vunpack.c.h.b16 %v3473
    %v3516 = vunpack.c.l.b16 %v3474
    %v3517 = vunpack.c.h.b16 %v3474
    %v3518 = vunpack.c.l.b16 %v3475
    %v3519 = vunpack.c.h.b16 %v3475
    %v3520 = vunpack.c.l.b16 %v3476
    %v3521 = vunpack.c.h.b16 %v3476
    %v3522 = vunpack.c.l.b16 %v3477
    %v3523 = vunpack.c.h.b16 %v3477
    %v3524 = vunpack.c.l.b16 %v3478
    %v3525 = vunpack.c.h.b16 %v3478
    %v3526 = vunpack.c.l.b16 %v3479
    %v3527 = vunpack.c.h.b16 %v3479
    %v3528 = vunpack.c.l.b16 %v3480
    %v3529 = vunpack.c.h.b16 %v3480
    %v3530 = vunpack.c.l.b16 %v3481
    %v3531 = vunpack.c.h.b16 %v3481
    %v3532 = vunpack.c.l.b16 %v3482
    %v3533 = vunpack.c.h.b16 %v3482
    %v3534 = vunpack.c.l.b16 %v3483
    %v3535 = vunpack.c.h.b16 %v3483
    %v3536 = vunpack.c.l.b16 %v3484
    %v3537 = vunpack.c.h.b16 %v3484
    %v3538 = vunpack.c.l.b16 %v3485
    %v3539 = vunpack.c.h.b16 %v3485
    %v3540 = vpack.c.b16 %v3510, %v3508
    %v3541 = vpack.c.b16 %v3511, %v3509
    %v3542 = vpack.c.b16 %v3514, %v3512
    %v3543 = vpack.c.b16 %v3515, %v3513
    %v3544 = vpack.c.b16 %v3518, %v3516
    %v3545 = vpack.c.b16 %v3519, %v3517
    %v3546 = vpack.c.b16 %v3522, %v3520
    %v3547 = vpack.c.b16 %v3523, %v3521
    %v3548 = vpack.c.b16 %v3526, %v3524
    %v3549 = vpack.c.b16 %v3527, %v3525
    %v3550 = vpack.c.b16 %v3530, %v3528
    %v3551 = vpack.c.b16 %v3531, %v3529
    %v3552 = vpack.c.b16 %v3534, %v3532
    %v3553 = vpack.c.b16 %v3535, %v3533
    %v3554 = vpack.c.b16 %v3538, %v3536
    %v3555 = vpack.c.b16 %v3539, %v3537
    %3572 = vmatpush.bf16.msra.mxu0 %v3554
    %3573 = vmatpush.bf16.msra.mxu0 %v3552
    %3574 = vmatpush.bf16.msra.mxu0 %v3550
    %3575 = vmatpush.bf16.msra.mxu0 %v3548
    %3576 = vmatpush.bf16.msra.mxu0 %v3546
    %3577 = vmatpush.bf16.msra.mxu0 %v3544
    %3578 = vmatpush.bf16.msra.mxu0 %v3542
    %3579 = vmatpush.bf16.msra.mxu0 %v3540
    %3580 = vmatmul.bf16.gmra.mxu0 %v3469
    %v3581 = vpop.f32.mrf.mxu0
    %v3582 = vadd.f32 %v3488, %v3581
    %v3583 = vpop.f32.mrf.mxu0
    %3584 = vdwg.mxu0
    %3585 = vmatpush.bf16.msra.mxu0 %v3555
    %3586 = vmatpush.bf16.msra.mxu0 %v3553
    %3587 = vmatpush.bf16.msra.mxu0 %v3551
    %3588 = vmatpush.bf16.msra.mxu0 %v3549
    %3589 = vmatpush.bf16.msra.mxu0 %v3547
    %3590 = vmatpush.bf16.msra.mxu0 %v3545
    %3591 = vmatpush.bf16.msra.mxu0 %v3543
    %3592 = vmatpush.bf16.msra.mxu0 %v3541
    %3593 = vmatmul.bf16.gmra.mxu0 %v3469
    %v3594 = vpop.f32.mrf.mxu0
    %v3595 = vadd.f32 %v3489, %v3594
    %v3596 = vpop.f32.mrf.mxu0
    %3597 = vdwg.mxu0
    %vm3598 = vcmp.gt.f32.partialorder %v3582, 0.0
    %vm3599 = vcmp.gt.f32.partialorder %v3595, 0.0
    %v3600 = vmul.f32 %v3582, 0.01
    %v3601 = vmul.f32 %v3595, 0.01
    %v3602 = vsel %vm3598, %v3582, %v3600
    %v3603 = vsel %vm3599, %v3595, %v3601
    %v3604 = vld [vmem:[#allocation16] sm:$0x3]
    %v3606 = vperm.slane %v3604, 0
    %v3607 = vperm.slane %v3604, 1
    %v3610 = vmul.f32 %v3602, %v3606
    %v3611 = vmul.f32 %v3603, %v3607
    %v3612 = vadd.f32 %v3610, %v3611
    %3613 = vadd.xlane.f32.xlu0 %v3612
    %v3614 = vpop.xlane.xlu0 %3613
    %v3615 = vld [vmem:[#allocation2] sm:$0x1]
    %v3617 = vperm.slane %v3615, 0
    %v3619 = vadd.f32 %v3614, %v3617
    %vm3620 = vcmask 7168
    %3621 = vst.msk [vmem:[%s13] sm:$0xff] %vm3620, %v3619
    // Predicated region
    $region90: #{critic_forward.1} parent=1 // pred_check
      _
    $region91: #{critic_forward.1} parent=1 // pred_check_branch
      %3623 = sbr.rel (0) target = $region93
    $region92: #{critic_forward.1} parent=1 // pred_region
      _
    $region93: #{critic_forward.1} parent=1 // pred_fallthru
      _
    // Predicated region
    $region94: #{critic_forward.1} parent=1 // pred_check
      _
    $region95: #{critic_forward.1} parent=1 // pred_check_branch
      %3625 = sbr.rel (0) target = $region97
    $region96: #{critic_forward.1} parent=1 // pred_region
      _
    $region97: #{critic_forward.1} parent=1 // pred_fallthru
      _
    %3626 = vsyncpa [#allocation4], 1
    %3627 = vsyncpa [#allocation6], 1
    %3628 = vsyncpa [#allocation9], 1
    %3629 = vsyncpa [#allocation12], 1
    %3630 = vsyncpa [#allocation15], 1

</llo_original>
